<compile_context>
chip_gen: v7x
topology: tpu7x:2x2x1
jax: 0.10.0
libtpu: 0.0.40
codegen_flags: <defaults>
</compile_context>

<pallas_src>
import functools

import jax
import jax.numpy as jnp
import numpy as np
from jax.experimental import pallas as pl
from jax.experimental.pallas import tpu as pltpu

_EPS = 1e-5  # PyTorch LayerNorm default


# ----------------------------------------------------------------------------
# Kernel factory: fully fused Dec forward (single pallas_call)
# ----------------------------------------------------------------------------
def _make_dec_kernel(nlay, nprd, odim, covdim, hdim, mm_dtype):
    G = nprd * odim          # dec2 / g width
    C = nprd * covdim        # featproj (block-diag) width
    TH = nprd * hdim         # temporal hidden (block-diag) width
    n_std = nlay             # (nlay-1) dec1 blocks + dec2

    def mm(a, w):
        # Weights arrive pre-cast to mm_dtype from the wrapper; only the
        # activation is cast here (no-op when mm_dtype == f32).
        return jnp.dot(a.astype(mm_dtype), w, preferred_element_type=jnp.float32)

    def full_ln(s, gamma, beta):
        # Row mean / var on the MXU (s @ ones) instead of XLU reductions.
        k = s.shape[-1]
        ones = jnp.ones((k, 1), jnp.float32)
        m1 = jnp.dot(s, ones, preferred_element_type=jnp.float32) * (1.0 / k)
        m2 = jnp.dot(s * s, ones, preferred_element_type=jnp.float32) * (1.0 / k)
        var = jnp.maximum(m2 - m1 * m1, 0.0)
        return (s - m1) * jax.lax.rsqrt(var + _EPS) * gamma + beta

    def seg_ln(s, seg_sum, seg_exp, inv_w, gamma, beta):
        # LayerNorm over each lane segment (one segment per prediction step);
        # both the segment reduction and the broadcast-back use the MXU.
        m1 = jnp.dot(s, seg_sum, preferred_element_type=jnp.float32) * inv_w
        m2 = jnp.dot(s * s, seg_sum, preferred_element_type=jnp.float32) * inv_w
        var = jnp.maximum(m2 - m1 * m1, 0.0)
        rstd = jax.lax.rsqrt(var + _EPS)
        mu = jnp.dot(m1, seg_exp, preferred_element_type=jnp.float32)
        rs = jnp.dot(rstd, seg_exp, preferred_element_type=jnp.float32)
        return (s - mu) * rs * gamma + beta

    def std_res(x, w13, b13, w2, b2, gamma, beta):
        # lin1 and lin3 share x -> one MXU matmul against [W1 | W3].
        t = mm(x, w13) + b13
        h1 = jnp.maximum(t[:, :hdim], 0.0)
        r = t[:, hdim:]
        # TODO(synk): nn.Dropout reproduced in eval mode only (identity).
        s = mm(h1, w2) + b2 + r
        return full_ln(s, gamma, beta)

    def kernel(h_ref, xt_ref, *refs):
        p = refs[:-1]
        out_ref = refs[-1]
        std_p = [p[6 * i:6 * (i + 1)] for i in range(n_std)]
        (fw1, fw3, fb1, fb3, fw2, fb2,
         fga, fbe, f_sum, f_exp) = p[6 * n_std:6 * n_std + 10]
        (twg, twc, tb13, tw2, tb2, tga, tbe, t_sum, t_exp) = p[6 * n_std + 10:]

        # ---- dec1 stack + dec2: activation stays resident in VMEM/vregs ----
        h = h_ref[...]
        for i in range(nlay - 1):
            w13, b13, w2, b2, ga, be = (r[...] for r in std_p[i])
            h = std_res(h, w13, b13, w2, b2, ga, be)
        w13, b13, w2, b2, ga, be = (r[...] for r in std_p[nlay - 1])
        g = std_res(h, w13, b13, w2, b2, ga, be)              # (tile_b, G)
        out_ref[:, 0:G] = g.astype(out_ref.dtype)

        # ---- featproj: all nprd steps at once (block-diagonal weights) ------
        x = xt_ref[...]                                       # (tile_b, nprd*idim)
        th = jnp.maximum(mm(x, fw1[...]) + fb1[...], 0.0)     # (tile_b, C)
        s = mm(th, fw2[...]) + fb2[...] + mm(x, fw3[...]) + fb3[...]
        cov = seg_ln(s, f_sum[...], f_exp[...], 1.0 / covdim, fga[...], fbe[...])
        out_ref[:, G:G + C] = cov.astype(out_ref.dtype)

        # ---- temporal: split matmul on the virtual [g | cov] concat, all
        #      nprd steps at once; the concat is never materialized. ----------
        t = mm(g, twg[...]) + mm(cov, twc[...]) + tb13[...]   # (tile_b, TH+nprd)
        h1 = jnp.maximum(t[:, :TH], 0.0)
        r = t[:, TH:]
        s2 = mm(h1, tw2[...]) + tb2[...] + r                  # (tile_b, nprd)
        o = seg_ln(s2, t_sum[...], t_exp[...], 1.0, tga[...], tbe[...])
        out_ref[:, G + C:G + C + nprd] = o.astype(out_ref.dtype)

    return kernel


# ----------------------------------------------------------------------------
# Row-tile choice: big tiles, but always >=2 (even) grid steps for v7x
# ----------------------------------------------------------------------------
def _tile_rows(B, row_tile):
    if B <= 16:                       # tiny batch: one full-array block
        return B, B
    n = max(2, pl.cdiv(B, row_tile))  # at least two steps (v7x megacore)
    n = n + (n % 2)                   # even step count -> balanced across 2 TCs
    tile = ((pl.cdiv(B, n) + 7) // 8) * 8
    return tile, n * tile


# ----------------------------------------------------------------------------
# One-time parameter packing (outside jit)
# ----------------------------------------------------------------------------
def pack_dec_params(params, *, odim, nprd, matmul_dtype=jnp.float32):
    """Fuse / block-diagonalize the Dec parameters for the kernel.

    Standard Res blocks get [W1 | W3] fused; featproj and temporal weights are
    replicated block-diagonally over the nprd prediction steps so the kernel
    batches all steps in single matmuls.  MXU operands are cast to
    `matmul_dtype`; biases, LayerNorm affine params and segment matrices stay
    f32 (LayerNorm math is always f32 in the kernel).
    """
    f32 = jnp.float32
    cast = lambda w: w.astype(matmul_dtype)
    eye = jnp.eye(nprd, dtype=f32)
    bd = lambda w: jnp.kron(eye, w.astype(f32))       # block-diag over steps
    rep = lambda b: jnp.tile(b.astype(f32), (1, nprd))

    arrays = []
    for blk in list(params["dec1"]) + [params["dec2"]]:
        arrays += [cast(jnp.concatenate([blk["w1"], blk["w3"]], axis=1)),
                   jnp.concatenate([blk["b1"], blk["b3"]], axis=1).astype(f32),
                   cast(blk["w2"]), blk["b2"].astype(f32),
                   blk["gamma"].astype(f32), blk["beta"].astype(f32)]

    fp = params["featproj"]
    covdim = fp["w2"].shape[0]
    seg_sum = jnp.kron(eye, jnp.ones((covdim, 1), f32))   # (nprd*covdim, nprd)
    arrays += [cast(bd(fp["w1"])), cast(bd(fp["w3"])), rep(fp["b1"]), rep(fp["b3"]),
               cast(bd(fp["w2"])), rep(fp["b2"]), rep(fp["gamma"]), rep(fp["beta"]),
               seg_sum, seg_sum.T]

    tp = params["temporal"]
    # Split by input source (g vs cov) and fuse [hidden | residual] columns;
    # nprd*hdim lands exactly on a vreg boundary for the hidden/residual split.
    twg = jnp.concatenate([bd(tp["w1"][:odim]), bd(tp["w3"][:odim])], axis=1)
    twc = jnp.concatenate([bd(tp["w1"][odim:]), bd(tp["w3"][odim:])], axis=1)
    tb13 = jnp.concatenate([rep(tp["b1"]), rep(tp["b3"])], axis=1)
    arrays += [cast(twg), cast(twc), tb13, cast(bd(tp["w2"])), rep(tp["b2"]),
               rep(tp["gamma"]), rep(tp["beta"]), eye, eye]
    return tuple(arrays)


# ----------------------------------------------------------------------------
# Dec.forward wrapper
# ----------------------------------------------------------------------------
@functools.partial(jax.jit, static_argnames=("odim", "nlay", "nprd", "row_tile"))
def dec_forward(packed, h, x, *, odim, nlay, nprd, row_tile=2048):
    """Fused Dec.forward. Returns (out (B,nprd,1), g_unflatten, covariate_prd)."""
    B, hdim = h.shape
    idim = x.shape[-1]
    covdim = packed[6 * nlay].shape[1] // nprd   # featproj W1_bd: (nprd*idim, nprd*covdim)
    mm_dtype = packed[0].dtype
    G, C = nprd * odim, nprd * covdim
    out_cols = G + C + nprd

    # Last nprd timesteps as one lane-dense 2D slab (p-major, matching the
    # block-diagonal weight layout).
    xt2d = x[:, -nprd:, :].reshape(B, nprd * idim).astype(jnp.float32)
    h = h.astype(jnp.float32)

    tile_b, b_pad = _tile_rows(B, row_tile)
    if b_pad != B:
        h = jnp.pad(h, ((0, b_pad - B), (0, 0)))
        xt2d = jnp.pad(xt2d, ((0, b_pad - B), (0, 0)))

    grid = (b_pad // tile_b,)
    row_spec = lambda cols: pl.BlockSpec((tile_b, cols), lambda b: (b, 0))
    const_spec = lambda a: pl.BlockSpec(a.shape, lambda b: (0, 0))

    # VMEM budget: double-buffered row I/O + resident weights + headroom for
    # full-tile intermediates, clamped to 48 MiB (v7x has 64 MiB physical).
    w_bytes = sum(int(np.prod(a.shape)) * a.dtype.itemsize for a in packed)
    act_bytes = tile_b * (hdim + nprd * idim + out_cols) * 4
    vmem_limit = int(2 * act_bytes + 2 * w_bytes
                     + 16 * tile_b * (nprd * hdim + nprd) * 4) + (8 << 20)
    vmem_limit = max(32 << 20, min(vmem_limit, 48 << 20))

    kernel = _make_dec_kernel(nlay, nprd, odim, covdim, hdim, mm_dtype)
    slab = pl.pallas_call(
        kernel,
        grid=grid,
        in_specs=[row_spec(hdim), row_spec(nprd * idim)]
                 + [const_spec(a) for a in packed],
        out_specs=row_spec(out_cols),
        out_shape=jax.ShapeDtypeStruct((b_pad, out_cols), jnp.float32),
        compiler_params=pltpu.CompilerParams(
            dimension_semantics=("parallel",),       # megacore sharding on v7x
            vmem_limit_bytes=vmem_limit),
    )(h, xt2d, *packed)

    out = slab[:B, G + C:].reshape(B, nprd, 1)
    g_unflatten = slab[:B, :G].reshape(B, nprd, odim)
    covariate_prd = slab[:B, G:G + C].reshape(B, nprd, covdim)
    return out, g_unflatten, covariate_prd


# ----------------------------------------------------------------------------
# Parameter initialisation (PyTorch-Linear-style uniform init, raw weights)
# ----------------------------------------------------------------------------
def init_res(key, idim_, hdim_, odim_):
    ks = jax.random.split(key, 6)

    def lin(kw, kb, fan_in, fan_out):
        bound = 1.0 / np.sqrt(fan_in)
        w = jax.random.uniform(kw, (fan_in, fan_out), jnp.float32, -bound, bound)
        b = jax.random.uniform(kb, (1, fan_out), jnp.float32, -bound, bound)
        return w, b

    w1, b1 = lin(ks[0], ks[1], idim_, hdim_)
    w2, b2 = lin(ks[2], ks[3], hdim_, odim_)
    w3, b3 = lin(ks[4], ks[5], idim_, odim_)
    return dict(w1=w1, b1=b1, w2=w2, b2=b2, w3=w3, b3=b3,
                gamma=jnp.ones((1, odim_), jnp.float32),
                beta=jnp.zeros((1, odim_), jnp.float32))


def init_dec(key, idim, covariatedim, hdim, odim, nlay, nprd):
    keys = jax.random.split(key, nlay + 2)
    return dict(
        dec1=[init_res(keys[i], hdim, hdim, hdim) for i in range(nlay - 1)],
        dec2=init_res(keys[nlay - 1], hdim, hdim, nprd * odim),
        featproj=init_res(keys[nlay], idim, covariatedim, covariatedim),
        temporal=init_res(keys[nlay + 1], odim + covariatedim, hdim, 1),
    )


# ----------------------------------------------------------------------------
# Pure-JAX reference
# ----------------------------------------------------------------------------
def res_ref(p, x):
    hh = jnp.maximum(x @ p["w1"] + p["b1"], 0.0) @ p["w2"] + p["b2"]
    r = x @ p["w3"] + p["b3"]
    s = hh + r
    mu = s.mean(-1, keepdims=True)
    var = ((s - mu) ** 2).mean(-1, keepdims=True)
    return (s - mu) / jnp.sqrt(var + _EPS) * p["gamma"] + p["beta"]


def dec_ref(params, h, x, *, odim, nlay, nprd):
    B = h.shape[0]
    for i in range(nlay - 1):
        h = res_ref(params["dec1"][i], h)
    g = res_ref(params["dec2"], h).reshape(B, nprd, odim)
    xt = x[:, -nprd:, :]
    cov = res_ref(params["featproj"], xt.reshape(B * nprd, xt.shape[-1]))
    cov = cov.reshape(B, nprd, -1)
    o = jnp.concatenate([g, cov], axis=-1)
    out = res_ref(params["temporal"], o.reshape(B * nprd, -1)).reshape(B, nprd, 1)
    return out, g, cov


# ----------------------------------------------------------------------------
if __name__ == "__main__":
    # Dec(idim, covariatedim, hdim, odim, drop, nlay, nprd)
    idim, covariatedim, hdim, odim = 16, 16, 32, 8
    nlay, nprd = 3, 4
    T = 8

    key = jax.random.PRNGKey(0)
    kp, kh, kx = jax.random.split(key, 3)
    params = init_dec(kp, idim, covariatedim, hdim, odim, nlay, nprd)
    packed = pack_dec_params(params, odim=odim, nprd=nprd)  # f32 MXU operands

    for B in (2, 100):   # single-tile path and (grid=2, padded) path
        kh_b, kx_b = jax.random.split(jax.random.fold_in(kh, B))
        h = jax.random.normal(kh_b, (B, hdim), jnp.float32)
        x = jax.random.normal(kx_b, (B, T, idim), jnp.float32)

        out, g_unf, cov = dec_forward(packed, h, x, odim=odim, nlay=nlay, nprd=nprd)
        out = jax.block_until_ready(out)

        out_r, g_r, cov_r = dec_ref(params, h, x, odim=odim, nlay=nlay, nprd=nprd)
        assert out.shape == (B, nprd, 1), out.shape
        np.testing.assert_allclose(np.asarray(out), np.asarray(out_r),
                                   rtol=1e-4, atol=1e-4)
        np.testing.assert_allclose(np.asarray(g_unf), np.asarray(g_r),
                                   rtol=1e-4, atol=1e-4)
        np.testing.assert_allclose(np.asarray(cov), np.asarray(cov_r),
                                   rtol=1e-4, atol=1e-4)
    print("KERNEL_OK")
</pallas_src>

<mosaic_0001>
module attributes {stable_mosaic.version = 11 : i64} {
  func.func @kernel(%arg0: i32, %arg1: memref<2x32xf32, #tpu.memory_space<vmem>>, %arg2: memref<2x64xf32, #tpu.memory_space<vmem>>, %arg3: memref<32x64xf32, #tpu.memory_space<vmem>>, %arg4: memref<1x64xf32, #tpu.memory_space<vmem>>, %arg5: memref<32x32xf32, #tpu.memory_space<vmem>>, %arg6: memref<1x32xf32, #tpu.memory_space<vmem>>, %arg7: memref<1x32xf32, #tpu.memory_space<vmem>>, %arg8: memref<1x32xf32, #tpu.memory_space<vmem>>, %arg9: memref<32x64xf32, #tpu.memory_space<vmem>>, %arg10: memref<1x64xf32, #tpu.memory_space<vmem>>, %arg11: memref<32x32xf32, #tpu.memory_space<vmem>>, %arg12: memref<1x32xf32, #tpu.memory_space<vmem>>, %arg13: memref<1x32xf32, #tpu.memory_space<vmem>>, %arg14: memref<1x32xf32, #tpu.memory_space<vmem>>, %arg15: memref<32x64xf32, #tpu.memory_space<vmem>>, %arg16: memref<1x64xf32, #tpu.memory_space<vmem>>, %arg17: memref<32x32xf32, #tpu.memory_space<vmem>>, %arg18: memref<1x32xf32, #tpu.memory_space<vmem>>, %arg19: memref<1x32xf32, #tpu.memory_space<vmem>>, %arg20: memref<1x32xf32, #tpu.memory_space<vmem>>, %arg21: memref<64x64xf32, #tpu.memory_space<vmem>>, %arg22: memref<64x64xf32, #tpu.memory_space<vmem>>, %arg23: memref<1x64xf32, #tpu.memory_space<vmem>>, %arg24: memref<1x64xf32, #tpu.memory_space<vmem>>, %arg25: memref<64x64xf32, #tpu.memory_space<vmem>>, %arg26: memref<1x64xf32, #tpu.memory_space<vmem>>, %arg27: memref<1x64xf32, #tpu.memory_space<vmem>>, %arg28: memref<1x64xf32, #tpu.memory_space<vmem>>, %arg29: memref<64x4xf32, #tpu.memory_space<vmem>>, %arg30: memref<4x64xf32, #tpu.memory_space<vmem>>, %arg31: memref<32x132xf32, #tpu.memory_space<vmem>>, %arg32: memref<64x132xf32, #tpu.memory_space<vmem>>, %arg33: memref<1x132xf32, #tpu.memory_space<vmem>>, %arg34: memref<128x4xf32, #tpu.memory_space<vmem>>, %arg35: memref<1x4xf32, #tpu.memory_space<vmem>>, %arg36: memref<1x4xf32, #tpu.memory_space<vmem>>, %arg37: memref<1x4xf32, #tpu.memory_space<vmem>>, %arg38: memref<4x4xf32, #tpu.memory_space<vmem>>, %arg39: memref<4x4xf32, #tpu.memory_space<vmem>>, %arg40: memref<2x100xf32, #tpu.memory_space<vmem>>) attributes {dimension_semantics = [#tpu.dimension_semantics<parallel>], iteration_bounds = array<i64: 1>, scalar_prefetch = 0 : i64, scratch_operands = 0 : i64, tpu.core_type = #tpu.core_type<tc>, window_params = [{transform_indices = @transform_0, window_bounds = array<i64: 2, 32>}, {transform_indices = @transform_1, window_bounds = array<i64: 2, 64>}, {pipeline_mode = #tpu.pipeline_mode<synchronous>, transform_indices = @transform_2, window_bounds = array<i64: 32, 64>}, {pipeline_mode = #tpu.pipeline_mode<synchronous>, transform_indices = @transform_3, window_bounds = array<i64: 1, 64>}, {pipeline_mode = #tpu.pipeline_mode<synchronous>, transform_indices = @transform_4, window_bounds = array<i64: 32, 32>}, {pipeline_mode = #tpu.pipeline_mode<synchronous>, transform_indices = @transform_5, window_bounds = array<i64: 1, 32>}, {pipeline_mode = #tpu.pipeline_mode<synchronous>, transform_indices = @transform_6, window_bounds = array<i64: 1, 32>}, {pipeline_mode = #tpu.pipeline_mode<synchronous>, transform_indices = @transform_7, window_bounds = array<i64: 1, 32>}, {pipeline_mode = #tpu.pipeline_mode<synchronous>, transform_indices = @transform_8, window_bounds = array<i64: 32, 64>}, {pipeline_mode = #tpu.pipeline_mode<synchronous>, transform_indices = @transform_9, window_bounds = array<i64: 1, 64>}, {pipeline_mode = #tpu.pipeline_mode<synchronous>, transform_indices = @transform_10, window_bounds = array<i64: 32, 32>}, {pipeline_mode = #tpu.pipeline_mode<synchronous>, transform_indices = @transform_11, window_bounds = array<i64: 1, 32>}, {pipeline_mode = #tpu.pipeline_mode<synchronous>, transform_indices = @transform_12, window_bounds = array<i64: 1, 32>}, {pipeline_mode = #tpu.pipeline_mode<synchronous>, transform_indices = @transform_13, window_bounds = array<i64: 1, 32>}, {pipeline_mode = #tpu.pipeline_mode<synchronous>, transform_indices = @transform_14, window_bounds = array<i64: 32, 64>}, {pipeline_mode = #tpu.pipeline_mode<synchronous>, transform_indices = @transform_15, window_bounds = array<i64: 1, 64>}, {pipeline_mode = #tpu.pipeline_mode<synchronous>, transform_indices = @transform_16, window_bounds = array<i64: 32, 32>}, {pipeline_mode = #tpu.pipeline_mode<synchronous>, transform_indices = @transform_17, window_bounds = array<i64: 1, 32>}, {pipeline_mode = #tpu.pipeline_mode<synchronous>, transform_indices = @transform_18, window_bounds = array<i64: 1, 32>}, {pipeline_mode = #tpu.pipeline_mode<synchronous>, transform_indices = @transform_19, window_bounds = array<i64: 1, 32>}, {pipeline_mode = #tpu.pipeline_mode<synchronous>, transform_indices = @transform_20, window_bounds = array<i64: 64, 64>}, {pipeline_mode = #tpu.pipeline_mode<synchronous>, transform_indices = @transform_21, window_bounds = array<i64: 64, 64>}, {pipeline_mode = #tpu.pipeline_mode<synchronous>, transform_indices = @transform_22, window_bounds = array<i64: 1, 64>}, {pipeline_mode = #tpu.pipeline_mode<synchronous>, transform_indices = @transform_23, window_bounds = array<i64: 1, 64>}, {pipeline_mode = #tpu.pipeline_mode<synchronous>, transform_indices = @transform_24, window_bounds = array<i64: 64, 64>}, {pipeline_mode = #tpu.pipeline_mode<synchronous>, transform_indices = @transform_25, window_bounds = array<i64: 1, 64>}, {pipeline_mode = #tpu.pipeline_mode<synchronous>, transform_indices = @transform_26, window_bounds = array<i64: 1, 64>}, {pipeline_mode = #tpu.pipeline_mode<synchronous>, transform_indices = @transform_27, window_bounds = array<i64: 1, 64>}, {pipeline_mode = #tpu.pipeline_mode<synchronous>, transform_indices = @transform_28, window_bounds = array<i64: 64, 4>}, {pipeline_mode = #tpu.pipeline_mode<synchronous>, transform_indices = @transform_29, window_bounds = array<i64: 4, 64>}, {pipeline_mode = #tpu.pipeline_mode<synchronous>, transform_indices = @transform_30, window_bounds = array<i64: 32, 132>}, {pipeline_mode = #tpu.pipeline_mode<synchronous>, transform_indices = @transform_31, window_bounds = array<i64: 64, 132>}, {pipeline_mode = #tpu.pipeline_mode<synchronous>, transform_indices = @transform_32, window_bounds = array<i64: 1, 132>}, {pipeline_mode = #tpu.pipeline_mode<synchronous>, transform_indices = @transform_33, window_bounds = array<i64: 128, 4>}, {pipeline_mode = #tpu.pipeline_mode<synchronous>, transform_indices = @transform_34, window_bounds = array<i64: 1, 4>}, {pipeline_mode = #tpu.pipeline_mode<synchronous>, transform_indices = @transform_35, window_bounds = array<i64: 1, 4>}, {pipeline_mode = #tpu.pipeline_mode<synchronous>, transform_indices = @transform_36, window_bounds = array<i64: 1, 4>}, {pipeline_mode = #tpu.pipeline_mode<synchronous>, transform_indices = @transform_37, window_bounds = array<i64: 4, 4>}, {pipeline_mode = #tpu.pipeline_mode<synchronous>, transform_indices = @transform_38, window_bounds = array<i64: 4, 4>}, {transform_indices = @transform_39, window_bounds = array<i64: 2, 100>}]} {
    %c0 = arith.constant 0 : index
    %c0_0 = arith.constant 0 : index
    %0 = vector.load %arg1[%c0, %c0_0] : memref<2x32xf32, #tpu.memory_space<vmem>>, vector<2x32xf32>
    %c0_1 = arith.constant 0 : index
    %c0_2 = arith.constant 0 : index
    %1 = vector.load %arg3[%c0_1, %c0_2] : memref<32x64xf32, #tpu.memory_space<vmem>>, vector<32x64xf32>
    %c0_3 = arith.constant 0 : index
    %c0_4 = arith.constant 0 : index
    %2 = vector.load %arg4[%c0_3, %c0_4] : memref<1x64xf32, #tpu.memory_space<vmem>>, vector<1x64xf32>
    %c0_5 = arith.constant 0 : index
    %c0_6 = arith.constant 0 : index
    %3 = vector.load %arg5[%c0_5, %c0_6] : memref<32x32xf32, #tpu.memory_space<vmem>>, vector<32x32xf32>
    %c0_7 = arith.constant 0 : index
    %c0_8 = arith.constant 0 : index
    %4 = vector.load %arg6[%c0_7, %c0_8] : memref<1x32xf32, #tpu.memory_space<vmem>>, vector<1x32xf32>
    %c0_9 = arith.constant 0 : index
    %c0_10 = arith.constant 0 : index
    %5 = vector.load %arg7[%c0_9, %c0_10] : memref<1x32xf32, #tpu.memory_space<vmem>>, vector<1x32xf32>
    %c0_11 = arith.constant 0 : index
    %c0_12 = arith.constant 0 : index
    %6 = vector.load %arg8[%c0_11, %c0_12] : memref<1x32xf32, #tpu.memory_space<vmem>>, vector<1x32xf32>
    %cst = arith.constant dense<0.000000e+00> : vector<2x64xf32>
    %7 = tpu.matmul %0, %1, %cst {dimension_numbers = #tpu.dot_dimension_numbers<[1], [0], [0], [1], [0, 0, 1, 1], [], []>} : vector<2x32xf32>, vector<32x64xf32>, vector<2x64xf32> -> vector<2x64xf32>
    %8 = vector.broadcast %2 : vector<1x64xf32> to vector<2x64xf32>
    %9 = arith.addf %7, %8 : vector<2x64xf32>
    %10 = vector.extract_strided_slice %9 {offsets = [0, 0], sizes = [2, 32], strides = [1, 1]} : vector<2x64xf32> to vector<2x32xf32>
    %cst_13 = arith.constant 0.000000e+00 : f32
    %11 = vector.broadcast %cst_13 : f32 to vector<2x32xf32>
    %12 = arith.maximumf %10, %11 : vector<2x32xf32>
    %13 = vector.extract_strided_slice %9 {offsets = [0, 32], sizes = [2, 32], strides = [1, 1]} : vector<2x64xf32> to vector<2x32xf32>
    %cst_14 = arith.constant dense<0.000000e+00> : vector<2x32xf32>
    %14 = tpu.matmul %12, %3, %cst_14 {dimension_numbers = #tpu.dot_dimension_numbers<[1], [0], [0], [1], [0, 0, 1, 1], [], []>} : vector<2x32xf32>, vector<32x32xf32>, vector<2x32xf32> -> vector<2x32xf32>
    %15 = vector.broadcast %4 : vector<1x32xf32> to vector<2x32xf32>
    %16 = arith.addf %14, %15 : vector<2x32xf32>
    %17 = arith.addf %16, %13 : vector<2x32xf32>
    %cst_15 = arith.constant 1.000000e+00 : f32
    %18 = vector.broadcast %cst_15 : f32 to vector<32x1xf32>
    %cst_16 = arith.constant dense<0.000000e+00> : vector<2x1xf32>
    %19 = tpu.matmul %17, %18, %cst_16 {dimension_numbers = #tpu.dot_dimension_numbers<[1], [0], [0], [1], [0, 0, 1, 1], [], []>} : vector<2x32xf32>, vector<32x1xf32>, vector<2x1xf32> -> vector<2x1xf32>
    %cst_17 = arith.constant 3.125000e-02 : f32
    %20 = vector.broadcast %cst_17 : f32 to vector<2x1xf32>
    %21 = arith.mulf %19, %20 : vector<2x1xf32>
    %22 = arith.mulf %17, %17 : vector<2x32xf32>
    %cst_18 = arith.constant dense<0.000000e+00> : vector<2x1xf32>
    %23 = tpu.matmul %22, %18, %cst_18 {dimension_numbers = #tpu.dot_dimension_numbers<[1], [0], [0], [1], [0, 0, 1, 1], [], []>} : vector<2x32xf32>, vector<32x1xf32>, vector<2x1xf32> -> vector<2x1xf32>
    %cst_19 = arith.constant 3.125000e-02 : f32
    %24 = vector.broadcast %cst_19 : f32 to vector<2x1xf32>
    %25 = arith.mulf %23, %24 : vector<2x1xf32>
    %26 = arith.mulf %21, %21 : vector<2x1xf32>
    %27 = arith.subf %25, %26 : vector<2x1xf32>
    %cst_20 = arith.constant 0.000000e+00 : f32
    %28 = vector.broadcast %cst_20 : f32 to vector<2x1xf32>
    %29 = arith.maximumf %27, %28 : vector<2x1xf32>
    %30 = vector.broadcast %21 : vector<2x1xf32> to vector<2x32xf32>
    %31 = arith.subf %17, %30 : vector<2x32xf32>
    %cst_21 = arith.constant 9.99999974E-6 : f32
    %32 = vector.broadcast %cst_21 : f32 to vector<2x1xf32>
    %33 = arith.addf %29, %32 : vector<2x1xf32>
    %34 = math.rsqrt %33 : vector<2x1xf32>
    %35 = vector.broadcast %34 : vector<2x1xf32> to vector<2x32xf32>
    %36 = arith.mulf %31, %35 : vector<2x32xf32>
    %37 = vector.broadcast %5 : vector<1x32xf32> to vector<2x32xf32>
    %38 = arith.mulf %36, %37 : vector<2x32xf32>
    %39 = vector.broadcast %6 : vector<1x32xf32> to vector<2x32xf32>
    %40 = arith.addf %38, %39 : vector<2x32xf32>
    %c0_22 = arith.constant 0 : index
    %c0_23 = arith.constant 0 : index
    %41 = vector.load %arg9[%c0_22, %c0_23] : memref<32x64xf32, #tpu.memory_space<vmem>>, vector<32x64xf32>
    %c0_24 = arith.constant 0 : index
    %c0_25 = arith.constant 0 : index
    %42 = vector.load %arg10[%c0_24, %c0_25] : memref<1x64xf32, #tpu.memory_space<vmem>>, vector<1x64xf32>
    %c0_26 = arith.constant 0 : index
    %c0_27 = arith.constant 0 : index
    %43 = vector.load %arg11[%c0_26, %c0_27] : memref<32x32xf32, #tpu.memory_space<vmem>>, vector<32x32xf32>
    %c0_28 = arith.constant 0 : index
    %c0_29 = arith.constant 0 : index
    %44 = vector.load %arg12[%c0_28, %c0_29] : memref<1x32xf32, #tpu.memory_space<vmem>>, vector<1x32xf32>
    %c0_30 = arith.constant 0 : index
    %c0_31 = arith.constant 0 : index
    %45 = vector.load %arg13[%c0_30, %c0_31] : memref<1x32xf32, #tpu.memory_space<vmem>>, vector<1x32xf32>
    %c0_32 = arith.constant 0 : index
    %c0_33 = arith.constant 0 : index
    %46 = vector.load %arg14[%c0_32, %c0_33] : memref<1x32xf32, #tpu.memory_space<vmem>>, vector<1x32xf32>
    %cst_34 = arith.constant dense<0.000000e+00> : vector<2x64xf32>
    %47 = tpu.matmul %40, %41, %cst_34 {dimension_numbers = #tpu.dot_dimension_numbers<[1], [0], [0], [1], [0, 0, 1, 1], [], []>} : vector<2x32xf32>, vector<32x64xf32>, vector<2x64xf32> -> vector<2x64xf32>
    %48 = vector.broadcast %42 : vector<1x64xf32> to vector<2x64xf32>
    %49 = arith.addf %47, %48 : vector<2x64xf32>
    %50 = vector.extract_strided_slice %49 {offsets = [0, 0], sizes = [2, 32], strides = [1, 1]} : vector<2x64xf32> to vector<2x32xf32>
    %cst_35 = arith.constant 0.000000e+00 : f32
    %51 = vector.broadcast %cst_35 : f32 to vector<2x32xf32>
    %52 = arith.maximumf %50, %51 : vector<2x32xf32>
    %53 = vector.extract_strided_slice %49 {offsets = [0, 32], sizes = [2, 32], strides = [1, 1]} : vector<2x64xf32> to vector<2x32xf32>
    %cst_36 = arith.constant dense<0.000000e+00> : vector<2x32xf32>
    %54 = tpu.matmul %52, %43, %cst_36 {dimension_numbers = #tpu.dot_dimension_numbers<[1], [0], [0], [1], [0, 0, 1, 1], [], []>} : vector<2x32xf32>, vector<32x32xf32>, vector<2x32xf32> -> vector<2x32xf32>
    %55 = vector.broadcast %44 : vector<1x32xf32> to vector<2x32xf32>
    %56 = arith.addf %54, %55 : vector<2x32xf32>
    %57 = arith.addf %56, %53 : vector<2x32xf32>
    %cst_37 = arith.constant 1.000000e+00 : f32
    %58 = vector.broadcast %cst_37 : f32 to vector<32x1xf32>
    %cst_38 = arith.constant dense<0.000000e+00> : vector<2x1xf32>
    %59 = tpu.matmul %57, %58, %cst_38 {dimension_numbers = #tpu.dot_dimension_numbers<[1], [0], [0], [1], [0, 0, 1, 1], [], []>} : vector<2x32xf32>, vector<32x1xf32>, vector<2x1xf32> -> vector<2x1xf32>
    %cst_39 = arith.constant 3.125000e-02 : f32
    %60 = vector.broadcast %cst_39 : f32 to vector<2x1xf32>
    %61 = arith.mulf %59, %60 : vector<2x1xf32>
    %62 = arith.mulf %57, %57 : vector<2x32xf32>
    %cst_40 = arith.constant dense<0.000000e+00> : vector<2x1xf32>
    %63 = tpu.matmul %62, %58, %cst_40 {dimension_numbers = #tpu.dot_dimension_numbers<[1], [0], [0], [1], [0, 0, 1, 1], [], []>} : vector<2x32xf32>, vector<32x1xf32>, vector<2x1xf32> -> vector<2x1xf32>
    %cst_41 = arith.constant 3.125000e-02 : f32
    %64 = vector.broadcast %cst_41 : f32 to vector<2x1xf32>
    %65 = arith.mulf %63, %64 : vector<2x1xf32>
    %66 = arith.mulf %61, %61 : vector<2x1xf32>
    %67 = arith.subf %65, %66 : vector<2x1xf32>
    %cst_42 = arith.constant 0.000000e+00 : f32
    %68 = vector.broadcast %cst_42 : f32 to vector<2x1xf32>
    %69 = arith.maximumf %67, %68 : vector<2x1xf32>
    %70 = vector.broadcast %61 : vector<2x1xf32> to vector<2x32xf32>
    %71 = arith.subf %57, %70 : vector<2x32xf32>
    %cst_43 = arith.constant 9.99999974E-6 : f32
    %72 = vector.broadcast %cst_43 : f32 to vector<2x1xf32>
    %73 = arith.addf %69, %72 : vector<2x1xf32>
    %74 = math.rsqrt %73 : vector<2x1xf32>
    %75 = vector.broadcast %74 : vector<2x1xf32> to vector<2x32xf32>
    %76 = arith.mulf %71, %75 : vector<2x32xf32>
    %77 = vector.broadcast %45 : vector<1x32xf32> to vector<2x32xf32>
    %78 = arith.mulf %76, %77 : vector<2x32xf32>
    %79 = vector.broadcast %46 : vector<1x32xf32> to vector<2x32xf32>
    %80 = arith.addf %78, %79 : vector<2x32xf32>
    %c0_44 = arith.constant 0 : index
    %c0_45 = arith.constant 0 : index
    %81 = vector.load %arg15[%c0_44, %c0_45] : memref<32x64xf32, #tpu.memory_space<vmem>>, vector<32x64xf32>
    %c0_46 = arith.constant 0 : index
    %c0_47 = arith.constant 0 : index
    %82 = vector.load %arg16[%c0_46, %c0_47] : memref<1x64xf32, #tpu.memory_space<vmem>>, vector<1x64xf32>
    %c0_48 = arith.constant 0 : index
    %c0_49 = arith.constant 0 : index
    %83 = vector.load %arg17[%c0_48, %c0_49] : memref<32x32xf32, #tpu.memory_space<vmem>>, vector<32x32xf32>
    %c0_50 = arith.constant 0 : index
    %c0_51 = arith.constant 0 : index
    %84 = vector.load %arg18[%c0_50, %c0_51] : memref<1x32xf32, #tpu.memory_space<vmem>>, vector<1x32xf32>
    %c0_52 = arith.constant 0 : index
    %c0_53 = arith.constant 0 : index
    %85 = vector.load %arg19[%c0_52, %c0_53] : memref<1x32xf32, #tpu.memory_space<vmem>>, vector<1x32xf32>
    %c0_54 = arith.constant 0 : index
    %c0_55 = arith.constant 0 : index
    %86 = vector.load %arg20[%c0_54, %c0_55] : memref<1x32xf32, #tpu.memory_space<vmem>>, vector<1x32xf32>
    %cst_56 = arith.constant dense<0.000000e+00> : vector<2x64xf32>
    %87 = tpu.matmul %80, %81, %cst_56 {dimension_numbers = #tpu.dot_dimension_numbers<[1], [0], [0], [1], [0, 0, 1, 1], [], []>} : vector<2x32xf32>, vector<32x64xf32>, vector<2x64xf32> -> vector<2x64xf32>
    %88 = vector.broadcast %82 : vector<1x64xf32> to vector<2x64xf32>
    %89 = arith.addf %87, %88 : vector<2x64xf32>
    %90 = vector.extract_strided_slice %89 {offsets = [0, 0], sizes = [2, 32], strides = [1, 1]} : vector<2x64xf32> to vector<2x32xf32>
    %cst_57 = arith.constant 0.000000e+00 : f32
    %91 = vector.broadcast %cst_57 : f32 to vector<2x32xf32>
    %92 = arith.maximumf %90, %91 : vector<2x32xf32>
    %93 = vector.extract_strided_slice %89 {offsets = [0, 32], sizes = [2, 32], strides = [1, 1]} : vector<2x64xf32> to vector<2x32xf32>
    %cst_58 = arith.constant dense<0.000000e+00> : vector<2x32xf32>
    %94 = tpu.matmul %92, %83, %cst_58 {dimension_numbers = #tpu.dot_dimension_numbers<[1], [0], [0], [1], [0, 0, 1, 1], [], []>} : vector<2x32xf32>, vector<32x32xf32>, vector<2x32xf32> -> vector<2x32xf32>
    %95 = vector.broadcast %84 : vector<1x32xf32> to vector<2x32xf32>
    %96 = arith.addf %94, %95 : vector<2x32xf32>
    %97 = arith.addf %96, %93 : vector<2x32xf32>
    %cst_59 = arith.constant 1.000000e+00 : f32
    %98 = vector.broadcast %cst_59 : f32 to vector<32x1xf32>
    %cst_60 = arith.constant dense<0.000000e+00> : vector<2x1xf32>
    %99 = tpu.matmul %97, %98, %cst_60 {dimension_numbers = #tpu.dot_dimension_numbers<[1], [0], [0], [1], [0, 0, 1, 1], [], []>} : vector<2x32xf32>, vector<32x1xf32>, vector<2x1xf32> -> vector<2x1xf32>
    %cst_61 = arith.constant 3.125000e-02 : f32
    %100 = vector.broadcast %cst_61 : f32 to vector<2x1xf32>
    %101 = arith.mulf %99, %100 : vector<2x1xf32>
    %102 = arith.mulf %97, %97 : vector<2x32xf32>
    %cst_62 = arith.constant dense<0.000000e+00> : vector<2x1xf32>
    %103 = tpu.matmul %102, %98, %cst_62 {dimension_numbers = #tpu.dot_dimension_numbers<[1], [0], [0], [1], [0, 0, 1, 1], [], []>} : vector<2x32xf32>, vector<32x1xf32>, vector<2x1xf32> -> vector<2x1xf32>
    %cst_63 = arith.constant 3.125000e-02 : f32
    %104 = vector.broadcast %cst_63 : f32 to vector<2x1xf32>
    %105 = arith.mulf %103, %104 : vector<2x1xf32>
    %106 = arith.mulf %101, %101 : vector<2x1xf32>
    %107 = arith.subf %105, %106 : vector<2x1xf32>
    %cst_64 = arith.constant 0.000000e+00 : f32
    %108 = vector.broadcast %cst_64 : f32 to vector<2x1xf32>
    %109 = arith.maximumf %107, %108 : vector<2x1xf32>
    %110 = vector.broadcast %101 : vector<2x1xf32> to vector<2x32xf32>
    %111 = arith.subf %97, %110 : vector<2x32xf32>
    %cst_65 = arith.constant 9.99999974E-6 : f32
    %112 = vector.broadcast %cst_65 : f32 to vector<2x1xf32>
    %113 = arith.addf %109, %112 : vector<2x1xf32>
    %114 = math.rsqrt %113 : vector<2x1xf32>
    %115 = vector.broadcast %114 : vector<2x1xf32> to vector<2x32xf32>
    %116 = arith.mulf %111, %115 : vector<2x32xf32>
    %117 = vector.broadcast %85 : vector<1x32xf32> to vector<2x32xf32>
    %118 = arith.mulf %116, %117 : vector<2x32xf32>
    %119 = vector.broadcast %86 : vector<1x32xf32> to vector<2x32xf32>
    %120 = arith.addf %118, %119 : vector<2x32xf32>
    %c0_66 = arith.constant 0 : index
    %c0_67 = arith.constant 0 : index
    %121 = vector.load %arg40[%c0_66, %c0_67] : memref<2x100xf32, #tpu.memory_space<vmem>>, vector<2x32xf32>
    tpu.vector_store %arg40[%c0_66, %c0_67], %120 {strides = array<i32>} : memref<2x100xf32, #tpu.memory_space<vmem>>, vector<2x32xf32>,
    %c0_68 = arith.constant 0 : index
    %c0_69 = arith.constant 0 : index
    %122 = vector.load %arg2[%c0_68, %c0_69] : memref<2x64xf32, #tpu.memory_space<vmem>>, vector<2x64xf32>
    %c0_70 = arith.constant 0 : index
    %c0_71 = arith.constant 0 : index
    %123 = vector.load %arg21[%c0_70, %c0_71] : memref<64x64xf32, #tpu.memory_space<vmem>>, vector<64x64xf32>
    %cst_72 = arith.constant dense<0.000000e+00> : vector<2x64xf32>
    %124 = tpu.matmul %122, %123, %cst_72 {dimension_numbers = #tpu.dot_dimension_numbers<[1], [0], [0], [1], [0, 0, 1, 1], [], []>} : vector<2x64xf32>, vector<64x64xf32>, vector<2x64xf32> -> vector<2x64xf32>
    %c0_73 = arith.constant 0 : index
    %c0_74 = arith.constant 0 : index
    %125 = vector.load %arg23[%c0_73, %c0_74] : memref<1x64xf32, #tpu.memory_space<vmem>>, vector<1x64xf32>
    %126 = vector.broadcast %125 : vector<1x64xf32> to vector<2x64xf32>
    %127 = arith.addf %124, %126 : vector<2x64xf32>
    %cst_75 = arith.constant 0.000000e+00 : f32
    %128 = vector.broadcast %cst_75 : f32 to vector<2x64xf32>
    %129 = arith.maximumf %127, %128 : vector<2x64xf32>
    %c0_76 = arith.constant 0 : index
    %c0_77 = arith.constant 0 : index
    %130 = vector.load %arg25[%c0_76, %c0_77] : memref<64x64xf32, #tpu.memory_space<vmem>>, vector<64x64xf32>
    %cst_78 = arith.constant dense<0.000000e+00> : vector<2x64xf32>
    %131 = tpu.matmul %129, %130, %cst_78 {dimension_numbers = #tpu.dot_dimension_numbers<[1], [0], [0], [1], [0, 0, 1, 1], [], []>} : vector<2x64xf32>, vector<64x64xf32>, vector<2x64xf32> -> vector<2x64xf32>
    %c0_79 = arith.constant 0 : index
    %c0_80 = arith.constant 0 : index
    %132 = vector.load %arg26[%c0_79, %c0_80] : memref<1x64xf32, #tpu.memory_space<vmem>>, vector<1x64xf32>
    %133 = vector.broadcast %132 : vector<1x64xf32> to vector<2x64xf32>
    %134 = arith.addf %131, %133 : vector<2x64xf32>
    %c0_81 = arith.constant 0 : index
    %c0_82 = arith.constant 0 : index
    %135 = vector.load %arg22[%c0_81, %c0_82] : memref<64x64xf32, #tpu.memory_space<vmem>>, vector<64x64xf32>
    %cst_83 = arith.constant dense<0.000000e+00> : vector<2x64xf32>
    %136 = tpu.matmul %122, %135, %cst_83 {dimension_numbers = #tpu.dot_dimension_numbers<[1], [0], [0], [1], [0, 0, 1, 1], [], []>} : vector<2x64xf32>, vector<64x64xf32>, vector<2x64xf32> -> vector<2x64xf32>
    %137 = arith.addf %134, %136 : vector<2x64xf32>
    %c0_84 = arith.constant 0 : index
    %c0_85 = arith.constant 0 : index
    %138 = vector.load %arg24[%c0_84, %c0_85] : memref<1x64xf32, #tpu.memory_space<vmem>>, vector<1x64xf32>
    %139 = vector.broadcast %138 : vector<1x64xf32> to vector<2x64xf32>
    %140 = arith.addf %137, %139 : vector<2x64xf32>
    %c0_86 = arith.constant 0 : index
    %c0_87 = arith.constant 0 : index
    %141 = vector.load %arg29[%c0_86, %c0_87] : memref<64x4xf32, #tpu.memory_space<vmem>>, vector<64x4xf32>
    %c0_88 = arith.constant 0 : index
    %c0_89 = arith.constant 0 : index
    %142 = vector.load %arg30[%c0_88, %c0_89] : memref<4x64xf32, #tpu.memory_space<vmem>>, vector<4x64xf32>
    %c0_90 = arith.constant 0 : index
    %c0_91 = arith.constant 0 : index
    %143 = vector.load %arg27[%c0_90, %c0_91] : memref<1x64xf32, #tpu.memory_space<vmem>>, vector<1x64xf32>
    %c0_92 = arith.constant 0 : index
    %c0_93 = arith.constant 0 : index
    %144 = vector.load %arg28[%c0_92, %c0_93] : memref<1x64xf32, #tpu.memory_space<vmem>>, vector<1x64xf32>
    %cst_94 = arith.constant dense<0.000000e+00> : vector<2x4xf32>
    %145 = tpu.matmul %140, %141, %cst_94 {dimension_numbers = #tpu.dot_dimension_numbers<[1], [0], [0], [1], [0, 0, 1, 1], [], []>} : vector<2x64xf32>, vector<64x4xf32>, vector<2x4xf32> -> vector<2x4xf32>
    %cst_95 = arith.constant 6.250000e-02 : f32
    %146 = vector.broadcast %cst_95 : f32 to vector<2x4xf32>
    %147 = arith.mulf %145, %146 : vector<2x4xf32>
    %148 = arith.mulf %140, %140 : vector<2x64xf32>
    %cst_96 = arith.constant dense<0.000000e+00> : vector<2x4xf32>
    %149 = tpu.matmul %148, %141, %cst_96 {dimension_numbers = #tpu.dot_dimension_numbers<[1], [0], [0], [1], [0, 0, 1, 1], [], []>} : vector<2x64xf32>, vector<64x4xf32>, vector<2x4xf32> -> vector<2x4xf32>
    %cst_97 = arith.constant 6.250000e-02 : f32
    %150 = vector.broadcast %cst_97 : f32 to vector<2x4xf32>
    %151 = arith.mulf %149, %150 : vector<2x4xf32>
    %152 = arith.mulf %147, %147 : vector<2x4xf32>
    %153 = arith.subf %151, %152 : vector<2x4xf32>
    %cst_98 = arith.constant 0.000000e+00 : f32
    %154 = vector.broadcast %cst_98 : f32 to vector<2x4xf32>
    %155 = arith.maximumf %153, %154 : vector<2x4xf32>
    %cst_99 = arith.constant 9.99999974E-6 : f32
    %156 = vector.broadcast %cst_99 : f32 to vector<2x4xf32>
    %157 = arith.addf %155, %156 : vector<2x4xf32>
    %158 = math.rsqrt %157 : vector<2x4xf32>
    %cst_100 = arith.constant dense<0.000000e+00> : vector<2x64xf32>
    %159 = tpu.matmul %147, %142, %cst_100 {dimension_numbers = #tpu.dot_dimension_numbers<[1], [0], [0], [1], [0, 0, 1, 1], [], []>} : vector<2x4xf32>, vector<4x64xf32>, vector<2x64xf32> -> vector<2x64xf32>
    %cst_101 = arith.constant dense<0.000000e+00> : vector<2x64xf32>
    %160 = tpu.matmul %158, %142, %cst_101 {dimension_numbers = #tpu.dot_dimension_numbers<[1], [0], [0], [1], [0, 0, 1, 1], [], []>} : vector<2x4xf32>, vector<4x64xf32>, vector<2x64xf32> -> vector<2x64xf32>
    %161 = arith.subf %140, %159 : vector<2x64xf32>
    %162 = arith.mulf %161, %160 : vector<2x64xf32>
    %163 = vector.broadcast %143 : vector<1x64xf32> to vector<2x64xf32>
    %164 = arith.mulf %162, %163 : vector<2x64xf32>
    %165 = vector.broadcast %144 : vector<1x64xf32> to vector<2x64xf32>
    %166 = arith.addf %164, %165 : vector<2x64xf32>
    %c0_102 = arith.constant 0 : index
    %c32 = arith.constant 32 : index
    %167 = vector.load %arg40[%c0_102, %c32] : memref<2x100xf32, #tpu.memory_space<vmem>>, vector<2x64xf32>
    tpu.vector_store %arg40[%c0_102, %c32], %166 {strides = array<i32>} : memref<2x100xf32, #tpu.memory_space<vmem>>, vector<2x64xf32>,
    %c0_103 = arith.constant 0 : index
    %c0_104 = arith.constant 0 : index
    %168 = vector.load %arg31[%c0_103, %c0_104] : memref<32x132xf32, #tpu.memory_space<vmem>>, vector<32x132xf32>
    %cst_105 = arith.constant dense<0.000000e+00> : vector<2x132xf32>
    %169 = tpu.matmul %120, %168, %cst_105 {dimension_numbers = #tpu.dot_dimension_numbers<[1], [0], [0], [1], [0, 0, 1, 1], [], []>} : vector<2x32xf32>, vector<32x132xf32>, vector<2x132xf32> -> vector<2x132xf32>
    %c0_106 = arith.constant 0 : index
    %c0_107 = arith.constant 0 : index
    %170 = vector.load %arg32[%c0_106, %c0_107] : memref<64x132xf32, #tpu.memory_space<vmem>>, vector<64x132xf32>
    %cst_108 = arith.constant dense<0.000000e+00> : vector<2x132xf32>
    %171 = tpu.matmul %166, %170, %cst_108 {dimension_numbers = #tpu.dot_dimension_numbers<[1], [0], [0], [1], [0, 0, 1, 1], [], []>} : vector<2x64xf32>, vector<64x132xf32>, vector<2x132xf32> -> vector<2x132xf32>
    %172 = arith.addf %169, %171 : vector<2x132xf32>
    %c0_109 = arith.constant 0 : index
    %c0_110 = arith.constant 0 : index
    %173 = vector.load %arg33[%c0_109, %c0_110] : memref<1x132xf32, #tpu.memory_space<vmem>>, vector<1x132xf32>
    %174 = vector.broadcast %173 : vector<1x132xf32> to vector<2x132xf32>
    %175 = arith.addf %172, %174 : vector<2x132xf32>
    %176 = vector.extract_strided_slice %175 {offsets = [0, 0], sizes = [2, 128], strides = [1, 1]} : vector<2x132xf32> to vector<2x128xf32>
    %cst_111 = arith.constant 0.000000e+00 : f32
    %177 = vector.broadcast %cst_111 : f32 to vector<2x128xf32>
    %178 = arith.maximumf %176, %177 : vector<2x128xf32>
    %179 = vector.extract_strided_slice %175 {offsets = [0, 128], sizes = [2, 4], strides = [1, 1]} : vector<2x132xf32> to vector<2x4xf32>
    %c0_112 = arith.constant 0 : index
    %c0_113 = arith.constant 0 : index
    %180 = vector.load %arg34[%c0_112, %c0_113] : memref<128x4xf32, #tpu.memory_space<vmem>>, vector<128x4xf32>
    %cst_114 = arith.constant dense<0.000000e+00> : vector<2x4xf32>
    %181 = tpu.matmul %178, %180, %cst_114 {dimension_numbers = #tpu.dot_dimension_numbers<[1], [0], [0], [1], [0, 0, 1, 1], [], []>} : vector<2x128xf32>, vector<128x4xf32>, vector<2x4xf32> -> vector<2x4xf32>
    %c0_115 = arith.constant 0 : index
    %c0_116 = arith.constant 0 : index
    %182 = vector.load %arg35[%c0_115, %c0_116] : memref<1x4xf32, #tpu.memory_space<vmem>>, vector<1x4xf32>
    %183 = vector.broadcast %182 : vector<1x4xf32> to vector<2x4xf32>
    %184 = arith.addf %181, %183 : vector<2x4xf32>
    %185 = arith.addf %184, %179 : vector<2x4xf32>
    %c0_117 = arith.constant 0 : index
    %c0_118 = arith.constant 0 : index
    %186 = vector.load %arg38[%c0_117, %c0_118] : memref<4x4xf32, #tpu.memory_space<vmem>>, vector<4x4xf32>
    %c0_119 = arith.constant 0 : index
    %c0_120 = arith.constant 0 : index
    %187 = vector.load %arg39[%c0_119, %c0_120] : memref<4x4xf32, #tpu.memory_space<vmem>>, vector<4x4xf32>
    %c0_121 = arith.constant 0 : index
    %c0_122 = arith.constant 0 : index
    %188 = vector.load %arg36[%c0_121, %c0_122] : memref<1x4xf32, #tpu.memory_space<vmem>>, vector<1x4xf32>
    %c0_123 = arith.constant 0 : index
    %c0_124 = arith.constant 0 : index
    %189 = vector.load %arg37[%c0_123, %c0_124] : memref<1x4xf32, #tpu.memory_space<vmem>>, vector<1x4xf32>
    %cst_125 = arith.constant dense<0.000000e+00> : vector<2x4xf32>
    %190 = tpu.matmul %185, %186, %cst_125 {dimension_numbers = #tpu.dot_dimension_numbers<[1], [0], [0], [1], [0, 0, 1, 1], [], []>} : vector<2x4xf32>, vector<4x4xf32>, vector<2x4xf32> -> vector<2x4xf32>
    %cst_126 = arith.constant 1.000000e+00 : f32
    %191 = vector.broadcast %cst_126 : f32 to vector<2x4xf32>
    %192 = arith.mulf %190, %191 : vector<2x4xf32>
    %193 = arith.mulf %185, %185 : vector<2x4xf32>
    %cst_127 = arith.constant dense<0.000000e+00> : vector<2x4xf32>
    %194 = tpu.matmul %193, %186, %cst_127 {dimension_numbers = #tpu.dot_dimension_numbers<[1], [0], [0], [1], [0, 0, 1, 1], [], []>} : vector<2x4xf32>, vector<4x4xf32>, vector<2x4xf32> -> vector<2x4xf32>
    %cst_128 = arith.constant 1.000000e+00 : f32
    %195 = vector.broadcast %cst_128 : f32 to vector<2x4xf32>
    %196 = arith.mulf %194, %195 : vector<2x4xf32>
    %197 = arith.mulf %192, %192 : vector<2x4xf32>
    %198 = arith.subf %196, %197 : vector<2x4xf32>
    %cst_129 = arith.constant 0.000000e+00 : f32
    %199 = vector.broadcast %cst_129 : f32 to vector<2x4xf32>
    %200 = arith.maximumf %198, %199 : vector<2x4xf32>
    %cst_130 = arith.constant 9.99999974E-6 : f32
    %201 = vector.broadcast %cst_130 : f32 to vector<2x4xf32>
    %202 = arith.addf %200, %201 : vector<2x4xf32>
    %203 = math.rsqrt %202 : vector<2x4xf32>
    %cst_131 = arith.constant dense<0.000000e+00> : vector<2x4xf32>
    %204 = tpu.matmul %192, %187, %cst_131 {dimension_numbers = #tpu.dot_dimension_numbers<[1], [0], [0], [1], [0, 0, 1, 1], [], []>} : vector<2x4xf32>, vector<4x4xf32>, vector<2x4xf32> -> vector<2x4xf32>
    %cst_132 = arith.constant dense<0.000000e+00> : vector<2x4xf32>
    %205 = tpu.matmul %203, %187, %cst_132 {dimension_numbers = #tpu.dot_dimension_numbers<[1], [0], [0], [1], [0, 0, 1, 1], [], []>} : vector<2x4xf32>, vector<4x4xf32>, vector<2x4xf32> -> vector<2x4xf32>
    %206 = arith.subf %185, %204 : vector<2x4xf32>
    %207 = arith.mulf %206, %205 : vector<2x4xf32>
    %208 = vector.broadcast %188 : vector<1x4xf32> to vector<2x4xf32>
    %209 = arith.mulf %207, %208 : vector<2x4xf32>
    %210 = vector.broadcast %189 : vector<1x4xf32> to vector<2x4xf32>
    %211 = arith.addf %209, %210 : vector<2x4xf32>
    %c0_133 = arith.constant 0 : index
    %c96 = arith.constant 96 : index
    %212 = vector.load %arg40[%c0_133, %c96] : memref<2x100xf32, #tpu.memory_space<vmem>>, vector<2x4xf32>
    tpu.vector_store %arg40[%c0_133, %c96], %211 {strides = array<i32>} : memref<2x100xf32, #tpu.memory_space<vmem>>, vector<2x4xf32>,
    return
  }
  func.func @transform_0(%arg0: i32) -> (i32, i32) {
    %c0_i32 = arith.constant 0 : i32
    %c0_i32_0 = arith.constant 0 : i32
    return %arg0, %c0_i32 : i32, i32
  }
  func.func @transform_1(%arg0: i32) -> (i32, i32) {
    %c0_i32 = arith.constant 0 : i32
    %c0_i32_0 = arith.constant 0 : i32
    return %arg0, %c0_i32 : i32, i32
  }
  func.func @transform_2(%arg0: i32) -> (i32, i32) {
    %c0_i32 = arith.constant 0 : i32
    %c0_i32_0 = arith.constant 0 : i32
    %c0_i32_1 = arith.constant 0 : i32
    return %c0_i32, %c0_i32_0 : i32, i32
  }
  func.func @transform_3(%arg0: i32) -> (i32, i32) {
    %c0_i32 = arith.constant 0 : i32
    %c0_i32_0 = arith.constant 0 : i32
    %c0_i32_1 = arith.constant 0 : i32
    return %c0_i32, %c0_i32_0 : i32, i32
  }
  func.func @transform_4(%arg0: i32) -> (i32, i32) {
    %c0_i32 = arith.constant 0 : i32
    %c0_i32_0 = arith.constant 0 : i32
    %c0_i32_1 = arith.constant 0 : i32
    return %c0_i32, %c0_i32_0 : i32, i32
  }
  func.func @transform_5(%arg0: i32) -> (i32, i32) {
    %c0_i32 = arith.constant 0 : i32
    %c0_i32_0 = arith.constant 0 : i32
    %c0_i32_1 = arith.constant 0 : i32
    return %c0_i32, %c0_i32_0 : i32, i32
  }
  func.func @transform_6(%arg0: i32) -> (i32, i32) {
    %c0_i32 = arith.constant 0 : i32
    %c0_i32_0 = arith.constant 0 : i32
    %c0_i32_1 = arith.constant 0 : i32
    return %c0_i32, %c0_i32_0 : i32, i32
  }
  func.func @transform_7(%arg0: i32) -> (i32, i32) {
    %c0_i32 = arith.constant 0 : i32
    %c0_i32_0 = arith.constant 0 : i32
    %c0_i32_1 = arith.constant 0 : i32
    return %c0_i32, %c0_i32_0 : i32, i32
  }
  func.func @transform_8(%arg0: i32) -> (i32, i32) {
    %c0_i32 = arith.constant 0 : i32
    %c0_i32_0 = arith.constant 0 : i32
    %c0_i32_1 = arith.constant 0 : i32
    return %c0_i32, %c0_i32_0 : i32, i32
  }
  func.func @transform_9(%arg0: i32) -> (i32, i32) {
    %c0_i32 = arith.constant 0 : i32
    %c0_i32_0 = arith.constant 0 : i32
    %c0_i32_1 = arith.constant 0 : i32
    return %c0_i32, %c0_i32_0 : i32, i32
  }
  func.func @transform_10(%arg0: i32) -> (i32, i32) {
    %c0_i32 = arith.constant 0 : i32
    %c0_i32_0 = arith.constant 0 : i32
    %c0_i32_1 = arith.constant 0 : i32
    return %c0_i32, %c0_i32_0 : i32, i32
  }
  func.func @transform_11(%arg0: i32) -> (i32, i32) {
    %c0_i32 = arith.constant 0 : i32
    %c0_i32_0 = arith.constant 0 : i32
    %c0_i32_1 = arith.constant 0 : i32
    return %c0_i32, %c0_i32_0 : i32, i32
  }
  func.func @transform_12(%arg0: i32) -> (i32, i32) {
    %c0_i32 = arith.constant 0 : i32
    %c0_i32_0 = arith.constant 0 : i32
    %c0_i32_1 = arith.constant 0 : i32
    return %c0_i32, %c0_i32_0 : i32, i32
  }
  func.func @transform_13(%arg0: i32) -> (i32, i32) {
    %c0_i32 = arith.constant 0 : i32
    %c0_i32_0 = arith.constant 0 : i32
    %c0_i32_1 = arith.constant 0 : i32
    return %c0_i32, %c0_i32_0 : i32, i32
  }
  func.func @transform_14(%arg0: i32) -> (i32, i32) {
    %c0_i32 = arith.constant 0 : i32
    %c0_i32_0 = arith.constant 0 : i32
    %c0_i32_1 = arith.constant 0 : i32
    return %c0_i32, %c0_i32_0 : i32, i32
  }
  func.func @transform_15(%arg0: i32) -> (i32, i32) {
    %c0_i32 = arith.constant 0 : i32
    %c0_i32_0 = arith.constant 0 : i32
    %c0_i32_1 = arith.constant 0 : i32
    return %c0_i32, %c0_i32_0 : i32, i32
  }
  func.func @transform_16(%arg0: i32) -> (i32, i32) {
    %c0_i32 = arith.constant 0 : i32
    %c0_i32_0 = arith.constant 0 : i32
    %c0_i32_1 = arith.constant 0 : i32
    return %c0_i32, %c0_i32_0 : i32, i32
  }
  func.func @transform_17(%arg0: i32) -> (i32, i32) {
    %c0_i32 = arith.constant 0 : i32
    %c0_i32_0 = arith.constant 0 : i32
    %c0_i32_1 = arith.constant 0 : i32
    return %c0_i32, %c0_i32_0 : i32, i32
  }
  func.func @transform_18(%arg0: i32) -> (i32, i32) {
    %c0_i32 = arith.constant 0 : i32
    %c0_i32_0 = arith.constant 0 : i32
    %c0_i32_1 = arith.constant 0 : i32
    return %c0_i32, %c0_i32_0 : i32, i32
  }
  func.func @transform_19(%arg0: i32) -> (i32, i32) {
    %c0_i32 = arith.constant 0 : i32
    %c0_i32_0 = arith.constant 0 : i32
    %c0_i32_1 = arith.constant 0 : i32
    return %c0_i32, %c0_i32_0 : i32, i32
  }
  func.func @transform_20(%arg0: i32) -> (i32, i32) {
    %c0_i32 = arith.constant 0 : i32
    %c0_i32_0 = arith.constant 0 : i32
    %c0_i32_1 = arith.constant 0 : i32
    return %c0_i32, %c0_i32_0 : i32, i32
  }
  func.func @transform_21(%arg0: i32) -> (i32, i32) {
    %c0_i32 = arith.constant 0 : i32
    %c0_i32_0 = arith.constant 0 : i32
    %c0_i32_1 = arith.constant 0 : i32
    return %c0_i32, %c0_i32_0 : i32, i32
  }
  func.func @transform_22(%arg0: i32) -> (i32, i32) {
    %c0_i32 = arith.constant 0 : i32
    %c0_i32_0 = arith.constant 0 : i32
    %c0_i32_1 = arith.constant 0 : i32
    return %c0_i32, %c0_i32_0 : i32, i32
  }
  func.func @transform_23(%arg0: i32) -> (i32, i32) {
    %c0_i32 = arith.constant 0 : i32
    %c0_i32_0 = arith.constant 0 : i32
    %c0_i32_1 = arith.constant 0 : i32
    return %c0_i32, %c0_i32_0 : i32, i32
  }
  func.func @transform_24(%arg0: i32) -> (i32, i32) {
    %c0_i32 = arith.constant 0 : i32
    %c0_i32_0 = arith.constant 0 : i32
    %c0_i32_1 = arith.constant 0 : i32
    return %c0_i32, %c0_i32_0 : i32, i32
  }
  func.func @transform_25(%arg0: i32) -> (i32, i32) {
    %c0_i32 = arith.constant 0 : i32
    %c0_i32_0 = arith.constant 0 : i32
    %c0_i32_1 = arith.constant 0 : i32
    return %c0_i32, %c0_i32_0 : i32, i32
  }
  func.func @transform_26(%arg0: i32) -> (i32, i32) {
    %c0_i32 = arith.constant 0 : i32
    %c0_i32_0 = arith.constant 0 : i32
    %c0_i32_1 = arith.constant 0 : i32
    return %c0_i32, %c0_i32_0 : i32, i32
  }
  func.func @transform_27(%arg0: i32) -> (i32, i32) {
    %c0_i32 = arith.constant 0 : i32
    %c0_i32_0 = arith.constant 0 : i32
    %c0_i32_1 = arith.constant 0 : i32
    return %c0_i32, %c0_i32_0 : i32, i32
  }
  func.func @transform_28(%arg0: i32) -> (i32, i32) {
    %c0_i32 = arith.constant 0 : i32
    %c0_i32_0 = arith.constant 0 : i32
    %c0_i32_1 = arith.constant 0 : i32
    return %c0_i32, %c0_i32_0 : i32, i32
  }
  func.func @transform_29(%arg0: i32) -> (i32, i32) {
    %c0_i32 = arith.constant 0 : i32
    %c0_i32_0 = arith.constant 0 : i32
    %c0_i32_1 = arith.constant 0 : i32
    return %c0_i32, %c0_i32_0 : i32, i32
  }
  func.func @transform_30(%arg0: i32) -> (i32, i32) {
    %c0_i32 = arith.constant 0 : i32
    %c0_i32_0 = arith.constant 0 : i32
    %c0_i32_1 = arith.constant 0 : i32
    return %c0_i32, %c0_i32_0 : i32, i32
  }
  func.func @transform_31(%arg0: i32) -> (i32, i32) {
    %c0_i32 = arith.constant 0 : i32
    %c0_i32_0 = arith.constant 0 : i32
    %c0_i32_1 = arith.constant 0 : i32
    return %c0_i32, %c0_i32_0 : i32, i32
  }
  func.func @transform_32(%arg0: i32) -> (i32, i32) {
    %c0_i32 = arith.constant 0 : i32
    %c0_i32_0 = arith.constant 0 : i32
    %c0_i32_1 = arith.constant 0 : i32
    return %c0_i32, %c0_i32_0 : i32, i32
  }
  func.func @transform_33(%arg0: i32) -> (i32, i32) {
    %c0_i32 = arith.constant 0 : i32
    %c0_i32_0 = arith.constant 0 : i32
    %c0_i32_1 = arith.constant 0 : i32
    return %c0_i32, %c0_i32_0 : i32, i32
  }
  func.func @transform_34(%arg0: i32) -> (i32, i32) {
    %c0_i32 = arith.constant 0 : i32
    %c0_i32_0 = arith.constant 0 : i32
    %c0_i32_1 = arith.constant 0 : i32
    return %c0_i32, %c0_i32_0 : i32, i32
  }
  func.func @transform_35(%arg0: i32) -> (i32, i32) {
    %c0_i32 = arith.constant 0 : i32
    %c0_i32_0 = arith.constant 0 : i32
    %c0_i32_1 = arith.constant 0 : i32
    return %c0_i32, %c0_i32_0 : i32, i32
  }
  func.func @transform_36(%arg0: i32) -> (i32, i32) {
    %c0_i32 = arith.constant 0 : i32
    %c0_i32_0 = arith.constant 0 : i32
    %c0_i32_1 = arith.constant 0 : i32
    return %c0_i32, %c0_i32_0 : i32, i32
  }
  func.func @transform_37(%arg0: i32) -> (i32, i32) {
    %c0_i32 = arith.constant 0 : i32
    %c0_i32_0 = arith.constant 0 : i32
    %c0_i32_1 = arith.constant 0 : i32
    return %c0_i32, %c0_i32_0 : i32, i32
  }
  func.func @transform_38(%arg0: i32) -> (i32, i32) {
    %c0_i32 = arith.constant 0 : i32
    %c0_i32_0 = arith.constant 0 : i32
    %c0_i32_1 = arith.constant 0 : i32
    return %c0_i32, %c0_i32_0 : i32, i32
  }
  func.func @transform_39(%arg0: i32) -> (i32, i32) {
    %c0_i32 = arith.constant 0 : i32
    %c0_i32_0 = arith.constant 0 : i32
    return %arg0, %c0_i32 : i32, i32
  }
}

</mosaic_0001>

<llo_original>
// kernel: dec_forward.1
$region0: #{dec_forward.1}
  #allocation0 [shape = 'u32[]', space=smem, size = 0x4, offset = 0x4, fixed_abs, tag = 'smem constant byte address 0x4 - core index']
  #allocation1 [shape = 'u32[144,128]{1,0:T(1,128)}', space=vmem, size = 0x12000, scoped, tag = 'internal scratch']
  %s0 = inlined_call_operand.smem [shape: u32[40], index: -1, kind: input, shape index: {}]
  %s1 = sld [smem:[%s0]]
  %s2 = scalar_lea.smem %s0, 1
  %s3 = sld [smem:[%s2]]
  %s4 = scalar_lea.smem %s0, 2
  %s5 = sld [smem:[%s4]]
  %s6 = scalar_lea.smem %s0, 3
  %s7 = sld [smem:[%s6]]
  %s8 = scalar_lea.smem %s0, 4
  %s9 = sld [smem:[%s8]]
  %s10 = scalar_lea.smem %s0, 5
  %s11 = sld [smem:[%s10]]
  %s12 = scalar_lea.smem %s0, 6
  %s13 = sld [smem:[%s12]]
  %s14 = scalar_lea.smem %s0, 7
  %s15 = sld [smem:[%s14]]
  %s16 = scalar_lea.smem %s0, 8
  %s17 = sld [smem:[%s16]]
  %s18 = scalar_lea.smem %s0, 9
  %s19 = sld [smem:[%s18]]
  %s20 = scalar_lea.smem %s0, 10
  %s21 = sld [smem:[%s20]]
  %s22 = scalar_lea.smem %s0, 11
  %s23 = sld [smem:[%s22]]
  %s24 = scalar_lea.smem %s0, 12
  %s25 = sld [smem:[%s24]]
  %s26 = scalar_lea.smem %s0, 13
  %s27 = sld [smem:[%s26]]
  %s28 = scalar_lea.smem %s0, 14
  %s29 = sld [smem:[%s28]]
  %s30 = scalar_lea.smem %s0, 15
  %s31 = sld [smem:[%s30]]
  %s32 = scalar_lea.smem %s0, 16
  %s33 = sld [smem:[%s32]]
  %s34 = scalar_lea.smem %s0, 17
  %s35 = sld [smem:[%s34]]
  %s36 = scalar_lea.smem %s0, 18
  %s37 = sld [smem:[%s36]]
  %s38 = scalar_lea.smem %s0, 19
  %s39 = sld [smem:[%s38]]
  %s40 = scalar_lea.smem %s0, 20
  %s41 = sld [smem:[%s40]]
  %s42 = scalar_lea.smem %s0, 21
  %s43 = sld [smem:[%s42]]
  %s44 = scalar_lea.smem %s0, 22
  %s45 = sld [smem:[%s44]]
  %s46 = scalar_lea.smem %s0, 23
  %s47 = sld [smem:[%s46]]
  %s48 = scalar_lea.smem %s0, 24
  %s49 = sld [smem:[%s48]]
  %s50 = scalar_lea.smem %s0, 25
  %s51 = sld [smem:[%s50]]
  %s52 = scalar_lea.smem %s0, 26
  %s53 = sld [smem:[%s52]]
  %s54 = scalar_lea.smem %s0, 27
  %s55 = sld [smem:[%s54]]
  %s56 = scalar_lea.smem %s0, 28
  %s57 = sld [smem:[%s56]]
  %s58 = scalar_lea.smem %s0, 29
  %s59 = sld [smem:[%s58]]
  %s60 = scalar_lea.smem %s0, 30
  %s61 = sld [smem:[%s60]]
  %s62 = scalar_lea.smem %s0, 31
  %s63 = sld [smem:[%s62]]
  %s64 = scalar_lea.smem %s0, 32
  %s65 = sld [smem:[%s64]]
  %s66 = scalar_lea.smem %s0, 33
  %s67 = sld [smem:[%s66]]
  %s68 = scalar_lea.smem %s0, 34
  %s69 = sld [smem:[%s68]]
  %s70 = scalar_lea.smem %s0, 35
  %s71 = sld [smem:[%s70]]
  %s72 = scalar_lea.smem %s0, 36
  %s73 = sld [smem:[%s72]]
  %s74 = scalar_lea.smem %s0, 37
  %s75 = sld [smem:[%s74]]
  %s76 = scalar_lea.smem %s0, 38
  %s77 = sld [smem:[%s76]]
  %s78 = scalar_lea.smem %s0, 39
  %s79 = sld [smem:[%s78]]
  %s80 = sld [smem:[#allocation0]]
  $region278: #{dec_forward.1} parent=0
    _
  %s82 = ssub.s32 1, %s80
  %s83 = scalar_select 0, %s82, %s80
  $region1: #{dec_forward.1} parent=0
    #allocation2 [shape = 'u8[16384]{0}', space=vmem, size = 0x4000, scoped, tag = 'input window, operand 2, single buffered']
    #allocation3 [shape = 's32[1]{0}', space=sflag, size = 0x4, scoped, tag = 'scoped memory for dec_forward.1']
    #allocation4 [shape = 'u8[512]{0}', space=vmem, size = 0x400, scoped, tag = 'input window, operand 3, single buffered']
    #allocation5 [shape = 's32[1]{0}', space=sflag, size = 0x4, scoped, tag = 'scoped memory for dec_forward.1']
    #allocation6 [shape = 'u8[16384]{0}', space=vmem, size = 0x4000, scoped, tag = 'input window, operand 4, single buffered']
    #allocation7 [shape = 'u8[512]{0}', space=vmem, size = 0x400, scoped, tag = 'input window, operand 5, single buffered']
    #allocation8 [shape = 's32[1]{0}', space=sflag, size = 0x4, scoped, tag = 'scoped memory for dec_forward.1']
    #allocation9 [shape = 'u8[512]{0}', space=vmem, size = 0x400, scoped, tag = 'input window, operand 6, single buffered']
    #allocation10 [shape = 'u8[512]{0}', space=vmem, size = 0x400, scoped, tag = 'input window, operand 7, single buffered']
    #allocation11 [shape = 's32[1]{0}', space=sflag, size = 0x4, scoped, tag = 'scoped memory for dec_forward.1']
    #allocation12 [shape = 'u8[16384]{0}', space=vmem, size = 0x4000, scoped, tag = 'input window, operand 8, single buffered']
    #allocation13 [shape = 'u8[512]{0}', space=vmem, size = 0x400, scoped, tag = 'input window, operand 9, single buffered']
    #allocation14 [shape = 's32[1]{0}', space=sflag, size = 0x4, scoped, tag = 'scoped memory for dec_forward.1']
    #allocation15 [shape = 'u8[16384]{0}', space=vmem, size = 0x4000, scoped, tag = 'input window, operand 10, single buffered']
    #allocation16 [shape = 'u8[512]{0}', space=vmem, size = 0x400, scoped, tag = 'input window, operand 11, single buffered']
    #allocation17 [shape = 's32[1]{0}', space=sflag, size = 0x4, scoped, tag = 'scoped memory for dec_forward.1']
    #allocation18 [shape = 'u8[512]{0}', space=vmem, size = 0x400, scoped, tag = 'input window, operand 12, single buffered']
    #allocation19 [shape = 'u8[512]{0}', space=vmem, size = 0x400, scoped, tag = 'input window, operand 13, single buffered']
    #allocation20 [shape = 's32[1]{0}', space=sflag, size = 0x4, scoped, tag = 'scoped memory for dec_forward.1']
    #allocation21 [shape = 'u8[16384]{0}', space=vmem, size = 0x4000, scoped, tag = 'input window, operand 14, single buffered']
    #allocation22 [shape = 'u8[512]{0}', space=vmem, size = 0x400, scoped, tag = 'input window, operand 15, single buffered']
    #allocation23 [shape = 's32[1]{0}', space=sflag, size = 0x4, scoped, tag = 'scoped memory for dec_forward.1']
    #allocation24 [shape = 'u8[16384]{0}', space=vmem, size = 0x4000, scoped, tag = 'input window, operand 16, single buffered']
    #allocation25 [shape = 'u8[512]{0}', space=vmem, size = 0x400, scoped, tag = 'input window, operand 17, single buffered']
    #allocation26 [shape = 's32[1]{0}', space=sflag, size = 0x4, scoped, tag = 'scoped memory for dec_forward.1']
    #allocation27 [shape = 'u8[512]{0}', space=vmem, size = 0x400, scoped, tag = 'input window, operand 18, single buffered']
    #allocation28 [shape = 'u8[512]{0}', space=vmem, size = 0x400, scoped, tag = 'input window, operand 19, single buffered']
    #allocation29 [shape = 's32[1]{0}', space=sflag, size = 0x4, scoped, tag = 'scoped memory for dec_forward.1']
    #allocation30 [shape = 'u8[512]{0}', space=vmem, size = 0x400, scoped, tag = 'input window, operand 22, single buffered']
    #allocation31 [shape = 'u8[512]{0}', space=vmem, size = 0x400, scoped, tag = 'input window, operand 23, single buffered']
    #allocation32 [shape = 's32[1]{0}', space=sflag, size = 0x4, scoped, tag = 'scoped memory for dec_forward.1']
    #allocation33 [shape = 'u8[32768]{0}', space=vmem, size = 0x8000, scoped, tag = 'input window, operand 24, single buffered']
    #allocation34 [shape = 'u8[512]{0}', space=vmem, size = 0x400, scoped, tag = 'input window, operand 25, single buffered']
    #allocation35 [shape = 's32[1]{0}', space=sflag, size = 0x4, scoped, tag = 'scoped memory for dec_forward.1']
    #allocation36 [shape = 'u8[512]{0}', space=vmem, size = 0x400, scoped, tag = 'input window, operand 26, single buffered']
    #allocation37 [shape = 'u8[512]{0}', space=vmem, size = 0x400, scoped, tag = 'input window, operand 27, single buffered']
    #allocation38 [shape = 's32[1]{0}', space=sflag, size = 0x4, scoped, tag = 'scoped memory for dec_forward.1']
    #allocation39 [shape = 'u8[1024]{0}', space=vmem, size = 0x400, scoped, tag = 'input window, operand 32, single buffered']
    #allocation40 [shape = 'u8[512]{0}', space=vmem, size = 0x400, scoped, tag = 'input window, operand 34, single buffered']
    #allocation41 [shape = 's32[1]{0}', space=sflag, size = 0x4, scoped, tag = 'scoped memory for dec_forward.1']
    #allocation42 [shape = 'u8[512]{0}', space=vmem, size = 0x400, scoped, tag = 'input window, operand 35, single buffered']
    #allocation43 [shape = 'u8[512]{0}', space=vmem, size = 0x400, scoped, tag = 'input window, operand 36, single buffered']
    #allocation44 [shape = 's32[1]{0}', space=sflag, size = 0x4, scoped, tag = 'scoped memory for dec_forward.1']
    %84 = vsyncpa [#allocation3], 0
    %85 = vsyncpa [#allocation5], 0
    %86 = vsyncpa [#allocation8], 0
    %87 = vsyncpa [#allocation11], 0
    %88 = vsyncpa [#allocation14], 0
    %89 = vsyncpa [#allocation17], 0
    %90 = vsyncpa [#allocation20], 0
    %91 = vsyncpa [#allocation23], 0
    %92 = vsyncpa [#allocation26], 0
    %93 = vsyncpa [#allocation29], 0
    %94 = vsyncpa [#allocation32], 0
    %95 = vsyncpa [#allocation35], 0
    %96 = vsyncpa [#allocation38], 0
    %97 = vsyncpa [#allocation41], 0
    %98 = vsyncpa [#allocation44], 0
    // Predicated region
    $region2: #{dec_forward.1} parent=1 // pred_check
      _
    $region3: #{dec_forward.1} parent=1 // pred_check_branch
      %100 = sbr.rel (0) target = $region5
    $region4: #{dec_forward.1} parent=1 // pred_region
      _
    $region5: #{dec_forward.1} parent=1 // pred_fallthru
      _
    // Predicated region
    $region6: #{dec_forward.1} parent=1 // pred_check
      _
    $region7: #{dec_forward.1} parent=1 // pred_check_branch
      %102 = sbr.rel (0) target = $region9
    $region8: #{dec_forward.1} parent=1 // pred_region
      _
    $region9: #{dec_forward.1} parent=1 // pred_fallthru
      _
    // Predicated region
    $region10: #{dec_forward.1} parent=1 // pred_check
      _
    $region11: #{dec_forward.1} parent=1 // pred_check_branch
      %104 = sbr.rel (0) target = $region13
    $region12: #{dec_forward.1} parent=1 // pred_region
      %s106 = ssub.s32 512, 512
      %107 = vsyncadd [#allocation3], %s106
      %s108 = sshll.u32 [#allocation2], 4
      %s109 = int_to_ptr.vmem [resolvable:$true] %s108
      %114 = dma.hbm_to_vmem [thread:$0]  %s5, 512, %s109, [#allocation3], 128, 128, 8
    $region13: #{dec_forward.1} parent=1 // pred_fallthru
      _
    // Predicated region
    $region14: #{dec_forward.1} parent=1 // pred_check
      _
    $region15: #{dec_forward.1} parent=1 // pred_check_branch
      %116 = sbr.rel (0) target = $region17
    $region16: #{dec_forward.1} parent=1 // pred_region
      %s118 = ssub.s32 16, 16
      %119 = vsyncadd [#allocation5], %s118
      %s121 = sshll.u32 [#allocation4], 4
      %s122 = int_to_ptr.vmem [resolvable:$true] %s121
      %124 = dma.hbm_to_vmem [thread:$0]  %s7, 16, %s122, [#allocation5]
    $region17: #{dec_forward.1} parent=1 // pred_fallthru
      _
    // Predicated region
    $region18: #{dec_forward.1} parent=1 // pred_check
      _
    $region19: #{dec_forward.1} parent=1 // pred_check_branch
      %126 = sbr.rel (0) target = $region21
    $region20: #{dec_forward.1} parent=1 // pred_region
      %s128 = ssub.s32 512, 512
      %129 = vsyncadd [#allocation5], %s128
      %s130 = sshll.u32 [#allocation6], 4
      %s131 = int_to_ptr.vmem [resolvable:$true] %s130
      %136 = dma.hbm_to_vmem [thread:$0]  %s9, 512, %s131, [#allocation5], 128, 128, 8
    $region21: #{dec_forward.1} parent=1 // pred_fallthru
      _
    // Predicated region
    $region22: #{dec_forward.1} parent=1 // pred_check
      _
    $region23: #{dec_forward.1} parent=1 // pred_check_branch
      %138 = sbr.rel (0) target = $region25
    $region24: #{dec_forward.1} parent=1 // pred_region
      %s140 = ssub.s32 16, 16
      %141 = vsyncadd [#allocation8], %s140
      %s143 = sshll.u32 [#allocation7], 4
      %s144 = int_to_ptr.vmem [resolvable:$true] %s143
      %146 = dma.hbm_to_vmem [thread:$0]  %s11, 16, %s144, [#allocation8]
    $region25: #{dec_forward.1} parent=1 // pred_fallthru
      _
    // Predicated region
    $region26: #{dec_forward.1} parent=1 // pred_check
      _
    $region27: #{dec_forward.1} parent=1 // pred_check_branch
      %148 = sbr.rel (0) target = $region29
    $region28: #{dec_forward.1} parent=1 // pred_region
      %s150 = ssub.s32 16, 16
      %151 = vsyncadd [#allocation8], %s150
      %s153 = sshll.u32 [#allocation9], 4
      %s154 = int_to_ptr.vmem [resolvable:$true] %s153
      %156 = dma.hbm_to_vmem [thread:$0]  %s13, 16, %s154, [#allocation8]
    $region29: #{dec_forward.1} parent=1 // pred_fallthru
      _
    // Predicated region
    $region30: #{dec_forward.1} parent=1 // pred_check
      _
    $region31: #{dec_forward.1} parent=1 // pred_check_branch
      %158 = sbr.rel (0) target = $region33
    $region32: #{dec_forward.1} parent=1 // pred_region
      %s160 = ssub.s32 16, 16
      %161 = vsyncadd [#allocation11], %s160
      %s163 = sshll.u32 [#allocation10], 4
      %s164 = int_to_ptr.vmem [resolvable:$true] %s163
      %166 = dma.hbm_to_vmem [thread:$0]  %s15, 16, %s164, [#allocation11]
    $region33: #{dec_forward.1} parent=1 // pred_fallthru
      _
    // Predicated region
    $region34: #{dec_forward.1} parent=1 // pred_check
      _
    $region35: #{dec_forward.1} parent=1 // pred_check_branch
      %168 = sbr.rel (0) target = $region37
    $region36: #{dec_forward.1} parent=1 // pred_region
      %s170 = ssub.s32 512, 512
      %171 = vsyncadd [#allocation11], %s170
      %s172 = sshll.u32 [#allocation12], 4
      %s173 = int_to_ptr.vmem [resolvable:$true] %s172
      %178 = dma.hbm_to_vmem [thread:$0]  %s17, 512, %s173, [#allocation11], 128, 128, 8
    $region37: #{dec_forward.1} parent=1 // pred_fallthru
      _
    // Predicated region
    $region38: #{dec_forward.1} parent=1 // pred_check
      _
    $region39: #{dec_forward.1} parent=1 // pred_check_branch
      %180 = sbr.rel (0) target = $region41
    $region40: #{dec_forward.1} parent=1 // pred_region
      %s182 = ssub.s32 16, 16
      %183 = vsyncadd [#allocation14], %s182
      %s185 = sshll.u32 [#allocation13], 4
      %s186 = int_to_ptr.vmem [resolvable:$true] %s185
      %188 = dma.hbm_to_vmem [thread:$0]  %s19, 16, %s186, [#allocation14]
    $region41: #{dec_forward.1} parent=1 // pred_fallthru
      _
    // Predicated region
    $region42: #{dec_forward.1} parent=1 // pred_check
      _
    $region43: #{dec_forward.1} parent=1 // pred_check_branch
      %190 = sbr.rel (0) target = $region45
    $region44: #{dec_forward.1} parent=1 // pred_region
      %s192 = ssub.s32 512, 512
      %193 = vsyncadd [#allocation14], %s192
      %s194 = sshll.u32 [#allocation15], 4
      %s195 = int_to_ptr.vmem [resolvable:$true] %s194
      %200 = dma.hbm_to_vmem [thread:$0]  %s21, 512, %s195, [#allocation14], 128, 128, 8
    $region45: #{dec_forward.1} parent=1 // pred_fallthru
      _
    // Predicated region
    $region46: #{dec_forward.1} parent=1 // pred_check
      _
    $region47: #{dec_forward.1} parent=1 // pred_check_branch
      %202 = sbr.rel (0) target = $region49
    $region48: #{dec_forward.1} parent=1 // pred_region
      %s204 = ssub.s32 16, 16
      %205 = vsyncadd [#allocation17], %s204
      %s207 = sshll.u32 [#allocation16], 4
      %s208 = int_to_ptr.vmem [resolvable:$true] %s207
      %210 = dma.hbm_to_vmem [thread:$0]  %s23, 16, %s208, [#allocation17]
    $region49: #{dec_forward.1} parent=1 // pred_fallthru
      _
    // Predicated region
    $region50: #{dec_forward.1} parent=1 // pred_check
      _
    $region51: #{dec_forward.1} parent=1 // pred_check_branch
      %212 = sbr.rel (0) target = $region53
    $region52: #{dec_forward.1} parent=1 // pred_region
      %s214 = ssub.s32 16, 16
      %215 = vsyncadd [#allocation17], %s214
      %s217 = sshll.u32 [#allocation18], 4
      %s218 = int_to_ptr.vmem [resolvable:$true] %s217
      %220 = dma.hbm_to_vmem [thread:$0]  %s25, 16, %s218, [#allocation17]
    $region53: #{dec_forward.1} parent=1 // pred_fallthru
      _
    // Predicated region
    $region54: #{dec_forward.1} parent=1 // pred_check
      _
    $region55: #{dec_forward.1} parent=1 // pred_check_branch
      %222 = sbr.rel (0) target = $region57
    $region56: #{dec_forward.1} parent=1 // pred_region
      %s224 = ssub.s32 16, 16
      %225 = vsyncadd [#allocation20], %s224
      %s227 = sshll.u32 [#allocation19], 4
      %s228 = int_to_ptr.vmem [resolvable:$true] %s227
      %230 = dma.hbm_to_vmem [thread:$0]  %s27, 16, %s228, [#allocation20]
    $region57: #{dec_forward.1} parent=1 // pred_fallthru
      _
    // Predicated region
    $region58: #{dec_forward.1} parent=1 // pred_check
      _
    $region59: #{dec_forward.1} parent=1 // pred_check_branch
      %232 = sbr.rel (0) target = $region61
    $region60: #{dec_forward.1} parent=1 // pred_region
      %s234 = ssub.s32 512, 512
      %235 = vsyncadd [#allocation20], %s234
      %s236 = sshll.u32 [#allocation21], 4
      %s237 = int_to_ptr.vmem [resolvable:$true] %s236
      %242 = dma.hbm_to_vmem [thread:$0]  %s29, 512, %s237, [#allocation20], 128, 128, 8
    $region61: #{dec_forward.1} parent=1 // pred_fallthru
      _
    // Predicated region
    $region62: #{dec_forward.1} parent=1 // pred_check
      _
    $region63: #{dec_forward.1} parent=1 // pred_check_branch
      %244 = sbr.rel (0) target = $region65
    $region64: #{dec_forward.1} parent=1 // pred_region
      %s246 = ssub.s32 16, 16
      %247 = vsyncadd [#allocation23], %s246
      %s249 = sshll.u32 [#allocation22], 4
      %s250 = int_to_ptr.vmem [resolvable:$true] %s249
      %252 = dma.hbm_to_vmem [thread:$0]  %s31, 16, %s250, [#allocation23]
    $region65: #{dec_forward.1} parent=1 // pred_fallthru
      _
    // Predicated region
    $region66: #{dec_forward.1} parent=1 // pred_check
      _
    $region67: #{dec_forward.1} parent=1 // pred_check_branch
      %254 = sbr.rel (0) target = $region69
    $region68: #{dec_forward.1} parent=1 // pred_region
      %s256 = ssub.s32 512, 512
      %257 = vsyncadd [#allocation23], %s256
      %s258 = sshll.u32 [#allocation24], 4
      %s259 = int_to_ptr.vmem [resolvable:$true] %s258
      %264 = dma.hbm_to_vmem [thread:$0]  %s33, 512, %s259, [#allocation23], 128, 128, 8
    $region69: #{dec_forward.1} parent=1 // pred_fallthru
      _
    // Predicated region
    $region70: #{dec_forward.1} parent=1 // pred_check
      _
    $region71: #{dec_forward.1} parent=1 // pred_check_branch
      %266 = sbr.rel (0) target = $region73
    $region72: #{dec_forward.1} parent=1 // pred_region
      %s268 = ssub.s32 16, 16
      %269 = vsyncadd [#allocation26], %s268
      %s271 = sshll.u32 [#allocation25], 4
      %s272 = int_to_ptr.vmem [resolvable:$true] %s271
      %274 = dma.hbm_to_vmem [thread:$0]  %s35, 16, %s272, [#allocation26]
    $region73: #{dec_forward.1} parent=1 // pred_fallthru
      _
    // Predicated region
    $region74: #{dec_forward.1} parent=1 // pred_check
      _
    $region75: #{dec_forward.1} parent=1 // pred_check_branch
      %276 = sbr.rel (0) target = $region77
    $region76: #{dec_forward.1} parent=1 // pred_region
      %s278 = ssub.s32 16, 16
      %279 = vsyncadd [#allocation26], %s278
      %s281 = sshll.u32 [#allocation27], 4
      %s282 = int_to_ptr.vmem [resolvable:$true] %s281
      %284 = dma.hbm_to_vmem [thread:$0]  %s37, 16, %s282, [#allocation26]
    $region77: #{dec_forward.1} parent=1 // pred_fallthru
      _
    // Predicated region
    $region78: #{dec_forward.1} parent=1 // pred_check
      _
    $region79: #{dec_forward.1} parent=1 // pred_check_branch
      %286 = sbr.rel (0) target = $region81
    $region80: #{dec_forward.1} parent=1 // pred_region
      %s288 = ssub.s32 16, 16
      %289 = vsyncadd [#allocation29], %s288
      %s291 = sshll.u32 [#allocation28], 4
      %s292 = int_to_ptr.vmem [resolvable:$true] %s291
      %294 = dma.hbm_to_vmem [thread:$0]  %s39, 16, %s292, [#allocation29]
    $region81: #{dec_forward.1} parent=1 // pred_fallthru
      _
    // Predicated region
    $region82: #{dec_forward.1} parent=1 // pred_check
      _
    $region83: #{dec_forward.1} parent=1 // pred_check_branch
      %296 = sbr.rel (0) target = $region85
    $region84: #{dec_forward.1} parent=1 // pred_region
      _
    $region85: #{dec_forward.1} parent=1 // pred_fallthru
      _
    // Predicated region
    $region86: #{dec_forward.1} parent=1 // pred_check
      _
    $region87: #{dec_forward.1} parent=1 // pred_check_branch
      %298 = sbr.rel (0) target = $region89
    $region88: #{dec_forward.1} parent=1 // pred_region
      _
    $region89: #{dec_forward.1} parent=1 // pred_fallthru
      _
    // Predicated region
    $region90: #{dec_forward.1} parent=1 // pred_check
      _
    $region91: #{dec_forward.1} parent=1 // pred_check_branch
      %300 = sbr.rel (0) target = $region93
    $region92: #{dec_forward.1} parent=1 // pred_region
      %s302 = ssub.s32 16, 16
      %303 = vsyncadd [#allocation29], %s302
      %s305 = sshll.u32 [#allocation30], 4
      %s306 = int_to_ptr.vmem [resolvable:$true] %s305
      %308 = dma.hbm_to_vmem [thread:$0]  %s45, 16, %s306, [#allocation29]
    $region93: #{dec_forward.1} parent=1 // pred_fallthru
      _
    // Predicated region
    $region94: #{dec_forward.1} parent=1 // pred_check
      _
    $region95: #{dec_forward.1} parent=1 // pred_check_branch
      %310 = sbr.rel (0) target = $region97
    $region96: #{dec_forward.1} parent=1 // pred_region
      %s312 = ssub.s32 16, 16
      %313 = vsyncadd [#allocation32], %s312
      %s315 = sshll.u32 [#allocation31], 4
      %s316 = int_to_ptr.vmem [resolvable:$true] %s315
      %318 = dma.hbm_to_vmem [thread:$0]  %s47, 16, %s316, [#allocation32]
    $region97: #{dec_forward.1} parent=1 // pred_fallthru
      _
    // Predicated region
    $region98: #{dec_forward.1} parent=1 // pred_check
      _
    $region99: #{dec_forward.1} parent=1 // pred_check_branch
      %320 = sbr.rel (0) target = $region101
    $region100: #{dec_forward.1} parent=1 // pred_region
      %s322 = ssub.s32 1024, 1024
      %323 = vsyncadd [#allocation32], %s322
      %s324 = sshll.u32 [#allocation33], 4
      %s325 = int_to_ptr.vmem [resolvable:$true] %s324
      %330 = dma.hbm_to_vmem [thread:$0]  %s49, 1024, %s325, [#allocation32], 128, 128, 8
    $region101: #{dec_forward.1} parent=1 // pred_fallthru
      _
    // Predicated region
    $region102: #{dec_forward.1} parent=1 // pred_check
      _
    $region103: #{dec_forward.1} parent=1 // pred_check_branch
      %332 = sbr.rel (0) target = $region105
    $region104: #{dec_forward.1} parent=1 // pred_region
      %s334 = ssub.s32 16, 16
      %335 = vsyncadd [#allocation35], %s334
      %s337 = sshll.u32 [#allocation34], 4
      %s338 = int_to_ptr.vmem [resolvable:$true] %s337
      %340 = dma.hbm_to_vmem [thread:$0]  %s51, 16, %s338, [#allocation35]
    $region105: #{dec_forward.1} parent=1 // pred_fallthru
      _
    // Predicated region
    $region106: #{dec_forward.1} parent=1 // pred_check
      _
    $region107: #{dec_forward.1} parent=1 // pred_check_branch
      %342 = sbr.rel (0) target = $region109
    $region108: #{dec_forward.1} parent=1 // pred_region
      %s344 = ssub.s32 16, 16
      %345 = vsyncadd [#allocation35], %s344
      %s347 = sshll.u32 [#allocation36], 4
      %s348 = int_to_ptr.vmem [resolvable:$true] %s347
      %350 = dma.hbm_to_vmem [thread:$0]  %s53, 16, %s348, [#allocation35]
    $region109: #{dec_forward.1} parent=1 // pred_fallthru
      _
    // Predicated region
    $region110: #{dec_forward.1} parent=1 // pred_check
      _
    $region111: #{dec_forward.1} parent=1 // pred_check_branch
      %352 = sbr.rel (0) target = $region113
    $region112: #{dec_forward.1} parent=1 // pred_region
      %s354 = ssub.s32 16, 16
      %355 = vsyncadd [#allocation38], %s354
      %s357 = sshll.u32 [#allocation37], 4
      %s358 = int_to_ptr.vmem [resolvable:$true] %s357
      %360 = dma.hbm_to_vmem [thread:$0]  %s55, 16, %s358, [#allocation38]
    $region113: #{dec_forward.1} parent=1 // pred_fallthru
      _
    // Predicated region
    $region114: #{dec_forward.1} parent=1 // pred_check
      _
    $region115: #{dec_forward.1} parent=1 // pred_check_branch
      %362 = sbr.rel (0) target = $region117
    $region116: #{dec_forward.1} parent=1 // pred_region
      _
    $region117: #{dec_forward.1} parent=1 // pred_fallthru
      _
    // Predicated region
    $region118: #{dec_forward.1} parent=1 // pred_check
      _
    $region119: #{dec_forward.1} parent=1 // pred_check_branch
      %364 = sbr.rel (0) target = $region121
    $region120: #{dec_forward.1} parent=1 // pred_region
      _
    $region121: #{dec_forward.1} parent=1 // pred_fallthru
      _
    // Predicated region
    $region122: #{dec_forward.1} parent=1 // pred_check
      _
    $region123: #{dec_forward.1} parent=1 // pred_check_branch
      %366 = sbr.rel (0) target = $region125
    $region124: #{dec_forward.1} parent=1 // pred_region
      _
    $region125: #{dec_forward.1} parent=1 // pred_fallthru
      _
    // Predicated region
    $region126: #{dec_forward.1} parent=1 // pred_check
      _
    $region127: #{dec_forward.1} parent=1 // pred_check_branch
      %368 = sbr.rel (0) target = $region129
    $region128: #{dec_forward.1} parent=1 // pred_region
      _
    $region129: #{dec_forward.1} parent=1 // pred_fallthru
      _
    // Predicated region
    $region130: #{dec_forward.1} parent=1 // pred_check
      _
    $region131: #{dec_forward.1} parent=1 // pred_check_branch
      %370 = sbr.rel (0) target = $region133
    $region132: #{dec_forward.1} parent=1 // pred_region
      %s372 = ssub.s32 32, 32
      %373 = vsyncadd [#allocation38], %s372
      %s375 = sshll.u32 [#allocation39], 4
      %s376 = int_to_ptr.vmem [resolvable:$true] %s375
      %378 = dma.hbm_to_vmem [thread:$0]  %s65, 32, %s376, [#allocation38]
    $region133: #{dec_forward.1} parent=1 // pred_fallthru
      _
    // Predicated region
    $region134: #{dec_forward.1} parent=1 // pred_check
      _
    $region135: #{dec_forward.1} parent=1 // pred_check_branch
      %380 = sbr.rel (0) target = $region137
    $region136: #{dec_forward.1} parent=1 // pred_region
      _
    $region137: #{dec_forward.1} parent=1 // pred_fallthru
      _
    // Predicated region
    $region138: #{dec_forward.1} parent=1 // pred_check
      _
    $region139: #{dec_forward.1} parent=1 // pred_check_branch
      %382 = sbr.rel (0) target = $region141
    $region140: #{dec_forward.1} parent=1 // pred_region
      %s384 = ssub.s32 16, 16
      %385 = vsyncadd [#allocation41], %s384
      %s387 = sshll.u32 [#allocation40], 4
      %s388 = int_to_ptr.vmem [resolvable:$true] %s387
      %390 = dma.hbm_to_vmem [thread:$0]  %s69, 16, %s388, [#allocation41]
    $region141: #{dec_forward.1} parent=1 // pred_fallthru
      _
    // Predicated region
    $region142: #{dec_forward.1} parent=1 // pred_check
      _
    $region143: #{dec_forward.1} parent=1 // pred_check_branch
      %392 = sbr.rel (0) target = $region145
    $region144: #{dec_forward.1} parent=1 // pred_region
      %s394 = ssub.s32 16, 16
      %395 = vsyncadd [#allocation41], %s394
      %s397 = sshll.u32 [#allocation42], 4
      %s398 = int_to_ptr.vmem [resolvable:$true] %s397
      %400 = dma.hbm_to_vmem [thread:$0]  %s71, 16, %s398, [#allocation41]
    $region145: #{dec_forward.1} parent=1 // pred_fallthru
      _
    // Predicated region
    $region146: #{dec_forward.1} parent=1 // pred_check
      _
    $region147: #{dec_forward.1} parent=1 // pred_check_branch
      %402 = sbr.rel (0) target = $region149
    $region148: #{dec_forward.1} parent=1 // pred_region
      %s404 = ssub.s32 16, 16
      %405 = vsyncadd [#allocation44], %s404
      %s407 = sshll.u32 [#allocation43], 4
      %s408 = int_to_ptr.vmem [resolvable:$true] %s407
      %410 = dma.hbm_to_vmem [thread:$0]  %s73, 16, %s408, [#allocation44]
    $region149: #{dec_forward.1} parent=1 // pred_fallthru
      _
    // Predicated region
    $region150: #{dec_forward.1} parent=1 // pred_check
      _
    $region151: #{dec_forward.1} parent=1 // pred_check_branch
      %412 = sbr.rel (0) target = $region153
    $region152: #{dec_forward.1} parent=1 // pred_region
      _
    $region153: #{dec_forward.1} parent=1 // pred_fallthru
      _
    // Predicated region
    $region154: #{dec_forward.1} parent=1 // pred_check
      _
    $region155: #{dec_forward.1} parent=1 // pred_check_branch
      %414 = sbr.rel (0) target = $region157
    $region156: #{dec_forward.1} parent=1 // pred_region
      _
    $region157: #{dec_forward.1} parent=1 // pred_fallthru
      _
    // Predicated region
    $region158: #{dec_forward.1} parent=1 // pred_check
      _
    $region159: #{dec_forward.1} parent=1 // pred_check_branch
      %416 = sbr.rel (0) target = $region161
    $region160: #{dec_forward.1} parent=1 // pred_region
      %417 = dma.done [#allocation3], 512
    $region161: #{dec_forward.1} parent=1 // pred_fallthru
      _
    // Predicated region
    $region162: #{dec_forward.1} parent=1 // pred_check
      _
    $region163: #{dec_forward.1} parent=1 // pred_check_branch
      %419 = sbr.rel (0) target = $region165
    $region164: #{dec_forward.1} parent=1 // pred_region
      %420 = dma.done [#allocation5], 16
    $region165: #{dec_forward.1} parent=1 // pred_fallthru
      _
    // Predicated region
    $region166: #{dec_forward.1} parent=1 // pred_check
      _
    $region167: #{dec_forward.1} parent=1 // pred_check_branch
      %422 = sbr.rel (0) target = $region169
    $region168: #{dec_forward.1} parent=1 // pred_region
      %423 = dma.done [#allocation5], 512
    $region169: #{dec_forward.1} parent=1 // pred_fallthru
      _
    // Predicated region
    $region170: #{dec_forward.1} parent=1 // pred_check
      _
    $region171: #{dec_forward.1} parent=1 // pred_check_branch
      %425 = sbr.rel (0) target = $region173
    $region172: #{dec_forward.1} parent=1 // pred_region
      %426 = dma.done [#allocation8], 16
    $region173: #{dec_forward.1} parent=1 // pred_fallthru
      _
    // Predicated region
    $region174: #{dec_forward.1} parent=1 // pred_check
      _
    $region175: #{dec_forward.1} parent=1 // pred_check_branch
      %428 = sbr.rel (0) target = $region177
    $region176: #{dec_forward.1} parent=1 // pred_region
      %429 = dma.done [#allocation8], 16
    $region177: #{dec_forward.1} parent=1 // pred_fallthru
      _
    // Predicated region
    $region178: #{dec_forward.1} parent=1 // pred_check
      _
    $region179: #{dec_forward.1} parent=1 // pred_check_branch
      %431 = sbr.rel (0) target = $region181
    $region180: #{dec_forward.1} parent=1 // pred_region
      %432 = dma.done [#allocation11], 16
    $region181: #{dec_forward.1} parent=1 // pred_fallthru
      _
    // Predicated region
    $region182: #{dec_forward.1} parent=1 // pred_check
      _
    $region183: #{dec_forward.1} parent=1 // pred_check_branch
      %434 = sbr.rel (0) target = $region185
    $region184: #{dec_forward.1} parent=1 // pred_region
      %435 = dma.done [#allocation11], 512
    $region185: #{dec_forward.1} parent=1 // pred_fallthru
      _
    // Predicated region
    $region186: #{dec_forward.1} parent=1 // pred_check
      _
    $region187: #{dec_forward.1} parent=1 // pred_check_branch
      %437 = sbr.rel (0) target = $region189
    $region188: #{dec_forward.1} parent=1 // pred_region
      %438 = dma.done [#allocation14], 16
    $region189: #{dec_forward.1} parent=1 // pred_fallthru
      _
    // Predicated region
    $region190: #{dec_forward.1} parent=1 // pred_check
      _
    $region191: #{dec_forward.1} parent=1 // pred_check_branch
      %440 = sbr.rel (0) target = $region193
    $region192: #{dec_forward.1} parent=1 // pred_region
      %441 = dma.done [#allocation14], 512
    $region193: #{dec_forward.1} parent=1 // pred_fallthru
      _
    // Predicated region
    $region194: #{dec_forward.1} parent=1 // pred_check
      _
    $region195: #{dec_forward.1} parent=1 // pred_check_branch
      %443 = sbr.rel (0) target = $region197
    $region196: #{dec_forward.1} parent=1 // pred_region
      %444 = dma.done [#allocation17], 16
    $region197: #{dec_forward.1} parent=1 // pred_fallthru
      _
    // Predicated region
    $region198: #{dec_forward.1} parent=1 // pred_check
      _
    $region199: #{dec_forward.1} parent=1 // pred_check_branch
      %446 = sbr.rel (0) target = $region201
    $region200: #{dec_forward.1} parent=1 // pred_region
      %447 = dma.done [#allocation17], 16
    $region201: #{dec_forward.1} parent=1 // pred_fallthru
      _
    // Predicated region
    $region202: #{dec_forward.1} parent=1 // pred_check
      _
    $region203: #{dec_forward.1} parent=1 // pred_check_branch
      %449 = sbr.rel (0) target = $region205
    $region204: #{dec_forward.1} parent=1 // pred_region
      %450 = dma.done [#allocation20], 16
    $region205: #{dec_forward.1} parent=1 // pred_fallthru
      _
    // Predicated region
    $region206: #{dec_forward.1} parent=1 // pred_check
      _
    $region207: #{dec_forward.1} parent=1 // pred_check_branch
      %452 = sbr.rel (0) target = $region209
    $region208: #{dec_forward.1} parent=1 // pred_region
      %453 = dma.done [#allocation20], 512
    $region209: #{dec_forward.1} parent=1 // pred_fallthru
      _
    // Predicated region
    $region210: #{dec_forward.1} parent=1 // pred_check
      _
    $region211: #{dec_forward.1} parent=1 // pred_check_branch
      %455 = sbr.rel (0) target = $region213
    $region212: #{dec_forward.1} parent=1 // pred_region
      %456 = dma.done [#allocation23], 16
    $region213: #{dec_forward.1} parent=1 // pred_fallthru
      _
    // Predicated region
    $region214: #{dec_forward.1} parent=1 // pred_check
      _
    $region215: #{dec_forward.1} parent=1 // pred_check_branch
      %458 = sbr.rel (0) target = $region217
    $region216: #{dec_forward.1} parent=1 // pred_region
      %459 = dma.done [#allocation23], 512
    $region217: #{dec_forward.1} parent=1 // pred_fallthru
      _
    // Predicated region
    $region218: #{dec_forward.1} parent=1 // pred_check
      _
    $region219: #{dec_forward.1} parent=1 // pred_check_branch
      %461 = sbr.rel (0) target = $region221
    $region220: #{dec_forward.1} parent=1 // pred_region
      %462 = dma.done [#allocation26], 16
    $region221: #{dec_forward.1} parent=1 // pred_fallthru
      _
    // Predicated region
    $region222: #{dec_forward.1} parent=1 // pred_check
      _
    $region223: #{dec_forward.1} parent=1 // pred_check_branch
      %464 = sbr.rel (0) target = $region225
    $region224: #{dec_forward.1} parent=1 // pred_region
      %465 = dma.done [#allocation26], 16
    $region225: #{dec_forward.1} parent=1 // pred_fallthru
      _
    // Predicated region
    $region226: #{dec_forward.1} parent=1 // pred_check
      _
    $region227: #{dec_forward.1} parent=1 // pred_check_branch
      %467 = sbr.rel (0) target = $region229
    $region228: #{dec_forward.1} parent=1 // pred_region
      %468 = dma.done [#allocation29], 16
    $region229: #{dec_forward.1} parent=1 // pred_fallthru
      _
    // Predicated region
    $region230: #{dec_forward.1} parent=1 // pred_check
      _
    $region231: #{dec_forward.1} parent=1 // pred_check_branch
      %470 = sbr.rel (0) target = $region233
    $region232: #{dec_forward.1} parent=1 // pred_region
      %471 = dma.done [#allocation29], 16
    $region233: #{dec_forward.1} parent=1 // pred_fallthru
      _
    // Predicated region
    $region234: #{dec_forward.1} parent=1 // pred_check
      _
    $region235: #{dec_forward.1} parent=1 // pred_check_branch
      %473 = sbr.rel (0) target = $region237
    $region236: #{dec_forward.1} parent=1 // pred_region
      %474 = dma.done [#allocation32], 16
    $region237: #{dec_forward.1} parent=1 // pred_fallthru
      _
    // Predicated region
    $region238: #{dec_forward.1} parent=1 // pred_check
      _
    $region239: #{dec_forward.1} parent=1 // pred_check_branch
      %476 = sbr.rel (0) target = $region241
    $region240: #{dec_forward.1} parent=1 // pred_region
      %477 = dma.done [#allocation32], 1024
    $region241: #{dec_forward.1} parent=1 // pred_fallthru
      _
    // Predicated region
    $region242: #{dec_forward.1} parent=1 // pred_check
      _
    $region243: #{dec_forward.1} parent=1 // pred_check_branch
      %479 = sbr.rel (0) target = $region245
    $region244: #{dec_forward.1} parent=1 // pred_region
      %480 = dma.done [#allocation35], 16
    $region245: #{dec_forward.1} parent=1 // pred_fallthru
      _
    // Predicated region
    $region246: #{dec_forward.1} parent=1 // pred_check
      _
    $region247: #{dec_forward.1} parent=1 // pred_check_branch
      %482 = sbr.rel (0) target = $region249
    $region248: #{dec_forward.1} parent=1 // pred_region
      %483 = dma.done [#allocation35], 16
    $region249: #{dec_forward.1} parent=1 // pred_fallthru
      _
    // Predicated region
    $region250: #{dec_forward.1} parent=1 // pred_check
      _
    $region251: #{dec_forward.1} parent=1 // pred_check_branch
      %485 = sbr.rel (0) target = $region253
    $region252: #{dec_forward.1} parent=1 // pred_region
      %486 = dma.done [#allocation38], 16
    $region253: #{dec_forward.1} parent=1 // pred_fallthru
      _
    // Predicated region
    $region254: #{dec_forward.1} parent=1 // pred_check
      _
    $region255: #{dec_forward.1} parent=1 // pred_check_branch
      %488 = sbr.rel (0) target = $region257
    $region256: #{dec_forward.1} parent=1 // pred_region
      %489 = dma.done [#allocation38], 32
    $region257: #{dec_forward.1} parent=1 // pred_fallthru
      _
    // Predicated region
    $region258: #{dec_forward.1} parent=1 // pred_check
      _
    $region259: #{dec_forward.1} parent=1 // pred_check_branch
      %491 = sbr.rel (0) target = $region261
    $region260: #{dec_forward.1} parent=1 // pred_region
      %492 = dma.done [#allocation41], 16
    $region261: #{dec_forward.1} parent=1 // pred_fallthru
      _
    // Predicated region
    $region262: #{dec_forward.1} parent=1 // pred_check
      _
    $region263: #{dec_forward.1} parent=1 // pred_check_branch
      %494 = sbr.rel (0) target = $region265
    $region264: #{dec_forward.1} parent=1 // pred_region
      %495 = dma.done [#allocation41], 16
    $region265: #{dec_forward.1} parent=1 // pred_fallthru
      _
    // Predicated region
    $region266: #{dec_forward.1} parent=1 // pred_check
      _
    $region267: #{dec_forward.1} parent=1 // pred_check_branch
      %497 = sbr.rel (0) target = $region269
    $region268: #{dec_forward.1} parent=1 // pred_region
      %498 = dma.done [#allocation44], 16
    $region269: #{dec_forward.1} parent=1 // pred_fallthru
      _
    %v499 = vld [vmem:[%s1] sm:$0x3]
    %v500 = vld [vmem:[#allocation2] sm:$0xff]
    %v501 = vld [vmem:[#allocation2 + $0x8] sm:$0xff]
    %v502 = vld [vmem:[#allocation2 + $0x10] sm:$0xff]
    %v503 = vld [vmem:[#allocation2 + $0x18] sm:$0xff]
    %v504 = vld [vmem:[#allocation4] sm:$0x1]
    %v505 = vld [vmem:[#allocation6] sm:$0xff]
    %v506 = vld [vmem:[#allocation6 + $0x8] sm:$0xff]
    %v507 = vld [vmem:[#allocation6 + $0x10] sm:$0xff]
    %v508 = vld [vmem:[#allocation6 + $0x18] sm:$0xff]
    %v509 = vld [vmem:[#allocation7] sm:$0x1]
    %v510 = vld [vmem:[#allocation9] sm:$0x1]
    %v511 = vld [vmem:[#allocation10] sm:$0x1]
    %v513 = vlaneseq
    %v514 = vshrl.u32 %v513, 7
    %v515 = vsub.s32 0, %v514
    %v516 = vrot.slane %v504, %v515
    %vm518 = vcmask 261120
    %v520 = vsel %vm518, %v499, 0
    %522 = vmatprep.subr.mxu0 0.0
    %523 = vmatpush1.msra.mxu0 %v500
    %524 = vmatprep.subr.mxu0 0.0
    %525 = vmatpush1.msra.mxu0 %v501
    %526 = vmatprep.subr.mxu0 0.0
    %527 = vmatpush1.msra.mxu0 %v502
    %528 = vmatprep.subr.mxu0 0.0
    %529 = vmatpush1.msra.mxu0 %v503
    %530 = vmatprep.subr.mxu0 0.0
    %531 = vmatpush1.msra.mxu0 0.0
    %532 = vmatprep.subr.mxu0 0.0
    %533 = vmatpush1.msra.mxu0 0.0
    %534 = vmatprep.subr.mxu0 0.0
    %535 = vmatpush1.msra.mxu0 0.0
    %536 = vmatprep.subr.mxu0 0.0
    %537 = vmatpush1.msra.mxu0 0.0
    %538 = vmatprep.subr.mxu0 0.0
    %539 = vmatpush1.msra.mxu0 0.0
    %540 = vmatprep.subr.mxu0 0.0
    %541 = vmatpush1.msra.mxu0 0.0
    %542 = vmatprep.subr.mxu0 0.0
    %543 = vmatpush1.msra.mxu0 0.0
    %544 = vmatprep.subr.mxu0 0.0
    %545 = vmatpush1.msra.mxu0 0.0
    %546 = vmatprep.subr.mxu0 0.0
    %547 = vmatpush1.msra.mxu0 0.0
    %548 = vmatprep.subr.mxu0 0.0
    %549 = vmatpush1.msra.mxu0 0.0
    %550 = vmatprep.subr.mxu0 0.0
    %551 = vmatpush1.msra.mxu0 0.0
    %552 = vmatprep.subr.mxu0 0.0
    %553 = vmatpush1.msra.mxu0 0.0
    %554 = vmatprep.subr.mxu0 0.0
    %555 = vmatpush1.msra.mxu0 0.0
    %556 = vmatprep.subr.mxu0 0.0
    %557 = vmatpush1.msra.mxu0 0.0
    %558 = vmatprep.subr.mxu0 0.0
    %559 = vmatpush1.msra.mxu0 0.0
    %560 = vmatprep.subr.mxu0 0.0
    %561 = vmatpush1.msra.mxu0 0.0
    %562 = vmatprep.subr.mxu0 0.0
    %563 = vmatpush1.msra.mxu0 0.0
    %564 = vmatprep.subr.mxu0 0.0
    %565 = vmatpush1.msra.mxu0 0.0
    %566 = vmatprep.subr.mxu0 0.0
    %567 = vmatpush1.msra.mxu0 0.0
    %568 = vmatprep.subr.mxu0 0.0
    %569 = vmatpush1.msra.mxu0 0.0
    %570 = vmatprep.subr.mxu0 0.0
    %571 = vmatpush1.msra.mxu0 0.0
    %572 = vmatprep.subr.mxu0 0.0
    %573 = vmatpush1.msra.mxu0 0.0
    %574 = vmatprep.subr.mxu0 0.0
    %575 = vmatpush1.msra.mxu0 0.0
    %576 = vmatprep.subr.mxu0 0.0
    %577 = vmatpush1.msra.mxu0 0.0
    %578 = vmatprep.subr.mxu0 0.0
    %579 = vmatpush1.msra.mxu0 0.0
    %580 = vmatprep.subr.mxu0 0.0
    %581 = vmatpush1.msra.mxu0 0.0
    %582 = vmatprep.subr.mxu0 0.0
    %583 = vmatpush1.msra.mxu0 0.0
    %584 = vmatprep.subr.mxu0 0.0
    %585 = vmatpush1.msra.mxu0 0.0
    %586 = vmatprep.mubr.f32.mxu0 0.0
    %587 = vmatmul.mubr.f32.gmra.mrb[0].mxu0 %v520
    %v588 = vpop.f32.mrb[0].mxu0
    %v589 = vadd.f32 %v516, %v588
    %v590 = vpop.f32.mrb[0].mxu0
    %591 = vdwg.mxu0
    %v592 = vmax.f32 %v589, 0.0
    %v594 = vlaneseq
    %v595 = vshrl.u32 %v594, 7
    %v596 = vsub.s32 0, %v595
    %v597 = vrot.slane %v509, %v596
    %v600 = vsel %vm518, %v592, 0
    %602 = vmatprep.subr.mxu0 0.0
    %603 = vmatpush1.msra.mxu0 %v505
    %604 = vmatprep.subr.mxu0 0.0
    %605 = vmatpush1.msra.mxu0 %v506
    %606 = vmatprep.subr.mxu0 0.0
    %607 = vmatpush1.msra.mxu0 %v507
    %608 = vmatprep.subr.mxu0 0.0
    %609 = vmatpush1.msra.mxu0 %v508
    %610 = vmatprep.subr.mxu0 0.0
    %611 = vmatpush1.msra.mxu0 0.0
    %612 = vmatprep.subr.mxu0 0.0
    %613 = vmatpush1.msra.mxu0 0.0
    %614 = vmatprep.subr.mxu0 0.0
    %615 = vmatpush1.msra.mxu0 0.0
    %616 = vmatprep.subr.mxu0 0.0
    %617 = vmatpush1.msra.mxu0 0.0
    %618 = vmatprep.subr.mxu0 0.0
    %619 = vmatpush1.msra.mxu0 0.0
    %620 = vmatprep.subr.mxu0 0.0
    %621 = vmatpush1.msra.mxu0 0.0
    %622 = vmatprep.subr.mxu0 0.0
    %623 = vmatpush1.msra.mxu0 0.0
    %624 = vmatprep.subr.mxu0 0.0
    %625 = vmatpush1.msra.mxu0 0.0
    %626 = vmatprep.subr.mxu0 0.0
    %627 = vmatpush1.msra.mxu0 0.0
    %628 = vmatprep.subr.mxu0 0.0
    %629 = vmatpush1.msra.mxu0 0.0
    %630 = vmatprep.subr.mxu0 0.0
    %631 = vmatpush1.msra.mxu0 0.0
    %632 = vmatprep.subr.mxu0 0.0
    %633 = vmatpush1.msra.mxu0 0.0
    %634 = vmatprep.subr.mxu0 0.0
    %635 = vmatpush1.msra.mxu0 0.0
    %636 = vmatprep.subr.mxu0 0.0
    %637 = vmatpush1.msra.mxu0 0.0
    %638 = vmatprep.subr.mxu0 0.0
    %639 = vmatpush1.msra.mxu0 0.0
    %640 = vmatprep.subr.mxu0 0.0
    %641 = vmatpush1.msra.mxu0 0.0
    %642 = vmatprep.subr.mxu0 0.0
    %643 = vmatpush1.msra.mxu0 0.0
    %644 = vmatprep.subr.mxu0 0.0
    %645 = vmatpush1.msra.mxu0 0.0
    %646 = vmatprep.subr.mxu0 0.0
    %647 = vmatpush1.msra.mxu0 0.0
    %648 = vmatprep.subr.mxu0 0.0
    %649 = vmatpush1.msra.mxu0 0.0
    %650 = vmatprep.subr.mxu0 0.0
    %651 = vmatpush1.msra.mxu0 0.0
    %652 = vmatprep.subr.mxu0 0.0
    %653 = vmatpush1.msra.mxu0 0.0
    %654 = vmatprep.subr.mxu0 0.0
    %655 = vmatpush1.msra.mxu0 0.0
    %656 = vmatprep.subr.mxu0 0.0
    %657 = vmatpush1.msra.mxu0 0.0
    %658 = vmatprep.subr.mxu0 0.0
    %659 = vmatpush1.msra.mxu0 0.0
    %660 = vmatprep.subr.mxu0 0.0
    %661 = vmatpush1.msra.mxu0 0.0
    %662 = vmatprep.subr.mxu0 0.0
    %663 = vmatpush1.msra.mxu0 0.0
    %664 = vmatprep.subr.mxu0 0.0
    %665 = vmatpush1.msra.mxu0 0.0
    %666 = vmatprep.mubr.f32.mxu0 0.0
    %667 = vmatmul.mubr.f32.gmra.mrb[0].mxu0 %v600
    %v668 = vpop.f32.mrb[0].mxu0
    %v669 = vadd.f32 %v597, %v668
    %v670 = vpop.f32.mrb[0].mxu0
    %671 = vdwg.mxu0
    %673 = vrot.lane.b32.xlu0 %v589, 96
    %v674 = vpop.permute.xlu0 %673
    %v676 = vadd.f32 %v669, %v674
    %v678 = vsel %vm518, %v676, 0
    %680 = vmatprep.subr.mxu0 0.0
    %681 = vmatpush1.msra.mxu0 1.0
    %682 = vmatprep.subr.mxu0 0.0
    %683 = vmatpush1.msra.mxu0 1.0
    %684 = vmatprep.subr.mxu0 0.0
    %685 = vmatpush1.msra.mxu0 1.0
    %686 = vmatprep.subr.mxu0 0.0
    %687 = vmatpush1.msra.mxu0 1.0
    %688 = vmatprep.subr.mxu0 0.0
    %689 = vmatpush1.msra.mxu0 0.0
    %690 = vmatprep.subr.mxu0 0.0
    %691 = vmatpush1.msra.mxu0 0.0
    %692 = vmatprep.subr.mxu0 0.0
    %693 = vmatpush1.msra.mxu0 0.0
    %694 = vmatprep.subr.mxu0 0.0
    %695 = vmatpush1.msra.mxu0 0.0
    %696 = vmatprep.subr.mxu0 0.0
    %697 = vmatpush1.msra.mxu0 0.0
    %698 = vmatprep.subr.mxu0 0.0
    %699 = vmatpush1.msra.mxu0 0.0
    %700 = vmatprep.subr.mxu0 0.0
    %701 = vmatpush1.msra.mxu0 0.0
    %702 = vmatprep.subr.mxu0 0.0
    %703 = vmatpush1.msra.mxu0 0.0
    %704 = vmatprep.subr.mxu0 0.0
    %705 = vmatpush1.msra.mxu0 0.0
    %706 = vmatprep.subr.mxu0 0.0
    %707 = vmatpush1.msra.mxu0 0.0
    %708 = vmatprep.subr.mxu0 0.0
    %709 = vmatpush1.msra.mxu0 0.0
    %710 = vmatprep.subr.mxu0 0.0
    %711 = vmatpush1.msra.mxu0 0.0
    %712 = vmatprep.subr.mxu0 0.0
    %713 = vmatpush1.msra.mxu0 0.0
    %714 = vmatprep.subr.mxu0 0.0
    %715 = vmatpush1.msra.mxu0 0.0
    %716 = vmatprep.subr.mxu0 0.0
    %717 = vmatpush1.msra.mxu0 0.0
    %718 = vmatprep.subr.mxu0 0.0
    %719 = vmatpush1.msra.mxu0 0.0
    %720 = vmatprep.subr.mxu0 0.0
    %721 = vmatpush1.msra.mxu0 0.0
    %722 = vmatprep.subr.mxu0 0.0
    %723 = vmatpush1.msra.mxu0 0.0
    %724 = vmatprep.subr.mxu0 0.0
    %725 = vmatpush1.msra.mxu0 0.0
    %726 = vmatprep.subr.mxu0 0.0
    %727 = vmatpush1.msra.mxu0 0.0
    %728 = vmatprep.subr.mxu0 0.0
    %729 = vmatpush1.msra.mxu0 0.0
    %730 = vmatprep.subr.mxu0 0.0
    %731 = vmatpush1.msra.mxu0 0.0
    %732 = vmatprep.subr.mxu0 0.0
    %733 = vmatpush1.msra.mxu0 0.0
    %734 = vmatprep.subr.mxu0 0.0
    %735 = vmatpush1.msra.mxu0 0.0
    %736 = vmatprep.subr.mxu0 0.0
    %737 = vmatpush1.msra.mxu0 0.0
    %738 = vmatprep.subr.mxu0 0.0
    %739 = vmatpush1.msra.mxu0 0.0
    %740 = vmatprep.subr.mxu0 0.0
    %741 = vmatpush1.msra.mxu0 0.0
    %742 = vmatprep.subr.mxu0 0.0
    %743 = vmatpush1.msra.mxu0 0.0
    %744 = vmatprep.mubr.f32.mxu0 0.0
    %745 = vmatmul.mubr.f32.gmra.mrb[0].mxu0 %v678
    %v746 = vpop.f32.mrb[0].mxu0
    %v747 = vadd.f32 0.0, %v746
    %v748 = vpop.f32.mrb[0].mxu0
    %749 = vdwg.mxu0
    %v750 = vmul.f32 %v747, 0.03125
    %v751 = vmul.f32 %v676, %v676
    %v753 = vsel %vm518, %v751, 0
    %755 = vmatprep.subr.mxu0 0.0
    %756 = vmatpush1.msra.mxu0 1.0
    %757 = vmatprep.subr.mxu0 0.0
    %758 = vmatpush1.msra.mxu0 1.0
    %759 = vmatprep.subr.mxu0 0.0
    %760 = vmatpush1.msra.mxu0 1.0
    %761 = vmatprep.subr.mxu0 0.0
    %762 = vmatpush1.msra.mxu0 1.0
    %763 = vmatprep.subr.mxu0 0.0
    %764 = vmatpush1.msra.mxu0 0.0
    %765 = vmatprep.subr.mxu0 0.0
    %766 = vmatpush1.msra.mxu0 0.0
    %767 = vmatprep.subr.mxu0 0.0
    %768 = vmatpush1.msra.mxu0 0.0
    %769 = vmatprep.subr.mxu0 0.0
    %770 = vmatpush1.msra.mxu0 0.0
    %771 = vmatprep.subr.mxu0 0.0
    %772 = vmatpush1.msra.mxu0 0.0
    %773 = vmatprep.subr.mxu0 0.0
    %774 = vmatpush1.msra.mxu0 0.0
    %775 = vmatprep.subr.mxu0 0.0
    %776 = vmatpush1.msra.mxu0 0.0
    %777 = vmatprep.subr.mxu0 0.0
    %778 = vmatpush1.msra.mxu0 0.0
    %779 = vmatprep.subr.mxu0 0.0
    %780 = vmatpush1.msra.mxu0 0.0
    %781 = vmatprep.subr.mxu0 0.0
    %782 = vmatpush1.msra.mxu0 0.0
    %783 = vmatprep.subr.mxu0 0.0
    %784 = vmatpush1.msra.mxu0 0.0
    %785 = vmatprep.subr.mxu0 0.0
    %786 = vmatpush1.msra.mxu0 0.0
    %787 = vmatprep.subr.mxu0 0.0
    %788 = vmatpush1.msra.mxu0 0.0
    %789 = vmatprep.subr.mxu0 0.0
    %790 = vmatpush1.msra.mxu0 0.0
    %791 = vmatprep.subr.mxu0 0.0
    %792 = vmatpush1.msra.mxu0 0.0
    %793 = vmatprep.subr.mxu0 0.0
    %794 = vmatpush1.msra.mxu0 0.0
    %795 = vmatprep.subr.mxu0 0.0
    %796 = vmatpush1.msra.mxu0 0.0
    %797 = vmatprep.subr.mxu0 0.0
    %798 = vmatpush1.msra.mxu0 0.0
    %799 = vmatprep.subr.mxu0 0.0
    %800 = vmatpush1.msra.mxu0 0.0
    %801 = vmatprep.subr.mxu0 0.0
    %802 = vmatpush1.msra.mxu0 0.0
    %803 = vmatprep.subr.mxu0 0.0
    %804 = vmatpush1.msra.mxu0 0.0
    %805 = vmatprep.subr.mxu0 0.0
    %806 = vmatpush1.msra.mxu0 0.0
    %807 = vmatprep.subr.mxu0 0.0
    %808 = vmatpush1.msra.mxu0 0.0
    %809 = vmatprep.subr.mxu0 0.0
    %810 = vmatpush1.msra.mxu0 0.0
    %811 = vmatprep.subr.mxu0 0.0
    %812 = vmatpush1.msra.mxu0 0.0
    %813 = vmatprep.subr.mxu0 0.0
    %814 = vmatpush1.msra.mxu0 0.0
    %815 = vmatprep.subr.mxu0 0.0
    %816 = vmatpush1.msra.mxu0 0.0
    %817 = vmatprep.subr.mxu0 0.0
    %818 = vmatpush1.msra.mxu0 0.0
    %819 = vmatprep.mubr.f32.mxu0 0.0
    %820 = vmatmul.mubr.f32.gmra.mrb[0].mxu0 %v753
    %v821 = vpop.f32.mrb[0].mxu0
    %v822 = vadd.f32 0.0, %v821
    %v823 = vpop.f32.mrb[0].mxu0
    %824 = vdwg.mxu0
    %v825 = vmul.f32 %v822, 0.03125
    %v826 = vmul.f32 %v750, %v750
    %v827 = vsub.f32 %v825, %v826
    %v828 = vmax.f32 %v827, 0.0
    %830 = vset.pattern.permute.xlu0 0
    %831 = vperm.xlu0 %830, %v750
    %v832 = vpop.permute.xlu0 %831
    %v834 = vsub.f32 %v676, %v832
    %v835 = vadd.f32 %v828, 1e-05
    %v836 = vrsqrt.pop %v835
    %838 = vset.pattern.permute.xlu0 0
    %839 = vperm.xlu0 %838, %v836
    %v840 = vpop.permute.xlu0 %839
    %v842 = vmul.f32 %v834, %v840
    %v844 = vlaneseq
    %v845 = vshrl.u32 %v844, 7
    %v846 = vsub.s32 0, %v845
    %v847 = vrot.slane %v510, %v846
    %v849 = vmul.f32 %v842, %v847
    %v851 = vlaneseq
    %v852 = vshrl.u32 %v851, 7
    %v853 = vsub.s32 0, %v852
    %v854 = vrot.slane %v511, %v853
    %v856 = vadd.f32 %v849, %v854
    %v857 = vld [vmem:[#allocation12] sm:$0xff]
    %v858 = vld [vmem:[#allocation12 + $0x8] sm:$0xff]
    %v859 = vld [vmem:[#allocation12 + $0x10] sm:$0xff]
    %v860 = vld [vmem:[#allocation12 + $0x18] sm:$0xff]
    %v861 = vld [vmem:[#allocation13] sm:$0x1]
    %v862 = vld [vmem:[#allocation15] sm:$0xff]
    %v863 = vld [vmem:[#allocation15 + $0x8] sm:$0xff]
    %v864 = vld [vmem:[#allocation15 + $0x10] sm:$0xff]
    %v865 = vld [vmem:[#allocation15 + $0x18] sm:$0xff]
    %v866 = vld [vmem:[#allocation16] sm:$0x1]
    %v867 = vld [vmem:[#allocation18] sm:$0x1]
    %v868 = vld [vmem:[#allocation19] sm:$0x1]
    %v870 = vlaneseq
    %v871 = vshrl.u32 %v870, 7
    %v872 = vsub.s32 0, %v871
    %v873 = vrot.slane %v861, %v872
    %v876 = vsel %vm518, %v856, 0
    %878 = vmatprep.subr.mxu0 0.0
    %879 = vmatpush1.msra.mxu0 %v857
    %880 = vmatprep.subr.mxu0 0.0
    %881 = vmatpush1.msra.mxu0 %v858
    %882 = vmatprep.subr.mxu0 0.0
    %883 = vmatpush1.msra.mxu0 %v859
    %884 = vmatprep.subr.mxu0 0.0
    %885 = vmatpush1.msra.mxu0 %v860
    %886 = vmatprep.subr.mxu0 0.0
    %887 = vmatpush1.msra.mxu0 0.0
    %888 = vmatprep.subr.mxu0 0.0
    %889 = vmatpush1.msra.mxu0 0.0
    %890 = vmatprep.subr.mxu0 0.0
    %891 = vmatpush1.msra.mxu0 0.0
    %892 = vmatprep.subr.mxu0 0.0
    %893 = vmatpush1.msra.mxu0 0.0
    %894 = vmatprep.subr.mxu0 0.0
    %895 = vmatpush1.msra.mxu0 0.0
    %896 = vmatprep.subr.mxu0 0.0
    %897 = vmatpush1.msra.mxu0 0.0
    %898 = vmatprep.subr.mxu0 0.0
    %899 = vmatpush1.msra.mxu0 0.0
    %900 = vmatprep.subr.mxu0 0.0
    %901 = vmatpush1.msra.mxu0 0.0
    %902 = vmatprep.subr.mxu0 0.0
    %903 = vmatpush1.msra.mxu0 0.0
    %904 = vmatprep.subr.mxu0 0.0
    %905 = vmatpush1.msra.mxu0 0.0
    %906 = vmatprep.subr.mxu0 0.0
    %907 = vmatpush1.msra.mxu0 0.0
    %908 = vmatprep.subr.mxu0 0.0
    %909 = vmatpush1.msra.mxu0 0.0
    %910 = vmatprep.subr.mxu0 0.0
    %911 = vmatpush1.msra.mxu0 0.0
    %912 = vmatprep.subr.mxu0 0.0
    %913 = vmatpush1.msra.mxu0 0.0
    %914 = vmatprep.subr.mxu0 0.0
    %915 = vmatpush1.msra.mxu0 0.0
    %916 = vmatprep.subr.mxu0 0.0
    %917 = vmatpush1.msra.mxu0 0.0
    %918 = vmatprep.subr.mxu0 0.0
    %919 = vmatpush1.msra.mxu0 0.0
    %920 = vmatprep.subr.mxu0 0.0
    %921 = vmatpush1.msra.mxu0 0.0
    %922 = vmatprep.subr.mxu0 0.0
    %923 = vmatpush1.msra.mxu0 0.0
    %924 = vmatprep.subr.mxu0 0.0
    %925 = vmatpush1.msra.mxu0 0.0
    %926 = vmatprep.subr.mxu0 0.0
    %927 = vmatpush1.msra.mxu0 0.0
    %928 = vmatprep.subr.mxu0 0.0
    %929 = vmatpush1.msra.mxu0 0.0
    %930 = vmatprep.subr.mxu0 0.0
    %931 = vmatpush1.msra.mxu0 0.0
    %932 = vmatprep.subr.mxu0 0.0
    %933 = vmatpush1.msra.mxu0 0.0
    %934 = vmatprep.subr.mxu0 0.0
    %935 = vmatpush1.msra.mxu0 0.0
    %936 = vmatprep.subr.mxu0 0.0
    %937 = vmatpush1.msra.mxu0 0.0
    %938 = vmatprep.subr.mxu0 0.0
    %939 = vmatpush1.msra.mxu0 0.0
    %940 = vmatprep.subr.mxu0 0.0
    %941 = vmatpush1.msra.mxu0 0.0
    %942 = vmatprep.mubr.f32.mxu0 0.0
    %943 = vmatmul.mubr.f32.gmra.mrb[0].mxu0 %v876
    %v944 = vpop.f32.mrb[0].mxu0
    %v945 = vadd.f32 %v873, %v944
    %v946 = vpop.f32.mrb[0].mxu0
    %947 = vdwg.mxu0
    %v948 = vmax.f32 %v945, 0.0
    %v950 = vlaneseq
    %v951 = vshrl.u32 %v950, 7
    %v952 = vsub.s32 0, %v951
    %v953 = vrot.slane %v866, %v952
    %v956 = vsel %vm518, %v948, 0
    %958 = vmatprep.subr.mxu0 0.0
    %959 = vmatpush1.msra.mxu0 %v862
    %960 = vmatprep.subr.mxu0 0.0
    %961 = vmatpush1.msra.mxu0 %v863
    %962 = vmatprep.subr.mxu0 0.0
    %963 = vmatpush1.msra.mxu0 %v864
    %964 = vmatprep.subr.mxu0 0.0
    %965 = vmatpush1.msra.mxu0 %v865
    %966 = vmatprep.subr.mxu0 0.0
    %967 = vmatpush1.msra.mxu0 0.0
    %968 = vmatprep.subr.mxu0 0.0
    %969 = vmatpush1.msra.mxu0 0.0
    %970 = vmatprep.subr.mxu0 0.0
    %971 = vmatpush1.msra.mxu0 0.0
    %972 = vmatprep.subr.mxu0 0.0
    %973 = vmatpush1.msra.mxu0 0.0
    %974 = vmatprep.subr.mxu0 0.0
    %975 = vmatpush1.msra.mxu0 0.0
    %976 = vmatprep.subr.mxu0 0.0
    %977 = vmatpush1.msra.mxu0 0.0
    %978 = vmatprep.subr.mxu0 0.0
    %979 = vmatpush1.msra.mxu0 0.0
    %980 = vmatprep.subr.mxu0 0.0
    %981 = vmatpush1.msra.mxu0 0.0
    %982 = vmatprep.subr.mxu0 0.0
    %983 = vmatpush1.msra.mxu0 0.0
    %984 = vmatprep.subr.mxu0 0.0
    %985 = vmatpush1.msra.mxu0 0.0
    %986 = vmatprep.subr.mxu0 0.0
    %987 = vmatpush1.msra.mxu0 0.0
    %988 = vmatprep.subr.mxu0 0.0
    %989 = vmatpush1.msra.mxu0 0.0
    %990 = vmatprep.subr.mxu0 0.0
    %991 = vmatpush1.msra.mxu0 0.0
    %992 = vmatprep.subr.mxu0 0.0
    %993 = vmatpush1.msra.mxu0 0.0
    %994 = vmatprep.subr.mxu0 0.0
    %995 = vmatpush1.msra.mxu0 0.0
    %996 = vmatprep.subr.mxu0 0.0
    %997 = vmatpush1.msra.mxu0 0.0
    %998 = vmatprep.subr.mxu0 0.0
    %999 = vmatpush1.msra.mxu0 0.0
    %1000 = vmatprep.subr.mxu0 0.0
    %1001 = vmatpush1.msra.mxu0 0.0
    %1002 = vmatprep.subr.mxu0 0.0
    %1003 = vmatpush1.msra.mxu0 0.0
    %1004 = vmatprep.subr.mxu0 0.0
    %1005 = vmatpush1.msra.mxu0 0.0
    %1006 = vmatprep.subr.mxu0 0.0
    %1007 = vmatpush1.msra.mxu0 0.0
    %1008 = vmatprep.subr.mxu0 0.0
    %1009 = vmatpush1.msra.mxu0 0.0
    %1010 = vmatprep.subr.mxu0 0.0
    %1011 = vmatpush1.msra.mxu0 0.0
    %1012 = vmatprep.subr.mxu0 0.0
    %1013 = vmatpush1.msra.mxu0 0.0
    %1014 = vmatprep.subr.mxu0 0.0
    %1015 = vmatpush1.msra.mxu0 0.0
    %1016 = vmatprep.subr.mxu0 0.0
    %1017 = vmatpush1.msra.mxu0 0.0
    %1018 = vmatprep.subr.mxu0 0.0
    %1019 = vmatpush1.msra.mxu0 0.0
    %1020 = vmatprep.subr.mxu0 0.0
    %1021 = vmatpush1.msra.mxu0 0.0
    %1022 = vmatprep.mubr.f32.mxu0 0.0
    %1023 = vmatmul.mubr.f32.gmra.mrb[0].mxu0 %v956
    %v1024 = vpop.f32.mrb[0].mxu0
    %v1025 = vadd.f32 %v953, %v1024
    %v1026 = vpop.f32.mrb[0].mxu0
    %1027 = vdwg.mxu0
    %1029 = vrot.lane.b32.xlu0 %v945, 96
    %v1030 = vpop.permute.xlu0 %1029
    %v1032 = vadd.f32 %v1025, %v1030
    %v1034 = vsel %vm518, %v1032, 0
    %1036 = vmatprep.subr.mxu0 0.0
    %1037 = vmatpush1.msra.mxu0 1.0
    %1038 = vmatprep.subr.mxu0 0.0
    %1039 = vmatpush1.msra.mxu0 1.0
    %1040 = vmatprep.subr.mxu0 0.0
    %1041 = vmatpush1.msra.mxu0 1.0
    %1042 = vmatprep.subr.mxu0 0.0
    %1043 = vmatpush1.msra.mxu0 1.0
    %1044 = vmatprep.subr.mxu0 0.0
    %1045 = vmatpush1.msra.mxu0 0.0
    %1046 = vmatprep.subr.mxu0 0.0
    %1047 = vmatpush1.msra.mxu0 0.0
    %1048 = vmatprep.subr.mxu0 0.0
    %1049 = vmatpush1.msra.mxu0 0.0
    %1050 = vmatprep.subr.mxu0 0.0
    %1051 = vmatpush1.msra.mxu0 0.0
    %1052 = vmatprep.subr.mxu0 0.0
    %1053 = vmatpush1.msra.mxu0 0.0
    %1054 = vmatprep.subr.mxu0 0.0
    %1055 = vmatpush1.msra.mxu0 0.0
    %1056 = vmatprep.subr.mxu0 0.0
    %1057 = vmatpush1.msra.mxu0 0.0
    %1058 = vmatprep.subr.mxu0 0.0
    %1059 = vmatpush1.msra.mxu0 0.0
    %1060 = vmatprep.subr.mxu0 0.0
    %1061 = vmatpush1.msra.mxu0 0.0
    %1062 = vmatprep.subr.mxu0 0.0
    %1063 = vmatpush1.msra.mxu0 0.0
    %1064 = vmatprep.subr.mxu0 0.0
    %1065 = vmatpush1.msra.mxu0 0.0
    %1066 = vmatprep.subr.mxu0 0.0
    %1067 = vmatpush1.msra.mxu0 0.0
    %1068 = vmatprep.subr.mxu0 0.0
    %1069 = vmatpush1.msra.mxu0 0.0
    %1070 = vmatprep.subr.mxu0 0.0
    %1071 = vmatpush1.msra.mxu0 0.0
    %1072 = vmatprep.subr.mxu0 0.0
    %1073 = vmatpush1.msra.mxu0 0.0
    %1074 = vmatprep.subr.mxu0 0.0
    %1075 = vmatpush1.msra.mxu0 0.0
    %1076 = vmatprep.subr.mxu0 0.0
    %1077 = vmatpush1.msra.mxu0 0.0
    %1078 = vmatprep.subr.mxu0 0.0
    %1079 = vmatpush1.msra.mxu0 0.0
    %1080 = vmatprep.subr.mxu0 0.0
    %1081 = vmatpush1.msra.mxu0 0.0
    %1082 = vmatprep.subr.mxu0 0.0
    %1083 = vmatpush1.msra.mxu0 0.0
    %1084 = vmatprep.subr.mxu0 0.0
    %1085 = vmatpush1.msra.mxu0 0.0
    %1086 = vmatprep.subr.mxu0 0.0
    %1087 = vmatpush1.msra.mxu0 0.0
    %1088 = vmatprep.subr.mxu0 0.0
    %1089 = vmatpush1.msra.mxu0 0.0
    %1090 = vmatprep.subr.mxu0 0.0
    %1091 = vmatpush1.msra.mxu0 0.0
    %1092 = vmatprep.subr.mxu0 0.0
    %1093 = vmatpush1.msra.mxu0 0.0
    %1094 = vmatprep.subr.mxu0 0.0
    %1095 = vmatpush1.msra.mxu0 0.0
    %1096 = vmatprep.subr.mxu0 0.0
    %1097 = vmatpush1.msra.mxu0 0.0
    %1098 = vmatprep.subr.mxu0 0.0
    %1099 = vmatpush1.msra.mxu0 0.0
    %1100 = vmatprep.mubr.f32.mxu0 0.0
    %1101 = vmatmul.mubr.f32.gmra.mrb[0].mxu0 %v1034
    %v1102 = vpop.f32.mrb[0].mxu0
    %v1103 = vadd.f32 0.0, %v1102
    %v1104 = vpop.f32.mrb[0].mxu0
    %1105 = vdwg.mxu0
    %v1106 = vmul.f32 %v1103, 0.03125
    %v1107 = vmul.f32 %v1032, %v1032
    %v1109 = vsel %vm518, %v1107, 0
    %1111 = vmatprep.subr.mxu0 0.0
    %1112 = vmatpush1.msra.mxu0 1.0
    %1113 = vmatprep.subr.mxu0 0.0
    %1114 = vmatpush1.msra.mxu0 1.0
    %1115 = vmatprep.subr.mxu0 0.0
    %1116 = vmatpush1.msra.mxu0 1.0
    %1117 = vmatprep.subr.mxu0 0.0
    %1118 = vmatpush1.msra.mxu0 1.0
    %1119 = vmatprep.subr.mxu0 0.0
    %1120 = vmatpush1.msra.mxu0 0.0
    %1121 = vmatprep.subr.mxu0 0.0
    %1122 = vmatpush1.msra.mxu0 0.0
    %1123 = vmatprep.subr.mxu0 0.0
    %1124 = vmatpush1.msra.mxu0 0.0
    %1125 = vmatprep.subr.mxu0 0.0
    %1126 = vmatpush1.msra.mxu0 0.0
    %1127 = vmatprep.subr.mxu0 0.0
    %1128 = vmatpush1.msra.mxu0 0.0
    %1129 = vmatprep.subr.mxu0 0.0
    %1130 = vmatpush1.msra.mxu0 0.0
    %1131 = vmatprep.subr.mxu0 0.0
    %1132 = vmatpush1.msra.mxu0 0.0
    %1133 = vmatprep.subr.mxu0 0.0
    %1134 = vmatpush1.msra.mxu0 0.0
    %1135 = vmatprep.subr.mxu0 0.0
    %1136 = vmatpush1.msra.mxu0 0.0
    %1137 = vmatprep.subr.mxu0 0.0
    %1138 = vmatpush1.msra.mxu0 0.0
    %1139 = vmatprep.subr.mxu0 0.0
    %1140 = vmatpush1.msra.mxu0 0.0
    %1141 = vmatprep.subr.mxu0 0.0
    %1142 = vmatpush1.msra.mxu0 0.0
    %1143 = vmatprep.subr.mxu0 0.0
    %1144 = vmatpush1.msra.mxu0 0.0
    %1145 = vmatprep.subr.mxu0 0.0
    %1146 = vmatpush1.msra.mxu0 0.0
    %1147 = vmatprep.subr.mxu0 0.0
    %1148 = vmatpush1.msra.mxu0 0.0
    %1149 = vmatprep.subr.mxu0 0.0
    %1150 = vmatpush1.msra.mxu0 0.0
    %1151 = vmatprep.subr.mxu0 0.0
    %1152 = vmatpush1.msra.mxu0 0.0
    %1153 = vmatprep.subr.mxu0 0.0
    %1154 = vmatpush1.msra.mxu0 0.0
    %1155 = vmatprep.subr.mxu0 0.0
    %1156 = vmatpush1.msra.mxu0 0.0
    %1157 = vmatprep.subr.mxu0 0.0
    %1158 = vmatpush1.msra.mxu0 0.0
    %1159 = vmatprep.subr.mxu0 0.0
    %1160 = vmatpush1.msra.mxu0 0.0
    %1161 = vmatprep.subr.mxu0 0.0
    %1162 = vmatpush1.msra.mxu0 0.0
    %1163 = vmatprep.subr.mxu0 0.0
    %1164 = vmatpush1.msra.mxu0 0.0
    %1165 = vmatprep.subr.mxu0 0.0
    %1166 = vmatpush1.msra.mxu0 0.0
    %1167 = vmatprep.subr.mxu0 0.0
    %1168 = vmatpush1.msra.mxu0 0.0
    %1169 = vmatprep.subr.mxu0 0.0
    %1170 = vmatpush1.msra.mxu0 0.0
    %1171 = vmatprep.subr.mxu0 0.0
    %1172 = vmatpush1.msra.mxu0 0.0
    %1173 = vmatprep.subr.mxu0 0.0
    %1174 = vmatpush1.msra.mxu0 0.0
    %1175 = vmatprep.mubr.f32.mxu0 0.0
    %1176 = vmatmul.mubr.f32.gmra.mrb[0].mxu0 %v1109
    %v1177 = vpop.f32.mrb[0].mxu0
    %v1178 = vadd.f32 0.0, %v1177
    %v1179 = vpop.f32.mrb[0].mxu0
    %1180 = vdwg.mxu0
    %v1181 = vmul.f32 %v1178, 0.03125
    %v1182 = vmul.f32 %v1106, %v1106
    %v1183 = vsub.f32 %v1181, %v1182
    %v1184 = vmax.f32 %v1183, 0.0
    %1186 = vset.pattern.permute.xlu0 0
    %1187 = vperm.xlu0 %1186, %v1106
    %v1188 = vpop.permute.xlu0 %1187
    %v1190 = vsub.f32 %v1032, %v1188
    %v1191 = vadd.f32 %v1184, 1e-05
    %v1192 = vrsqrt.pop %v1191
    %1194 = vset.pattern.permute.xlu0 0
    %1195 = vperm.xlu0 %1194, %v1192
    %v1196 = vpop.permute.xlu0 %1195
    %v1198 = vmul.f32 %v1190, %v1196
    %v1200 = vlaneseq
    %v1201 = vshrl.u32 %v1200, 7
    %v1202 = vsub.s32 0, %v1201
    %v1203 = vrot.slane %v867, %v1202
    %v1205 = vmul.f32 %v1198, %v1203
    %v1207 = vlaneseq
    %v1208 = vshrl.u32 %v1207, 7
    %v1209 = vsub.s32 0, %v1208
    %v1210 = vrot.slane %v868, %v1209
    %v1212 = vadd.f32 %v1205, %v1210
    %v1213 = vld [vmem:[#allocation21] sm:$0xff]
    %v1214 = vld [vmem:[#allocation21 + $0x8] sm:$0xff]
    %v1215 = vld [vmem:[#allocation21 + $0x10] sm:$0xff]
    %v1216 = vld [vmem:[#allocation21 + $0x18] sm:$0xff]
    %v1217 = vld [vmem:[#allocation22] sm:$0x1]
    %v1218 = vld [vmem:[#allocation24] sm:$0xff]
    %v1219 = vld [vmem:[#allocation24 + $0x8] sm:$0xff]
    %v1220 = vld [vmem:[#allocation24 + $0x10] sm:$0xff]
    %v1221 = vld [vmem:[#allocation24 + $0x18] sm:$0xff]
    %v1222 = vld [vmem:[#allocation25] sm:$0x1]
    %v1223 = vld [vmem:[#allocation27] sm:$0x1]
    %v1224 = vld [vmem:[#allocation28] sm:$0x1]
    %v1226 = vlaneseq
    %v1227 = vshrl.u32 %v1226, 7
    %v1228 = vsub.s32 0, %v1227
    %v1229 = vrot.slane %v1217, %v1228
    %v1232 = vsel %vm518, %v1212, 0
    %1234 = vmatprep.subr.mxu0 0.0
    %1235 = vmatpush1.msra.mxu0 %v1213
    %1236 = vmatprep.subr.mxu0 0.0
    %1237 = vmatpush1.msra.mxu0 %v1214
    %1238 = vmatprep.subr.mxu0 0.0
    %1239 = vmatpush1.msra.mxu0 %v1215
    %1240 = vmatprep.subr.mxu0 0.0
    %1241 = vmatpush1.msra.mxu0 %v1216
    %1242 = vmatprep.subr.mxu0 0.0
    %1243 = vmatpush1.msra.mxu0 0.0
    %1244 = vmatprep.subr.mxu0 0.0
    %1245 = vmatpush1.msra.mxu0 0.0
    %1246 = vmatprep.subr.mxu0 0.0
    %1247 = vmatpush1.msra.mxu0 0.0
    %1248 = vmatprep.subr.mxu0 0.0
    %1249 = vmatpush1.msra.mxu0 0.0
    %1250 = vmatprep.subr.mxu0 0.0
    %1251 = vmatpush1.msra.mxu0 0.0
    %1252 = vmatprep.subr.mxu0 0.0
    %1253 = vmatpush1.msra.mxu0 0.0
    %1254 = vmatprep.subr.mxu0 0.0
    %1255 = vmatpush1.msra.mxu0 0.0
    %1256 = vmatprep.subr.mxu0 0.0
    %1257 = vmatpush1.msra.mxu0 0.0
    %1258 = vmatprep.subr.mxu0 0.0
    %1259 = vmatpush1.msra.mxu0 0.0
    %1260 = vmatprep.subr.mxu0 0.0
    %1261 = vmatpush1.msra.mxu0 0.0
    %1262 = vmatprep.subr.mxu0 0.0
    %1263 = vmatpush1.msra.mxu0 0.0
    %1264 = vmatprep.subr.mxu0 0.0
    %1265 = vmatpush1.msra.mxu0 0.0
    %1266 = vmatprep.subr.mxu0 0.0
    %1267 = vmatpush1.msra.mxu0 0.0
    %1268 = vmatprep.subr.mxu0 0.0
    %1269 = vmatpush1.msra.mxu0 0.0
    %1270 = vmatprep.subr.mxu0 0.0
    %1271 = vmatpush1.msra.mxu0 0.0
    %1272 = vmatprep.subr.mxu0 0.0
    %1273 = vmatpush1.msra.mxu0 0.0
    %1274 = vmatprep.subr.mxu0 0.0
    %1275 = vmatpush1.msra.mxu0 0.0
    %1276 = vmatprep.subr.mxu0 0.0
    %1277 = vmatpush1.msra.mxu0 0.0
    %1278 = vmatprep.subr.mxu0 0.0
    %1279 = vmatpush1.msra.mxu0 0.0
    %1280 = vmatprep.subr.mxu0 0.0
    %1281 = vmatpush1.msra.mxu0 0.0
    %1282 = vmatprep.subr.mxu0 0.0
    %1283 = vmatpush1.msra.mxu0 0.0
    %1284 = vmatprep.subr.mxu0 0.0
    %1285 = vmatpush1.msra.mxu0 0.0
    %1286 = vmatprep.subr.mxu0 0.0
    %1287 = vmatpush1.msra.mxu0 0.0
    %1288 = vmatprep.subr.mxu0 0.0
    %1289 = vmatpush1.msra.mxu0 0.0
    %1290 = vmatprep.subr.mxu0 0.0
    %1291 = vmatpush1.msra.mxu0 0.0
    %1292 = vmatprep.subr.mxu0 0.0
    %1293 = vmatpush1.msra.mxu0 0.0
    %1294 = vmatprep.subr.mxu0 0.0
    %1295 = vmatpush1.msra.mxu0 0.0
    %1296 = vmatprep.subr.mxu0 0.0
    %1297 = vmatpush1.msra.mxu0 0.0
    %1298 = vmatprep.mubr.f32.mxu0 0.0
    %1299 = vmatmul.mubr.f32.gmra.mrb[0].mxu0 %v1232
    %v1300 = vpop.f32.mrb[0].mxu0
    %v1301 = vadd.f32 %v1229, %v1300
    %v1302 = vpop.f32.mrb[0].mxu0
    %1303 = vdwg.mxu0
    %v1304 = vmax.f32 %v1301, 0.0
    %v1306 = vlaneseq
    %v1307 = vshrl.u32 %v1306, 7
    %v1308 = vsub.s32 0, %v1307
    %v1309 = vrot.slane %v1222, %v1308
    %v1312 = vsel %vm518, %v1304, 0
    %1314 = vmatprep.subr.mxu0 0.0
    %1315 = vmatpush1.msra.mxu0 %v1218
    %1316 = vmatprep.subr.mxu0 0.0
    %1317 = vmatpush1.msra.mxu0 %v1219
    %1318 = vmatprep.subr.mxu0 0.0
    %1319 = vmatpush1.msra.mxu0 %v1220
    %1320 = vmatprep.subr.mxu0 0.0
    %1321 = vmatpush1.msra.mxu0 %v1221
    %1322 = vmatprep.subr.mxu0 0.0
    %1323 = vmatpush1.msra.mxu0 0.0
    %1324 = vmatprep.subr.mxu0 0.0
    %1325 = vmatpush1.msra.mxu0 0.0
    %1326 = vmatprep.subr.mxu0 0.0
    %1327 = vmatpush1.msra.mxu0 0.0
    %1328 = vmatprep.subr.mxu0 0.0
    %1329 = vmatpush1.msra.mxu0 0.0
    %1330 = vmatprep.subr.mxu0 0.0
    %1331 = vmatpush1.msra.mxu0 0.0
    %1332 = vmatprep.subr.mxu0 0.0
    %1333 = vmatpush1.msra.mxu0 0.0
    %1334 = vmatprep.subr.mxu0 0.0
    %1335 = vmatpush1.msra.mxu0 0.0
    %1336 = vmatprep.subr.mxu0 0.0
    %1337 = vmatpush1.msra.mxu0 0.0
    %1338 = vmatprep.subr.mxu0 0.0
    %1339 = vmatpush1.msra.mxu0 0.0
    %1340 = vmatprep.subr.mxu0 0.0
    %1341 = vmatpush1.msra.mxu0 0.0
    %1342 = vmatprep.subr.mxu0 0.0
    %1343 = vmatpush1.msra.mxu0 0.0
    %1344 = vmatprep.subr.mxu0 0.0
    %1345 = vmatpush1.msra.mxu0 0.0
    %1346 = vmatprep.subr.mxu0 0.0
    %1347 = vmatpush1.msra.mxu0 0.0
    %1348 = vmatprep.subr.mxu0 0.0
    %1349 = vmatpush1.msra.mxu0 0.0
    %1350 = vmatprep.subr.mxu0 0.0
    %1351 = vmatpush1.msra.mxu0 0.0
    %1352 = vmatprep.subr.mxu0 0.0
    %1353 = vmatpush1.msra.mxu0 0.0
    %1354 = vmatprep.subr.mxu0 0.0
    %1355 = vmatpush1.msra.mxu0 0.0
    %1356 = vmatprep.subr.mxu0 0.0
    %1357 = vmatpush1.msra.mxu0 0.0
    %1358 = vmatprep.subr.mxu0 0.0
    %1359 = vmatpush1.msra.mxu0 0.0
    %1360 = vmatprep.subr.mxu0 0.0
    %1361 = vmatpush1.msra.mxu0 0.0
    %1362 = vmatprep.subr.mxu0 0.0
    %1363 = vmatpush1.msra.mxu0 0.0
    %1364 = vmatprep.subr.mxu0 0.0
    %1365 = vmatpush1.msra.mxu0 0.0
    %1366 = vmatprep.subr.mxu0 0.0
    %1367 = vmatpush1.msra.mxu0 0.0
    %1368 = vmatprep.subr.mxu0 0.0
    %1369 = vmatpush1.msra.mxu0 0.0
    %1370 = vmatprep.subr.mxu0 0.0
    %1371 = vmatpush1.msra.mxu0 0.0
    %1372 = vmatprep.subr.mxu0 0.0
    %1373 = vmatpush1.msra.mxu0 0.0
    %1374 = vmatprep.subr.mxu0 0.0
    %1375 = vmatpush1.msra.mxu0 0.0
    %1376 = vmatprep.subr.mxu0 0.0
    %1377 = vmatpush1.msra.mxu0 0.0
    %1378 = vmatprep.mubr.f32.mxu0 0.0
    %1379 = vmatmul.mubr.f32.gmra.mrb[0].mxu0 %v1312
    %v1380 = vpop.f32.mrb[0].mxu0
    %v1381 = vadd.f32 %v1309, %v1380
    %v1382 = vpop.f32.mrb[0].mxu0
    %1383 = vdwg.mxu0
    %1385 = vrot.lane.b32.xlu0 %v1301, 96
    %v1386 = vpop.permute.xlu0 %1385
    %v1388 = vadd.f32 %v1381, %v1386
    %v1390 = vsel %vm518, %v1388, 0
    %1392 = vmatprep.subr.mxu0 0.0
    %1393 = vmatpush1.msra.mxu0 1.0
    %1394 = vmatprep.subr.mxu0 0.0
    %1395 = vmatpush1.msra.mxu0 1.0
    %1396 = vmatprep.subr.mxu0 0.0
    %1397 = vmatpush1.msra.mxu0 1.0
    %1398 = vmatprep.subr.mxu0 0.0
    %1399 = vmatpush1.msra.mxu0 1.0
    %1400 = vmatprep.subr.mxu0 0.0
    %1401 = vmatpush1.msra.mxu0 0.0
    %1402 = vmatprep.subr.mxu0 0.0
    %1403 = vmatpush1.msra.mxu0 0.0
    %1404 = vmatprep.subr.mxu0 0.0
    %1405 = vmatpush1.msra.mxu0 0.0
    %1406 = vmatprep.subr.mxu0 0.0
    %1407 = vmatpush1.msra.mxu0 0.0
    %1408 = vmatprep.subr.mxu0 0.0
    %1409 = vmatpush1.msra.mxu0 0.0
    %1410 = vmatprep.subr.mxu0 0.0
    %1411 = vmatpush1.msra.mxu0 0.0
    %1412 = vmatprep.subr.mxu0 0.0
    %1413 = vmatpush1.msra.mxu0 0.0
    %1414 = vmatprep.subr.mxu0 0.0
    %1415 = vmatpush1.msra.mxu0 0.0
    %1416 = vmatprep.subr.mxu0 0.0
    %1417 = vmatpush1.msra.mxu0 0.0
    %1418 = vmatprep.subr.mxu0 0.0
    %1419 = vmatpush1.msra.mxu0 0.0
    %1420 = vmatprep.subr.mxu0 0.0
    %1421 = vmatpush1.msra.mxu0 0.0
    %1422 = vmatprep.subr.mxu0 0.0
    %1423 = vmatpush1.msra.mxu0 0.0
    %1424 = vmatprep.subr.mxu0 0.0
    %1425 = vmatpush1.msra.mxu0 0.0
    %1426 = vmatprep.subr.mxu0 0.0
    %1427 = vmatpush1.msra.mxu0 0.0
    %1428 = vmatprep.subr.mxu0 0.0
    %1429 = vmatpush1.msra.mxu0 0.0
    %1430 = vmatprep.subr.mxu0 0.0
    %1431 = vmatpush1.msra.mxu0 0.0
    %1432 = vmatprep.subr.mxu0 0.0
    %1433 = vmatpush1.msra.mxu0 0.0
    %1434 = vmatprep.subr.mxu0 0.0
    %1435 = vmatpush1.msra.mxu0 0.0
    %1436 = vmatprep.subr.mxu0 0.0
    %1437 = vmatpush1.msra.mxu0 0.0
    %1438 = vmatprep.subr.mxu0 0.0
    %1439 = vmatpush1.msra.mxu0 0.0
    %1440 = vmatprep.subr.mxu0 0.0
    %1441 = vmatpush1.msra.mxu0 0.0
    %1442 = vmatprep.subr.mxu0 0.0
    %1443 = vmatpush1.msra.mxu0 0.0
    %1444 = vmatprep.subr.mxu0 0.0
    %1445 = vmatpush1.msra.mxu0 0.0
    %1446 = vmatprep.subr.mxu0 0.0
    %1447 = vmatpush1.msra.mxu0 0.0
    %1448 = vmatprep.subr.mxu0 0.0
    %1449 = vmatpush1.msra.mxu0 0.0
    %1450 = vmatprep.subr.mxu0 0.0
    %1451 = vmatpush1.msra.mxu0 0.0
    %1452 = vmatprep.subr.mxu0 0.0
    %1453 = vmatpush1.msra.mxu0 0.0
    %1454 = vmatprep.subr.mxu0 0.0
    %1455 = vmatpush1.msra.mxu0 0.0
    %1456 = vmatprep.mubr.f32.mxu0 0.0
    %1457 = vmatmul.mubr.f32.gmra.mrb[0].mxu0 %v1390
    %v1458 = vpop.f32.mrb[0].mxu0
    %v1459 = vadd.f32 0.0, %v1458
    %v1460 = vpop.f32.mrb[0].mxu0
    %1461 = vdwg.mxu0
    %v1462 = vmul.f32 %v1459, 0.03125
    %v1463 = vmul.f32 %v1388, %v1388
    %v1465 = vsel %vm518, %v1463, 0
    %1467 = vmatprep.subr.mxu0 0.0
    %1468 = vmatpush1.msra.mxu0 1.0
    %1469 = vmatprep.subr.mxu0 0.0
    %1470 = vmatpush1.msra.mxu0 1.0
    %1471 = vmatprep.subr.mxu0 0.0
    %1472 = vmatpush1.msra.mxu0 1.0
    %1473 = vmatprep.subr.mxu0 0.0
    %1474 = vmatpush1.msra.mxu0 1.0
    %1475 = vmatprep.subr.mxu0 0.0
    %1476 = vmatpush1.msra.mxu0 0.0
    %1477 = vmatprep.subr.mxu0 0.0
    %1478 = vmatpush1.msra.mxu0 0.0
    %1479 = vmatprep.subr.mxu0 0.0
    %1480 = vmatpush1.msra.mxu0 0.0
    %1481 = vmatprep.subr.mxu0 0.0
    %1482 = vmatpush1.msra.mxu0 0.0
    %1483 = vmatprep.subr.mxu0 0.0
    %1484 = vmatpush1.msra.mxu0 0.0
    %1485 = vmatprep.subr.mxu0 0.0
    %1486 = vmatpush1.msra.mxu0 0.0
    %1487 = vmatprep.subr.mxu0 0.0
    %1488 = vmatpush1.msra.mxu0 0.0
    %1489 = vmatprep.subr.mxu0 0.0
    %1490 = vmatpush1.msra.mxu0 0.0
    %1491 = vmatprep.subr.mxu0 0.0
    %1492 = vmatpush1.msra.mxu0 0.0
    %1493 = vmatprep.subr.mxu0 0.0
    %1494 = vmatpush1.msra.mxu0 0.0
    %1495 = vmatprep.subr.mxu0 0.0
    %1496 = vmatpush1.msra.mxu0 0.0
    %1497 = vmatprep.subr.mxu0 0.0
    %1498 = vmatpush1.msra.mxu0 0.0
    %1499 = vmatprep.subr.mxu0 0.0
    %1500 = vmatpush1.msra.mxu0 0.0
    %1501 = vmatprep.subr.mxu0 0.0
    %1502 = vmatpush1.msra.mxu0 0.0
    %1503 = vmatprep.subr.mxu0 0.0
    %1504 = vmatpush1.msra.mxu0 0.0
    %1505 = vmatprep.subr.mxu0 0.0
    %1506 = vmatpush1.msra.mxu0 0.0
    %1507 = vmatprep.subr.mxu0 0.0
    %1508 = vmatpush1.msra.mxu0 0.0
    %1509 = vmatprep.subr.mxu0 0.0
    %1510 = vmatpush1.msra.mxu0 0.0
    %1511 = vmatprep.subr.mxu0 0.0
    %1512 = vmatpush1.msra.mxu0 0.0
    %1513 = vmatprep.subr.mxu0 0.0
    %1514 = vmatpush1.msra.mxu0 0.0
    %1515 = vmatprep.subr.mxu0 0.0
    %1516 = vmatpush1.msra.mxu0 0.0
    %1517 = vmatprep.subr.mxu0 0.0
    %1518 = vmatpush1.msra.mxu0 0.0
    %1519 = vmatprep.subr.mxu0 0.0
    %1520 = vmatpush1.msra.mxu0 0.0
    %1521 = vmatprep.subr.mxu0 0.0
    %1522 = vmatpush1.msra.mxu0 0.0
    %1523 = vmatprep.subr.mxu0 0.0
    %1524 = vmatpush1.msra.mxu0 0.0
    %1525 = vmatprep.subr.mxu0 0.0
    %1526 = vmatpush1.msra.mxu0 0.0
    %1527 = vmatprep.subr.mxu0 0.0
    %1528 = vmatpush1.msra.mxu0 0.0
    %1529 = vmatprep.subr.mxu0 0.0
    %1530 = vmatpush1.msra.mxu0 0.0
    %1531 = vmatprep.mubr.f32.mxu0 0.0
    %1532 = vmatmul.mubr.f32.gmra.mrb[0].mxu0 %v1465
    %v1533 = vpop.f32.mrb[0].mxu0
    %v1534 = vadd.f32 0.0, %v1533
    %v1535 = vpop.f32.mrb[0].mxu0
    %1536 = vdwg.mxu0
    %v1537 = vmul.f32 %v1534, 0.03125
    %v1538 = vmul.f32 %v1462, %v1462
    %v1539 = vsub.f32 %v1537, %v1538
    %v1540 = vmax.f32 %v1539, 0.0
    %1542 = vset.pattern.permute.xlu0 0
    %1543 = vperm.xlu0 %1542, %v1462
    %v1544 = vpop.permute.xlu0 %1543
    %v1546 = vsub.f32 %v1388, %v1544
    %v1547 = vadd.f32 %v1540, 1e-05
    %v1548 = vrsqrt.pop %v1547
    %1550 = vset.pattern.permute.xlu0 0
    %1551 = vperm.xlu0 %1550, %v1548
    %v1552 = vpop.permute.xlu0 %1551
    %v1554 = vmul.f32 %v1546, %v1552
    %v1556 = vlaneseq
    %v1557 = vshrl.u32 %v1556, 7
    %v1558 = vsub.s32 0, %v1557
    %v1559 = vrot.slane %v1223, %v1558
    %v1561 = vmul.f32 %v1554, %v1559
    %v1563 = vlaneseq
    %v1564 = vshrl.u32 %v1563, 7
    %v1565 = vsub.s32 0, %v1564
    %v1566 = vrot.slane %v1224, %v1565
    %v1568 = vadd.f32 %v1561, %v1566
    %vm1569 = vcmask 254976
    %1570 = vst.msk [vmem:[%s79] sm:$0x3] %vm1569, %v1568
    %v1571 = vld [vmem:[%s3] sm:$0x3]
    %v1572 = vld [vmem:[%s41] sm:$0xff]
    %v1573 = vld [vmem:[%s41 + $0x8] sm:$0xff]
    %v1574 = vld [vmem:[%s41 + $0x10] sm:$0xff]
    %v1575 = vld [vmem:[%s41 + $0x18] sm:$0xff]
    %v1576 = vld [vmem:[%s41 + $0x20] sm:$0xff]
    %v1577 = vld [vmem:[%s41 + $0x28] sm:$0xff]
    %v1578 = vld [vmem:[%s41 + $0x30] sm:$0xff]
    %v1579 = vld [vmem:[%s41 + $0x38] sm:$0xff]
    %v1580 = vld [vmem:[#allocation30] sm:$0x1]
    %v1582 = vlaneseq
    %v1583 = vshrl.u32 %v1582, 7
    %v1584 = vsub.s32 0, %v1583
    %v1585 = vrot.slane %v1580, %v1584
    %vm1587 = vcmask 523264
    %v1589 = vsel %vm1587, %v1571, 0
    %1591 = vmatprep.subr.mxu0 0.0
    %1592 = vmatpush1.msra.mxu0 %v1572
    %1593 = vmatprep.subr.mxu0 0.0
    %1594 = vmatpush1.msra.mxu0 %v1573
    %1595 = vmatprep.subr.mxu0 0.0
    %1596 = vmatpush1.msra.mxu0 %v1574
    %1597 = vmatprep.subr.mxu0 0.0
    %1598 = vmatpush1.msra.mxu0 %v1575
    %1599 = vmatprep.subr.mxu0 0.0
    %1600 = vmatpush1.msra.mxu0 %v1576
    %1601 = vmatprep.subr.mxu0 0.0
    %1602 = vmatpush1.msra.mxu0 %v1577
    %1603 = vmatprep.subr.mxu0 0.0
    %1604 = vmatpush1.msra.mxu0 %v1578
    %1605 = vmatprep.subr.mxu0 0.0
    %1606 = vmatpush1.msra.mxu0 %v1579
    %1607 = vmatprep.subr.mxu0 0.0
    %1608 = vmatpush1.msra.mxu0 0.0
    %1609 = vmatprep.subr.mxu0 0.0
    %1610 = vmatpush1.msra.mxu0 0.0
    %1611 = vmatprep.subr.mxu0 0.0
    %1612 = vmatpush1.msra.mxu0 0.0
    %1613 = vmatprep.subr.mxu0 0.0
    %1614 = vmatpush1.msra.mxu0 0.0
    %1615 = vmatprep.subr.mxu0 0.0
    %1616 = vmatpush1.msra.mxu0 0.0
    %1617 = vmatprep.subr.mxu0 0.0
    %1618 = vmatpush1.msra.mxu0 0.0
    %1619 = vmatprep.subr.mxu0 0.0
    %1620 = vmatpush1.msra.mxu0 0.0
    %1621 = vmatprep.subr.mxu0 0.0
    %1622 = vmatpush1.msra.mxu0 0.0
    %1623 = vmatprep.subr.mxu0 0.0
    %1624 = vmatpush1.msra.mxu0 0.0
    %1625 = vmatprep.subr.mxu0 0.0
    %1626 = vmatpush1.msra.mxu0 0.0
    %1627 = vmatprep.subr.mxu0 0.0
    %1628 = vmatpush1.msra.mxu0 0.0
    %1629 = vmatprep.subr.mxu0 0.0
    %1630 = vmatpush1.msra.mxu0 0.0
    %1631 = vmatprep.subr.mxu0 0.0
    %1632 = vmatpush1.msra.mxu0 0.0
    %1633 = vmatprep.subr.mxu0 0.0
    %1634 = vmatpush1.msra.mxu0 0.0
    %1635 = vmatprep.subr.mxu0 0.0
    %1636 = vmatpush1.msra.mxu0 0.0
    %1637 = vmatprep.subr.mxu0 0.0
    %1638 = vmatpush1.msra.mxu0 0.0
    %1639 = vmatprep.subr.mxu0 0.0
    %1640 = vmatpush1.msra.mxu0 0.0
    %1641 = vmatprep.subr.mxu0 0.0
    %1642 = vmatpush1.msra.mxu0 0.0
    %1643 = vmatprep.subr.mxu0 0.0
    %1644 = vmatpush1.msra.mxu0 0.0
    %1645 = vmatprep.subr.mxu0 0.0
    %1646 = vmatpush1.msra.mxu0 0.0
    %1647 = vmatprep.subr.mxu0 0.0
    %1648 = vmatpush1.msra.mxu0 0.0
    %1649 = vmatprep.subr.mxu0 0.0
    %1650 = vmatpush1.msra.mxu0 0.0
    %1651 = vmatprep.subr.mxu0 0.0
    %1652 = vmatpush1.msra.mxu0 0.0
    %1653 = vmatprep.subr.mxu0 0.0
    %1654 = vmatpush1.msra.mxu0 0.0
    %1655 = vmatprep.mubr.f32.mxu0 0.0
    %1656 = vmatmul.mubr.f32.gmra.mrb[0].mxu0 %v1589
    %v1657 = vpop.f32.mrb[0].mxu0
    %v1658 = vadd.f32 %v1585, %v1657
    %v1659 = vpop.f32.mrb[0].mxu0
    %1660 = vdwg.mxu0
    %v1661 = vmax.f32 %v1658, 0.0
    %v1662 = vld [vmem:[#allocation33] sm:$0xff]
    %v1663 = vld [vmem:[#allocation33 + $0x8] sm:$0xff]
    %v1664 = vld [vmem:[#allocation33 + $0x10] sm:$0xff]
    %v1665 = vld [vmem:[#allocation33 + $0x18] sm:$0xff]
    %v1666 = vld [vmem:[#allocation33 + $0x20] sm:$0xff]
    %v1667 = vld [vmem:[#allocation33 + $0x28] sm:$0xff]
    %v1668 = vld [vmem:[#allocation33 + $0x30] sm:$0xff]
    %v1669 = vld [vmem:[#allocation33 + $0x38] sm:$0xff]
    %v1670 = vld [vmem:[#allocation34] sm:$0x1]
    %v1672 = vlaneseq
    %v1673 = vshrl.u32 %v1672, 7
    %v1674 = vsub.s32 0, %v1673
    %v1675 = vrot.slane %v1670, %v1674
    %v1678 = vsel %vm1587, %v1661, 0
    %1680 = vmatprep.subr.mxu0 0.0
    %1681 = vmatpush1.msra.mxu0 %v1662
    %1682 = vmatprep.subr.mxu0 0.0
    %1683 = vmatpush1.msra.mxu0 %v1663
    %1684 = vmatprep.subr.mxu0 0.0
    %1685 = vmatpush1.msra.mxu0 %v1664
    %1686 = vmatprep.subr.mxu0 0.0
    %1687 = vmatpush1.msra.mxu0 %v1665
    %1688 = vmatprep.subr.mxu0 0.0
    %1689 = vmatpush1.msra.mxu0 %v1666
    %1690 = vmatprep.subr.mxu0 0.0
    %1691 = vmatpush1.msra.mxu0 %v1667
    %1692 = vmatprep.subr.mxu0 0.0
    %1693 = vmatpush1.msra.mxu0 %v1668
    %1694 = vmatprep.subr.mxu0 0.0
    %1695 = vmatpush1.msra.mxu0 %v1669
    %1696 = vmatprep.subr.mxu0 0.0
    %1697 = vmatpush1.msra.mxu0 0.0
    %1698 = vmatprep.subr.mxu0 0.0
    %1699 = vmatpush1.msra.mxu0 0.0
    %1700 = vmatprep.subr.mxu0 0.0
    %1701 = vmatpush1.msra.mxu0 0.0
    %1702 = vmatprep.subr.mxu0 0.0
    %1703 = vmatpush1.msra.mxu0 0.0
    %1704 = vmatprep.subr.mxu0 0.0
    %1705 = vmatpush1.msra.mxu0 0.0
    %1706 = vmatprep.subr.mxu0 0.0
    %1707 = vmatpush1.msra.mxu0 0.0
    %1708 = vmatprep.subr.mxu0 0.0
    %1709 = vmatpush1.msra.mxu0 0.0
    %1710 = vmatprep.subr.mxu0 0.0
    %1711 = vmatpush1.msra.mxu0 0.0
    %1712 = vmatprep.subr.mxu0 0.0
    %1713 = vmatpush1.msra.mxu0 0.0
    %1714 = vmatprep.subr.mxu0 0.0
    %1715 = vmatpush1.msra.mxu0 0.0
    %1716 = vmatprep.subr.mxu0 0.0
    %1717 = vmatpush1.msra.mxu0 0.0
    %1718 = vmatprep.subr.mxu0 0.0
    %1719 = vmatpush1.msra.mxu0 0.0
    %1720 = vmatprep.subr.mxu0 0.0
    %1721 = vmatpush1.msra.mxu0 0.0
    %1722 = vmatprep.subr.mxu0 0.0
    %1723 = vmatpush1.msra.mxu0 0.0
    %1724 = vmatprep.subr.mxu0 0.0
    %1725 = vmatpush1.msra.mxu0 0.0
    %1726 = vmatprep.subr.mxu0 0.0
    %1727 = vmatpush1.msra.mxu0 0.0
    %1728 = vmatprep.subr.mxu0 0.0
    %1729 = vmatpush1.msra.mxu0 0.0
    %1730 = vmatprep.subr.mxu0 0.0
    %1731 = vmatpush1.msra.mxu0 0.0
    %1732 = vmatprep.subr.mxu0 0.0
    %1733 = vmatpush1.msra.mxu0 0.0
    %1734 = vmatprep.subr.mxu0 0.0
    %1735 = vmatpush1.msra.mxu0 0.0
    %1736 = vmatprep.subr.mxu0 0.0
    %1737 = vmatpush1.msra.mxu0 0.0
    %1738 = vmatprep.subr.mxu0 0.0
    %1739 = vmatpush1.msra.mxu0 0.0
    %1740 = vmatprep.subr.mxu0 0.0
    %1741 = vmatpush1.msra.mxu0 0.0
    %1742 = vmatprep.subr.mxu0 0.0
    %1743 = vmatpush1.msra.mxu0 0.0
    %1744 = vmatprep.mubr.f32.mxu0 0.0
    %1745 = vmatmul.mubr.f32.gmra.mrb[0].mxu0 %v1678
    %v1746 = vpop.f32.mrb[0].mxu0
    %v1747 = vadd.f32 %v1675, %v1746
    %v1748 = vpop.f32.mrb[0].mxu0
    %1749 = vdwg.mxu0
    %v1750 = vld [vmem:[%s43] sm:$0xff]
    %v1751 = vld [vmem:[%s43 + $0x8] sm:$0xff]
    %v1752 = vld [vmem:[%s43 + $0x10] sm:$0xff]
    %v1753 = vld [vmem:[%s43 + $0x18] sm:$0xff]
    %v1754 = vld [vmem:[%s43 + $0x20] sm:$0xff]
    %v1755 = vld [vmem:[%s43 + $0x28] sm:$0xff]
    %v1756 = vld [vmem:[%s43 + $0x30] sm:$0xff]
    %v1757 = vld [vmem:[%s43 + $0x38] sm:$0xff]
    %1758 = vmatprep.subr.mxu0 0.0
    %1759 = vmatpush1.msra.mxu0 %v1750
    %1760 = vmatprep.subr.mxu0 0.0
    %1761 = vmatpush1.msra.mxu0 %v1751
    %1762 = vmatprep.subr.mxu0 0.0
    %1763 = vmatpush1.msra.mxu0 %v1752
    %1764 = vmatprep.subr.mxu0 0.0
    %1765 = vmatpush1.msra.mxu0 %v1753
    %1766 = vmatprep.subr.mxu0 0.0
    %1767 = vmatpush1.msra.mxu0 %v1754
    %1768 = vmatprep.subr.mxu0 0.0
    %1769 = vmatpush1.msra.mxu0 %v1755
    %1770 = vmatprep.subr.mxu0 0.0
    %1771 = vmatpush1.msra.mxu0 %v1756
    %1772 = vmatprep.subr.mxu0 0.0
    %1773 = vmatpush1.msra.mxu0 %v1757
    %1774 = vmatprep.subr.mxu0 0.0
    %1775 = vmatpush1.msra.mxu0 0.0
    %1776 = vmatprep.subr.mxu0 0.0
    %1777 = vmatpush1.msra.mxu0 0.0
    %1778 = vmatprep.subr.mxu0 0.0
    %1779 = vmatpush1.msra.mxu0 0.0
    %1780 = vmatprep.subr.mxu0 0.0
    %1781 = vmatpush1.msra.mxu0 0.0
    %1782 = vmatprep.subr.mxu0 0.0
    %1783 = vmatpush1.msra.mxu0 0.0
    %1784 = vmatprep.subr.mxu0 0.0
    %1785 = vmatpush1.msra.mxu0 0.0
    %1786 = vmatprep.subr.mxu0 0.0
    %1787 = vmatpush1.msra.mxu0 0.0
    %1788 = vmatprep.subr.mxu0 0.0
    %1789 = vmatpush1.msra.mxu0 0.0
    %1790 = vmatprep.subr.mxu0 0.0
    %1791 = vmatpush1.msra.mxu0 0.0
    %1792 = vmatprep.subr.mxu0 0.0
    %1793 = vmatpush1.msra.mxu0 0.0
    %1794 = vmatprep.subr.mxu0 0.0
    %1795 = vmatpush1.msra.mxu0 0.0
    %1796 = vmatprep.subr.mxu0 0.0
    %1797 = vmatpush1.msra.mxu0 0.0
    %1798 = vmatprep.subr.mxu0 0.0
    %1799 = vmatpush1.msra.mxu0 0.0
    %1800 = vmatprep.subr.mxu0 0.0
    %1801 = vmatpush1.msra.mxu0 0.0
    %1802 = vmatprep.subr.mxu0 0.0
    %1803 = vmatpush1.msra.mxu0 0.0
    %1804 = vmatprep.subr.mxu0 0.0
    %1805 = vmatpush1.msra.mxu0 0.0
    %1806 = vmatprep.subr.mxu0 0.0
    %1807 = vmatpush1.msra.mxu0 0.0
    %1808 = vmatprep.subr.mxu0 0.0
    %1809 = vmatpush1.msra.mxu0 0.0
    %1810 = vmatprep.subr.mxu0 0.0
    %1811 = vmatpush1.msra.mxu0 0.0
    %1812 = vmatprep.subr.mxu0 0.0
    %1813 = vmatpush1.msra.mxu0 0.0
    %1814 = vmatprep.subr.mxu0 0.0
    %1815 = vmatpush1.msra.mxu0 0.0
    %1816 = vmatprep.subr.mxu0 0.0
    %1817 = vmatpush1.msra.mxu0 0.0
    %1818 = vmatprep.subr.mxu0 0.0
    %1819 = vmatpush1.msra.mxu0 0.0
    %1820 = vmatprep.subr.mxu0 0.0
    %1821 = vmatpush1.msra.mxu0 0.0
    %1822 = vmatprep.mubr.f32.mxu0 0.0
    %1823 = vmatmul.mubr.f32.gmra.mrb[0].mxu0 %v1589
    %v1824 = vpop.f32.mrb[0].mxu0
    %v1825 = vadd.f32 0.0, %v1824
    %v1826 = vpop.f32.mrb[0].mxu0
    %1827 = vdwg.mxu0
    %v1828 = vadd.f32 %v1747, %v1825
    %v1829 = vld [vmem:[#allocation31] sm:$0x1]
    %v1831 = vlaneseq
    %v1832 = vshrl.u32 %v1831, 7
    %v1833 = vsub.s32 0, %v1832
    %v1834 = vrot.slane %v1829, %v1833
    %v1836 = vadd.f32 %v1828, %v1834
    %v1837 = vld [vmem:[%s57] sm:$0xff]
    %v1838 = vld [vmem:[%s57 + $0x8] sm:$0xff]
    %v1839 = vld [vmem:[%s57 + $0x10] sm:$0xff]
    %v1840 = vld [vmem:[%s57 + $0x18] sm:$0xff]
    %v1841 = vld [vmem:[%s57 + $0x20] sm:$0xff]
    %v1842 = vld [vmem:[%s57 + $0x28] sm:$0xff]
    %v1843 = vld [vmem:[%s57 + $0x30] sm:$0xff]
    %v1844 = vld [vmem:[%s57 + $0x38] sm:$0xff]
    %v1845 = vld [vmem:[%s59] sm:$0xf]
    %v1846 = vld [vmem:[#allocation36] sm:$0x1]
    %v1847 = vld [vmem:[#allocation37] sm:$0x1]
    %v1849 = vsel %vm1587, %v1836, 0
    %1851 = vmatprep.subr.mxu0 0.0
    %1852 = vmatpush1.msra.mxu0 %v1837
    %1853 = vmatprep.subr.mxu0 0.0
    %1854 = vmatpush1.msra.mxu0 %v1838
    %1855 = vmatprep.subr.mxu0 0.0
    %1856 = vmatpush1.msra.mxu0 %v1839
    %1857 = vmatprep.subr.mxu0 0.0
    %1858 = vmatpush1.msra.mxu0 %v1840
    %1859 = vmatprep.subr.mxu0 0.0
    %1860 = vmatpush1.msra.mxu0 %v1841
    %1861 = vmatprep.subr.mxu0 0.0
    %1862 = vmatpush1.msra.mxu0 %v1842
    %1863 = vmatprep.subr.mxu0 0.0
    %1864 = vmatpush1.msra.mxu0 %v1843
    %1865 = vmatprep.subr.mxu0 0.0
    %1866 = vmatpush1.msra.mxu0 %v1844
    %1867 = vmatprep.subr.mxu0 0.0
    %1868 = vmatpush1.msra.mxu0 0.0
    %1869 = vmatprep.subr.mxu0 0.0
    %1870 = vmatpush1.msra.mxu0 0.0
    %1871 = vmatprep.subr.mxu0 0.0
    %1872 = vmatpush1.msra.mxu0 0.0
    %1873 = vmatprep.subr.mxu0 0.0
    %1874 = vmatpush1.msra.mxu0 0.0
    %1875 = vmatprep.subr.mxu0 0.0
    %1876 = vmatpush1.msra.mxu0 0.0
    %1877 = vmatprep.subr.mxu0 0.0
    %1878 = vmatpush1.msra.mxu0 0.0
    %1879 = vmatprep.subr.mxu0 0.0
    %1880 = vmatpush1.msra.mxu0 0.0
    %1881 = vmatprep.subr.mxu0 0.0
    %1882 = vmatpush1.msra.mxu0 0.0
    %1883 = vmatprep.subr.mxu0 0.0
    %1884 = vmatpush1.msra.mxu0 0.0
    %1885 = vmatprep.subr.mxu0 0.0
    %1886 = vmatpush1.msra.mxu0 0.0
    %1887 = vmatprep.subr.mxu0 0.0
    %1888 = vmatpush1.msra.mxu0 0.0
    %1889 = vmatprep.subr.mxu0 0.0
    %1890 = vmatpush1.msra.mxu0 0.0
    %1891 = vmatprep.subr.mxu0 0.0
    %1892 = vmatpush1.msra.mxu0 0.0
    %1893 = vmatprep.subr.mxu0 0.0
    %1894 = vmatpush1.msra.mxu0 0.0
    %1895 = vmatprep.subr.mxu0 0.0
    %1896 = vmatpush1.msra.mxu0 0.0
    %1897 = vmatprep.subr.mxu0 0.0
    %1898 = vmatpush1.msra.mxu0 0.0
    %1899 = vmatprep.subr.mxu0 0.0
    %1900 = vmatpush1.msra.mxu0 0.0
    %1901 = vmatprep.subr.mxu0 0.0
    %1902 = vmatpush1.msra.mxu0 0.0
    %1903 = vmatprep.subr.mxu0 0.0
    %1904 = vmatpush1.msra.mxu0 0.0
    %1905 = vmatprep.subr.mxu0 0.0
    %1906 = vmatpush1.msra.mxu0 0.0
    %1907 = vmatprep.subr.mxu0 0.0
    %1908 = vmatpush1.msra.mxu0 0.0
    %1909 = vmatprep.subr.mxu0 0.0
    %1910 = vmatpush1.msra.mxu0 0.0
    %1911 = vmatprep.subr.mxu0 0.0
    %1912 = vmatpush1.msra.mxu0 0.0
    %1913 = vmatprep.subr.mxu0 0.0
    %1914 = vmatpush1.msra.mxu0 0.0
    %1915 = vmatprep.mubr.f32.mxu0 0.0
    %1916 = vmatmul.mubr.f32.gmra.mrb[0].mxu0 %v1849
    %v1917 = vpop.f32.mrb[0].mxu0
    %v1918 = vadd.f32 0.0, %v1917
    %v1919 = vpop.f32.mrb[0].mxu0
    %1920 = vdwg.mxu0
    %v1921 = vmul.f32 %v1918, 0.0625
    %v1922 = vmul.f32 %v1836, %v1836
    %v1924 = vsel %vm1587, %v1922, 0
    %1926 = vmatprep.subr.mxu0 0.0
    %1927 = vmatpush1.msra.mxu0 %v1837
    %1928 = vmatprep.subr.mxu0 0.0
    %1929 = vmatpush1.msra.mxu0 %v1838
    %1930 = vmatprep.subr.mxu0 0.0
    %1931 = vmatpush1.msra.mxu0 %v1839
    %1932 = vmatprep.subr.mxu0 0.0
    %1933 = vmatpush1.msra.mxu0 %v1840
    %1934 = vmatprep.subr.mxu0 0.0
    %1935 = vmatpush1.msra.mxu0 %v1841
    %1936 = vmatprep.subr.mxu0 0.0
    %1937 = vmatpush1.msra.mxu0 %v1842
    %1938 = vmatprep.subr.mxu0 0.0
    %1939 = vmatpush1.msra.mxu0 %v1843
    %1940 = vmatprep.subr.mxu0 0.0
    %1941 = vmatpush1.msra.mxu0 %v1844
    %1942 = vmatprep.subr.mxu0 0.0
    %1943 = vmatpush1.msra.mxu0 0.0
    %1944 = vmatprep.subr.mxu0 0.0
    %1945 = vmatpush1.msra.mxu0 0.0
    %1946 = vmatprep.subr.mxu0 0.0
    %1947 = vmatpush1.msra.mxu0 0.0
    %1948 = vmatprep.subr.mxu0 0.0
    %1949 = vmatpush1.msra.mxu0 0.0
    %1950 = vmatprep.subr.mxu0 0.0
    %1951 = vmatpush1.msra.mxu0 0.0
    %1952 = vmatprep.subr.mxu0 0.0
    %1953 = vmatpush1.msra.mxu0 0.0
    %1954 = vmatprep.subr.mxu0 0.0
    %1955 = vmatpush1.msra.mxu0 0.0
    %1956 = vmatprep.subr.mxu0 0.0
    %1957 = vmatpush1.msra.mxu0 0.0
    %1958 = vmatprep.subr.mxu0 0.0
    %1959 = vmatpush1.msra.mxu0 0.0
    %1960 = vmatprep.subr.mxu0 0.0
    %1961 = vmatpush1.msra.mxu0 0.0
    %1962 = vmatprep.subr.mxu0 0.0
    %1963 = vmatpush1.msra.mxu0 0.0
    %1964 = vmatprep.subr.mxu0 0.0
    %1965 = vmatpush1.msra.mxu0 0.0
    %1966 = vmatprep.subr.mxu0 0.0
    %1967 = vmatpush1.msra.mxu0 0.0
    %1968 = vmatprep.subr.mxu0 0.0
    %1969 = vmatpush1.msra.mxu0 0.0
    %1970 = vmatprep.subr.mxu0 0.0
    %1971 = vmatpush1.msra.mxu0 0.0
    %1972 = vmatprep.subr.mxu0 0.0
    %1973 = vmatpush1.msra.mxu0 0.0
    %1974 = vmatprep.subr.mxu0 0.0
    %1975 = vmatpush1.msra.mxu0 0.0
    %1976 = vmatprep.subr.mxu0 0.0
    %1977 = vmatpush1.msra.mxu0 0.0
    %1978 = vmatprep.subr.mxu0 0.0
    %1979 = vmatpush1.msra.mxu0 0.0
    %1980 = vmatprep.subr.mxu0 0.0
    %1981 = vmatpush1.msra.mxu0 0.0
    %1982 = vmatprep.subr.mxu0 0.0
    %1983 = vmatpush1.msra.mxu0 0.0
    %1984 = vmatprep.subr.mxu0 0.0
    %1985 = vmatpush1.msra.mxu0 0.0
    %1986 = vmatprep.subr.mxu0 0.0
    %1987 = vmatpush1.msra.mxu0 0.0
    %1988 = vmatprep.subr.mxu0 0.0
    %1989 = vmatpush1.msra.mxu0 0.0
    %1990 = vmatprep.mubr.f32.mxu0 0.0
    %1991 = vmatmul.mubr.f32.gmra.mrb[0].mxu0 %v1924
    %v1992 = vpop.f32.mrb[0].mxu0
    %v1993 = vadd.f32 0.0, %v1992
    %v1994 = vpop.f32.mrb[0].mxu0
    %1995 = vdwg.mxu0
    %v1996 = vmul.f32 %v1993, 0.0625
    %v1997 = vmul.f32 %v1921, %v1921
    %v1998 = vsub.f32 %v1996, %v1997
    %v1999 = vmax.f32 %v1998, 0.0
    %v2000 = vadd.f32 %v1999, 1e-05
    %v2001 = vrsqrt.pop %v2000
    %vm2002 = vcmask 31744
    %v2004 = vsel %vm2002, %v1921, 0
    %vm2006 = vcmask 1043456
    %v2008 = vsel %vm2006, %v1845, 0
    %2010 = vmatprep.subr.mxu0 0.0
    %2011 = vmatpush1.msra.mxu0 %v2008
    %2012 = vmatprep.subr.mxu0 0.0
    %2013 = vmatpush1.msra.mxu0 0.0
    %2014 = vmatprep.subr.mxu0 0.0
    %2015 = vmatpush1.msra.mxu0 0.0
    %2016 = vmatprep.subr.mxu0 0.0
    %2017 = vmatpush1.msra.mxu0 0.0
    %2018 = vmatprep.subr.mxu0 0.0
    %2019 = vmatpush1.msra.mxu0 0.0
    %2020 = vmatprep.subr.mxu0 0.0
    %2021 = vmatpush1.msra.mxu0 0.0
    %2022 = vmatprep.subr.mxu0 0.0
    %2023 = vmatpush1.msra.mxu0 0.0
    %2024 = vmatprep.subr.mxu0 0.0
    %2025 = vmatpush1.msra.mxu0 0.0
    %2026 = vmatprep.subr.mxu0 0.0
    %2027 = vmatpush1.msra.mxu0 0.0
    %2028 = vmatprep.subr.mxu0 0.0
    %2029 = vmatpush1.msra.mxu0 0.0
    %2030 = vmatprep.subr.mxu0 0.0
    %2031 = vmatpush1.msra.mxu0 0.0
    %2032 = vmatprep.subr.mxu0 0.0
    %2033 = vmatpush1.msra.mxu0 0.0
    %2034 = vmatprep.subr.mxu0 0.0
    %2035 = vmatpush1.msra.mxu0 0.0
    %2036 = vmatprep.subr.mxu0 0.0
    %2037 = vmatpush1.msra.mxu0 0.0
    %2038 = vmatprep.subr.mxu0 0.0
    %2039 = vmatpush1.msra.mxu0 0.0
    %2040 = vmatprep.subr.mxu0 0.0
    %2041 = vmatpush1.msra.mxu0 0.0
    %2042 = vmatprep.subr.mxu0 0.0
    %2043 = vmatpush1.msra.mxu0 0.0
    %2044 = vmatprep.subr.mxu0 0.0
    %2045 = vmatpush1.msra.mxu0 0.0
    %2046 = vmatprep.subr.mxu0 0.0
    %2047 = vmatpush1.msra.mxu0 0.0
    %2048 = vmatprep.subr.mxu0 0.0
    %2049 = vmatpush1.msra.mxu0 0.0
    %2050 = vmatprep.subr.mxu0 0.0
    %2051 = vmatpush1.msra.mxu0 0.0
    %2052 = vmatprep.subr.mxu0 0.0
    %2053 = vmatpush1.msra.mxu0 0.0
    %2054 = vmatprep.subr.mxu0 0.0
    %2055 = vmatpush1.msra.mxu0 0.0
    %2056 = vmatprep.subr.mxu0 0.0
    %2057 = vmatpush1.msra.mxu0 0.0
    %2058 = vmatprep.subr.mxu0 0.0
    %2059 = vmatpush1.msra.mxu0 0.0
    %2060 = vmatprep.subr.mxu0 0.0
    %2061 = vmatpush1.msra.mxu0 0.0
    %2062 = vmatprep.subr.mxu0 0.0
    %2063 = vmatpush1.msra.mxu0 0.0
    %2064 = vmatprep.subr.mxu0 0.0
    %2065 = vmatpush1.msra.mxu0 0.0
    %2066 = vmatprep.subr.mxu0 0.0
    %2067 = vmatpush1.msra.mxu0 0.0
    %2068 = vmatprep.subr.mxu0 0.0
    %2069 = vmatpush1.msra.mxu0 0.0
    %2070 = vmatprep.subr.mxu0 0.0
    %2071 = vmatpush1.msra.mxu0 0.0
    %2072 = vmatprep.subr.mxu0 0.0
    %2073 = vmatpush1.msra.mxu0 0.0
    %2074 = vmatprep.mubr.f32.mxu0 0.0
    %2075 = vmatmul.mubr.f32.gmra.mrb[0].mxu0 %v2004
    %v2076 = vpop.f32.mrb[0].mxu0
    %v2077 = vadd.f32 0.0, %v2076
    %v2078 = vpop.f32.mrb[0].mxu0
    %2079 = vdwg.mxu0
    %v2081 = vsel %vm2002, %v2001, 0
    %2083 = vmatprep.subr.mxu0 0.0
    %2084 = vmatpush1.msra.mxu0 %v2008
    %2085 = vmatprep.subr.mxu0 0.0
    %2086 = vmatpush1.msra.mxu0 0.0
    %2087 = vmatprep.subr.mxu0 0.0
    %2088 = vmatpush1.msra.mxu0 0.0
    %2089 = vmatprep.subr.mxu0 0.0
    %2090 = vmatpush1.msra.mxu0 0.0
    %2091 = vmatprep.subr.mxu0 0.0
    %2092 = vmatpush1.msra.mxu0 0.0
    %2093 = vmatprep.subr.mxu0 0.0
    %2094 = vmatpush1.msra.mxu0 0.0
    %2095 = vmatprep.subr.mxu0 0.0
    %2096 = vmatpush1.msra.mxu0 0.0
    %2097 = vmatprep.subr.mxu0 0.0
    %2098 = vmatpush1.msra.mxu0 0.0
    %2099 = vmatprep.subr.mxu0 0.0
    %2100 = vmatpush1.msra.mxu0 0.0
    %2101 = vmatprep.subr.mxu0 0.0
    %2102 = vmatpush1.msra.mxu0 0.0
    %2103 = vmatprep.subr.mxu0 0.0
    %2104 = vmatpush1.msra.mxu0 0.0
    %2105 = vmatprep.subr.mxu0 0.0
    %2106 = vmatpush1.msra.mxu0 0.0
    %2107 = vmatprep.subr.mxu0 0.0
    %2108 = vmatpush1.msra.mxu0 0.0
    %2109 = vmatprep.subr.mxu0 0.0
    %2110 = vmatpush1.msra.mxu0 0.0
    %2111 = vmatprep.subr.mxu0 0.0
    %2112 = vmatpush1.msra.mxu0 0.0
    %2113 = vmatprep.subr.mxu0 0.0
    %2114 = vmatpush1.msra.mxu0 0.0
    %2115 = vmatprep.subr.mxu0 0.0
    %2116 = vmatpush1.msra.mxu0 0.0
    %2117 = vmatprep.subr.mxu0 0.0
    %2118 = vmatpush1.msra.mxu0 0.0
    %2119 = vmatprep.subr.mxu0 0.0
    %2120 = vmatpush1.msra.mxu0 0.0
    %2121 = vmatprep.subr.mxu0 0.0
    %2122 = vmatpush1.msra.mxu0 0.0
    %2123 = vmatprep.subr.mxu0 0.0
    %2124 = vmatpush1.msra.mxu0 0.0
    %2125 = vmatprep.subr.mxu0 0.0
    %2126 = vmatpush1.msra.mxu0 0.0
    %2127 = vmatprep.subr.mxu0 0.0
    %2128 = vmatpush1.msra.mxu0 0.0
    %2129 = vmatprep.subr.mxu0 0.0
    %2130 = vmatpush1.msra.mxu0 0.0
    %2131 = vmatprep.subr.mxu0 0.0
    %2132 = vmatpush1.msra.mxu0 0.0
    %2133 = vmatprep.subr.mxu0 0.0
    %2134 = vmatpush1.msra.mxu0 0.0
    %2135 = vmatprep.subr.mxu0 0.0
    %2136 = vmatpush1.msra.mxu0 0.0
    %2137 = vmatprep.subr.mxu0 0.0
    %2138 = vmatpush1.msra.mxu0 0.0
    %2139 = vmatprep.subr.mxu0 0.0
    %2140 = vmatpush1.msra.mxu0 0.0
    %2141 = vmatprep.subr.mxu0 0.0
    %2142 = vmatpush1.msra.mxu0 0.0
    %2143 = vmatprep.subr.mxu0 0.0
    %2144 = vmatpush1.msra.mxu0 0.0
    %2145 = vmatprep.subr.mxu0 0.0
    %2146 = vmatpush1.msra.mxu0 0.0
    %2147 = vmatprep.mubr.f32.mxu0 0.0
    %2148 = vmatmul.mubr.f32.gmra.mrb[0].mxu0 %v2081
    %v2149 = vpop.f32.mrb[0].mxu0
    %v2150 = vadd.f32 0.0, %v2149
    %v2151 = vpop.f32.mrb[0].mxu0
    %2152 = vdwg.mxu0
    %v2153 = vsub.f32 %v1836, %v2077
    %v2154 = vmul.f32 %v2153, %v2150
    %v2156 = vlaneseq
    %v2157 = vshrl.u32 %v2156, 7
    %v2158 = vsub.s32 0, %v2157
    %v2159 = vrot.slane %v1846, %v2158
    %v2161 = vmul.f32 %v2154, %v2159
    %v2163 = vlaneseq
    %v2164 = vshrl.u32 %v2163, 7
    %v2165 = vsub.s32 0, %v2164
    %v2166 = vrot.slane %v1847, %v2165
    %v2168 = vadd.f32 %v2161, %v2166
    %2170 = vrot.lane.b32.xlu0 %v2168, 32
    %v2171 = vpop.permute.xlu0 %2170
    %vm2173 = vcmask 779520
    %2174 = vst.msk [vmem:[%s79] sm:$0x3] %vm2173, %v2171
    %v2175 = vld [vmem:[%s61] sm:$0xff]
    %v2176 = vld [vmem:[%s61 + $0x8] sm:$0xff]
    %v2177 = vld [vmem:[%s61 + $0x10] sm:$0xff]
    %v2178 = vld [vmem:[%s61 + $0x18] sm:$0xff]
    %v2179 = vld [vmem:[%s61 + $0x20] sm:$0xff]
    %v2180 = vld [vmem:[%s61 + $0x28] sm:$0xff]
    %v2181 = vld [vmem:[%s61 + $0x30] sm:$0xff]
    %v2182 = vld [vmem:[%s61 + $0x38] sm:$0xff]
    %v2183 = vld [vmem:[%s63] sm:$0xff]
    %v2184 = vld [vmem:[%s63 + $0x8] sm:$0xff]
    %v2185 = vld [vmem:[%s63 + $0x10] sm:$0xff]
    %v2186 = vld [vmem:[%s63 + $0x18] sm:$0xff]
    %v2187 = vld [vmem:[%s63 + $0x20] sm:$0xff]
    %v2188 = vld [vmem:[%s63 + $0x28] sm:$0xff]
    %v2189 = vld [vmem:[%s63 + $0x30] sm:$0xff]
    %v2190 = vld [vmem:[%s63 + $0x38] sm:$0xff]
    %v2191 = vld [vmem:[%s63 + $0x40] sm:$0xff]
    %v2192 = vld [vmem:[%s63 + $0x48] sm:$0xff]
    %v2193 = vld [vmem:[%s63 + $0x50] sm:$0xff]
    %v2194 = vld [vmem:[%s63 + $0x58] sm:$0xff]
    %v2195 = vld [vmem:[%s63 + $0x60] sm:$0xff]
    %v2196 = vld [vmem:[%s63 + $0x68] sm:$0xff]
    %v2197 = vld [vmem:[%s63 + $0x70] sm:$0xff]
    %v2198 = vld [vmem:[%s63 + $0x78] sm:$0xff]
    %v2199 = vsel %vm1587, %v2168, 0
    %2201 = vmatprep.subr.mxu0 %v2184
    %2202 = vmatpush1.msra.mxu0 %v2183
    %2203 = vmatprep.subr.mxu0 %v2186
    %2204 = vmatpush1.msra.mxu0 %v2185
    %2205 = vmatprep.subr.mxu0 %v2188
    %2206 = vmatpush1.msra.mxu0 %v2187
    %2207 = vmatprep.subr.mxu0 %v2190
    %2208 = vmatpush1.msra.mxu0 %v2189
    %2209 = vmatprep.subr.mxu0 %v2192
    %2210 = vmatpush1.msra.mxu0 %v2191
    %2211 = vmatprep.subr.mxu0 %v2194
    %2212 = vmatpush1.msra.mxu0 %v2193
    %2213 = vmatprep.subr.mxu0 %v2196
    %2214 = vmatpush1.msra.mxu0 %v2195
    %2215 = vmatprep.subr.mxu0 %v2198
    %2216 = vmatpush1.msra.mxu0 %v2197
    %2217 = vmatprep.subr.mxu0 0.0
    %2218 = vmatpush1.msra.mxu0 0.0
    %2219 = vmatprep.subr.mxu0 0.0
    %2220 = vmatpush1.msra.mxu0 0.0
    %2221 = vmatprep.subr.mxu0 0.0
    %2222 = vmatpush1.msra.mxu0 0.0
    %2223 = vmatprep.subr.mxu0 0.0
    %2224 = vmatpush1.msra.mxu0 0.0
    %2225 = vmatprep.subr.mxu0 0.0
    %2226 = vmatpush1.msra.mxu0 0.0
    %2227 = vmatprep.subr.mxu0 0.0
    %2228 = vmatpush1.msra.mxu0 0.0
    %2229 = vmatprep.subr.mxu0 0.0
    %2230 = vmatpush1.msra.mxu0 0.0
    %2231 = vmatprep.subr.mxu0 0.0
    %2232 = vmatpush1.msra.mxu0 0.0
    %2233 = vmatprep.subr.mxu0 0.0
    %2234 = vmatpush1.msra.mxu0 0.0
    %2235 = vmatprep.subr.mxu0 0.0
    %2236 = vmatpush1.msra.mxu0 0.0
    %2237 = vmatprep.subr.mxu0 0.0
    %2238 = vmatpush1.msra.mxu0 0.0
    %2239 = vmatprep.subr.mxu0 0.0
    %2240 = vmatpush1.msra.mxu0 0.0
    %2241 = vmatprep.subr.mxu0 0.0
    %2242 = vmatpush1.msra.mxu0 0.0
    %2243 = vmatprep.subr.mxu0 0.0
    %2244 = vmatpush1.msra.mxu0 0.0
    %2245 = vmatprep.subr.mxu0 0.0
    %2246 = vmatpush1.msra.mxu0 0.0
    %2247 = vmatprep.subr.mxu0 0.0
    %2248 = vmatpush1.msra.mxu0 0.0
    %2249 = vmatprep.subr.mxu0 0.0
    %2250 = vmatpush1.msra.mxu0 0.0
    %2251 = vmatprep.subr.mxu0 0.0
    %2252 = vmatpush1.msra.mxu0 0.0
    %2253 = vmatprep.subr.mxu0 0.0
    %2254 = vmatpush1.msra.mxu0 0.0
    %2255 = vmatprep.subr.mxu0 0.0
    %2256 = vmatpush1.msra.mxu0 0.0
    %2257 = vmatprep.subr.mxu0 0.0
    %2258 = vmatpush1.msra.mxu0 0.0
    %2259 = vmatprep.subr.mxu0 0.0
    %2260 = vmatpush1.msra.mxu0 0.0
    %2261 = vmatprep.subr.mxu0 0.0
    %2262 = vmatpush1.msra.mxu0 0.0
    %2263 = vmatprep.subr.mxu0 0.0
    %2264 = vmatpush1.msra.mxu0 0.0
    %2265 = vmatprep.mubr.f32.mxu0 0.0
    %2266 = vmatmul.mubr.f32.gmra.mrb[0].mxu0 %v2199
    %v2267 = vpop.f32.mrb[0].mxu0
    %v2268 = vadd.f32 0.0, %v2267
    %v2269 = vpop.f32.mrb[0].mxu0
    %v2270 = vadd.f32 0.0, %v2269
    %2271 = vdwg.mxu0
    %v2273 = vsel %vm518, %v1568, 0
    %2275 = vmatprep.subr.mxu0 %v2176
    %2276 = vmatpush1.msra.mxu0 %v2175
    %2277 = vmatprep.subr.mxu0 %v2178
    %2278 = vmatpush1.msra.mxu0 %v2177
    %2279 = vmatprep.subr.mxu0 %v2180
    %2280 = vmatpush1.msra.mxu0 %v2179
    %2281 = vmatprep.subr.mxu0 %v2182
    %2282 = vmatpush1.msra.mxu0 %v2181
    %2283 = vmatprep.subr.mxu0 0.0
    %2284 = vmatpush1.msra.mxu0 0.0
    %2285 = vmatprep.subr.mxu0 0.0
    %2286 = vmatpush1.msra.mxu0 0.0
    %2287 = vmatprep.subr.mxu0 0.0
    %2288 = vmatpush1.msra.mxu0 0.0
    %2289 = vmatprep.subr.mxu0 0.0
    %2290 = vmatpush1.msra.mxu0 0.0
    %2291 = vmatprep.subr.mxu0 0.0
    %2292 = vmatpush1.msra.mxu0 0.0
    %2293 = vmatprep.subr.mxu0 0.0
    %2294 = vmatpush1.msra.mxu0 0.0
    %2295 = vmatprep.subr.mxu0 0.0
    %2296 = vmatpush1.msra.mxu0 0.0
    %2297 = vmatprep.subr.mxu0 0.0
    %2298 = vmatpush1.msra.mxu0 0.0
    %2299 = vmatprep.subr.mxu0 0.0
    %2300 = vmatpush1.msra.mxu0 0.0
    %2301 = vmatprep.subr.mxu0 0.0
    %2302 = vmatpush1.msra.mxu0 0.0
    %2303 = vmatprep.subr.mxu0 0.0
    %2304 = vmatpush1.msra.mxu0 0.0
    %2305 = vmatprep.subr.mxu0 0.0
    %2306 = vmatpush1.msra.mxu0 0.0
    %2307 = vmatprep.subr.mxu0 0.0
    %2308 = vmatpush1.msra.mxu0 0.0
    %2309 = vmatprep.subr.mxu0 0.0
    %2310 = vmatpush1.msra.mxu0 0.0
    %2311 = vmatprep.subr.mxu0 0.0
    %2312 = vmatpush1.msra.mxu0 0.0
    %2313 = vmatprep.subr.mxu0 0.0
    %2314 = vmatpush1.msra.mxu0 0.0
    %2315 = vmatprep.subr.mxu0 0.0
    %2316 = vmatpush1.msra.mxu0 0.0
    %2317 = vmatprep.subr.mxu0 0.0
    %2318 = vmatpush1.msra.mxu0 0.0
    %2319 = vmatprep.subr.mxu0 0.0
    %2320 = vmatpush1.msra.mxu0 0.0
    %2321 = vmatprep.subr.mxu0 0.0
    %2322 = vmatpush1.msra.mxu0 0.0
    %2323 = vmatprep.subr.mxu0 0.0
    %2324 = vmatpush1.msra.mxu0 0.0
    %2325 = vmatprep.subr.mxu0 0.0
    %2326 = vmatpush1.msra.mxu0 0.0
    %2327 = vmatprep.subr.mxu0 0.0
    %2328 = vmatpush1.msra.mxu0 0.0
    %2329 = vmatprep.subr.mxu0 0.0
    %2330 = vmatpush1.msra.mxu0 0.0
    %2331 = vmatprep.subr.mxu0 0.0
    %2332 = vmatpush1.msra.mxu0 0.0
    %2333 = vmatprep.subr.mxu0 0.0
    %2334 = vmatpush1.msra.mxu0 0.0
    %2335 = vmatprep.subr.mxu0 0.0
    %2336 = vmatpush1.msra.mxu0 0.0
    %2337 = vmatprep.subr.mxu0 0.0
    %2338 = vmatpush1.msra.mxu0 0.0
    %2339 = vmatprep.mubr.f32.mxu0 0.0
    %2340 = vmatmul.mubr.f32.gmra.mrb[0].mxu0 %v2273
    %v2341 = vpop.f32.mrb[0].mxu0
    %v2342 = vadd.f32 %v2268, %v2341
    %v2343 = vpop.f32.mrb[0].mxu0
    %v2344 = vadd.f32 %v2270, %v2343
    %2345 = vdwg.mxu0
    %v2346 = vld [vmem:[#allocation39] sm:$0x3]
    %v2348 = vlaneseq
    %v2349 = vshrl.u32 %v2348, 7
    %v2350 = vsub.s32 0, %v2349
    %v2351 = vrot.slane %v2346, %v2350
    %v2352 = vlaneseq
    %v2353 = vshrl.u32 %v2352, 7
    %v2354 = vsub.s32 1, %v2353
    %v2355 = vrot.slane %v2346, %v2354
    %v2358 = vadd.f32 %v2342, %v2351
    %v2359 = vadd.f32 %v2344, %v2355
    %v2360 = vmax.f32 %v2358, 0.0
    %v2361 = vld [vmem:[%s67] sm:$0xff]
    %v2362 = vld [vmem:[%s67 + $0x8] sm:$0xff]
    %v2363 = vld [vmem:[%s67 + $0x10] sm:$0xff]
    %v2364 = vld [vmem:[%s67 + $0x18] sm:$0xff]
    %v2365 = vld [vmem:[%s67 + $0x20] sm:$0xff]
    %v2366 = vld [vmem:[%s67 + $0x28] sm:$0xff]
    %v2367 = vld [vmem:[%s67 + $0x30] sm:$0xff]
    %v2368 = vld [vmem:[%s67 + $0x38] sm:$0xff]
    %v2369 = vld [vmem:[%s67 + $0x40] sm:$0xff]
    %v2370 = vld [vmem:[%s67 + $0x48] sm:$0xff]
    %v2371 = vld [vmem:[%s67 + $0x50] sm:$0xff]
    %v2372 = vld [vmem:[%s67 + $0x58] sm:$0xff]
    %v2373 = vld [vmem:[%s67 + $0x60] sm:$0xff]
    %v2374 = vld [vmem:[%s67 + $0x68] sm:$0xff]
    %v2375 = vld [vmem:[%s67 + $0x70] sm:$0xff]
    %v2376 = vld [vmem:[%s67 + $0x78] sm:$0xff]
    %v2377 = vld [vmem:[#allocation40] sm:$0x1]
    %v2379 = vlaneseq
    %v2380 = vshrl.u32 %v2379, 7
    %v2381 = vsub.s32 0, %v2380
    %v2382 = vrot.slane %v2377, %v2381
    %2384 = vmatprep.subr.mxu0 0.0
    %2385 = vmatpush1.msra.mxu0 %v2361
    %2386 = vmatprep.subr.mxu0 0.0
    %2387 = vmatpush1.msra.mxu0 %v2362
    %2388 = vmatprep.subr.mxu0 0.0
    %2389 = vmatpush1.msra.mxu0 %v2363
    %2390 = vmatprep.subr.mxu0 0.0
    %2391 = vmatpush1.msra.mxu0 %v2364
    %2392 = vmatprep.subr.mxu0 0.0
    %2393 = vmatpush1.msra.mxu0 %v2365
    %2394 = vmatprep.subr.mxu0 0.0
    %2395 = vmatpush1.msra.mxu0 %v2366
    %2396 = vmatprep.subr.mxu0 0.0
    %2397 = vmatpush1.msra.mxu0 %v2367
    %2398 = vmatprep.subr.mxu0 0.0
    %2399 = vmatpush1.msra.mxu0 %v2368
    %2400 = vmatprep.subr.mxu0 0.0
    %2401 = vmatpush1.msra.mxu0 %v2369
    %2402 = vmatprep.subr.mxu0 0.0
    %2403 = vmatpush1.msra.mxu0 %v2370
    %2404 = vmatprep.subr.mxu0 0.0
    %2405 = vmatpush1.msra.mxu0 %v2371
    %2406 = vmatprep.subr.mxu0 0.0
    %2407 = vmatpush1.msra.mxu0 %v2372
    %2408 = vmatprep.subr.mxu0 0.0
    %2409 = vmatpush1.msra.mxu0 %v2373
    %2410 = vmatprep.subr.mxu0 0.0
    %2411 = vmatpush1.msra.mxu0 %v2374
    %2412 = vmatprep.subr.mxu0 0.0
    %2413 = vmatpush1.msra.mxu0 %v2375
    %2414 = vmatprep.subr.mxu0 0.0
    %2415 = vmatpush1.msra.mxu0 %v2376
    %2416 = vmatprep.subr.mxu0 0.0
    %2417 = vmatpush1.msra.mxu0 0.0
    %2418 = vmatprep.subr.mxu0 0.0
    %2419 = vmatpush1.msra.mxu0 0.0
    %2420 = vmatprep.subr.mxu0 0.0
    %2421 = vmatpush1.msra.mxu0 0.0
    %2422 = vmatprep.subr.mxu0 0.0
    %2423 = vmatpush1.msra.mxu0 0.0
    %2424 = vmatprep.subr.mxu0 0.0
    %2425 = vmatpush1.msra.mxu0 0.0
    %2426 = vmatprep.subr.mxu0 0.0
    %2427 = vmatpush1.msra.mxu0 0.0
    %2428 = vmatprep.subr.mxu0 0.0
    %2429 = vmatpush1.msra.mxu0 0.0
    %2430 = vmatprep.subr.mxu0 0.0
    %2431 = vmatpush1.msra.mxu0 0.0
    %2432 = vmatprep.subr.mxu0 0.0
    %2433 = vmatpush1.msra.mxu0 0.0
    %2434 = vmatprep.subr.mxu0 0.0
    %2435 = vmatpush1.msra.mxu0 0.0
    %2436 = vmatprep.subr.mxu0 0.0
    %2437 = vmatpush1.msra.mxu0 0.0
    %2438 = vmatprep.subr.mxu0 0.0
    %2439 = vmatpush1.msra.mxu0 0.0
    %2440 = vmatprep.subr.mxu0 0.0
    %2441 = vmatpush1.msra.mxu0 0.0
    %2442 = vmatprep.subr.mxu0 0.0
    %2443 = vmatpush1.msra.mxu0 0.0
    %2444 = vmatprep.subr.mxu0 0.0
    %2445 = vmatpush1.msra.mxu0 0.0
    %2446 = vmatprep.subr.mxu0 0.0
    %2447 = vmatpush1.msra.mxu0 0.0
    %2448 = vmatprep.mubr.f32.mxu0 0.0
    %2449 = vmatmul.mubr.f32.gmra.mrb[0].mxu0 %v2360
    %v2450 = vpop.f32.mrb[0].mxu0
    %v2451 = vadd.f32 %v2382, %v2450
    %v2452 = vpop.f32.mrb[0].mxu0
    %2453 = vdwg.mxu0
    %v2454 = vadd.f32 %v2451, %v2359
    %v2455 = vld [vmem:[%s75] sm:$0xf]
    %v2456 = vld [vmem:[%s77] sm:$0xf]
    %v2457 = vld [vmem:[#allocation42] sm:$0x1]
    %v2458 = vld [vmem:[#allocation43] sm:$0x1]
    %v2460 = vsel %vm2002, %v2454, 0
    %v2463 = vsel %vm2006, %v2455, 0
    %2465 = vmatprep.subr.mxu0 0.0
    %2466 = vmatpush1.msra.mxu0 %v2463
    %2467 = vmatprep.subr.mxu0 0.0
    %2468 = vmatpush1.msra.mxu0 0.0
    %2469 = vmatprep.subr.mxu0 0.0
    %2470 = vmatpush1.msra.mxu0 0.0
    %2471 = vmatprep.subr.mxu0 0.0
    %2472 = vmatpush1.msra.mxu0 0.0
    %2473 = vmatprep.subr.mxu0 0.0
    %2474 = vmatpush1.msra.mxu0 0.0
    %2475 = vmatprep.subr.mxu0 0.0
    %2476 = vmatpush1.msra.mxu0 0.0
    %2477 = vmatprep.subr.mxu0 0.0
    %2478 = vmatpush1.msra.mxu0 0.0
    %2479 = vmatprep.subr.mxu0 0.0
    %2480 = vmatpush1.msra.mxu0 0.0
    %2481 = vmatprep.subr.mxu0 0.0
    %2482 = vmatpush1.msra.mxu0 0.0
    %2483 = vmatprep.subr.mxu0 0.0
    %2484 = vmatpush1.msra.mxu0 0.0
    %2485 = vmatprep.subr.mxu0 0.0
    %2486 = vmatpush1.msra.mxu0 0.0
    %2487 = vmatprep.subr.mxu0 0.0
    %2488 = vmatpush1.msra.mxu0 0.0
    %2489 = vmatprep.subr.mxu0 0.0
    %2490 = vmatpush1.msra.mxu0 0.0
    %2491 = vmatprep.subr.mxu0 0.0
    %2492 = vmatpush1.msra.mxu0 0.0
    %2493 = vmatprep.subr.mxu0 0.0
    %2494 = vmatpush1.msra.mxu0 0.0
    %2495 = vmatprep.subr.mxu0 0.0
    %2496 = vmatpush1.msra.mxu0 0.0
    %2497 = vmatprep.subr.mxu0 0.0
    %2498 = vmatpush1.msra.mxu0 0.0
    %2499 = vmatprep.subr.mxu0 0.0
    %2500 = vmatpush1.msra.mxu0 0.0
    %2501 = vmatprep.subr.mxu0 0.0
    %2502 = vmatpush1.msra.mxu0 0.0
    %2503 = vmatprep.subr.mxu0 0.0
    %2504 = vmatpush1.msra.mxu0 0.0
    %2505 = vmatprep.subr.mxu0 0.0
    %2506 = vmatpush1.msra.mxu0 0.0
    %2507 = vmatprep.subr.mxu0 0.0
    %2508 = vmatpush1.msra.mxu0 0.0
    %2509 = vmatprep.subr.mxu0 0.0
    %2510 = vmatpush1.msra.mxu0 0.0
    %2511 = vmatprep.subr.mxu0 0.0
    %2512 = vmatpush1.msra.mxu0 0.0
    %2513 = vmatprep.subr.mxu0 0.0
    %2514 = vmatpush1.msra.mxu0 0.0
    %2515 = vmatprep.subr.mxu0 0.0
    %2516 = vmatpush1.msra.mxu0 0.0
    %2517 = vmatprep.subr.mxu0 0.0
    %2518 = vmatpush1.msra.mxu0 0.0
    %2519 = vmatprep.subr.mxu0 0.0
    %2520 = vmatpush1.msra.mxu0 0.0
    %2521 = vmatprep.subr.mxu0 0.0
    %2522 = vmatpush1.msra.mxu0 0.0
    %2523 = vmatprep.subr.mxu0 0.0
    %2524 = vmatpush1.msra.mxu0 0.0
    %2525 = vmatprep.subr.mxu0 0.0
    %2526 = vmatpush1.msra.mxu0 0.0
    %2527 = vmatprep.subr.mxu0 0.0
    %2528 = vmatpush1.msra.mxu0 0.0
    %2529 = vmatprep.mubr.f32.mxu0 0.0
    %2530 = vmatmul.mubr.f32.gmra.mrb[0].mxu0 %v2460
    %v2531 = vpop.f32.mrb[0].mxu0
    %v2532 = vadd.f32 0.0, %v2531
    %v2533 = vpop.f32.mrb[0].mxu0
    %2534 = vdwg.mxu0
    %v2535 = vmul.f32 %v2454, %v2454
    %v2537 = vsel %vm2002, %v2535, 0
    %2539 = vmatprep.subr.mxu0 0.0
    %2540 = vmatpush1.msra.mxu0 %v2463
    %2541 = vmatprep.subr.mxu0 0.0
    %2542 = vmatpush1.msra.mxu0 0.0
    %2543 = vmatprep.subr.mxu0 0.0
    %2544 = vmatpush1.msra.mxu0 0.0
    %2545 = vmatprep.subr.mxu0 0.0
    %2546 = vmatpush1.msra.mxu0 0.0
    %2547 = vmatprep.subr.mxu0 0.0
    %2548 = vmatpush1.msra.mxu0 0.0
    %2549 = vmatprep.subr.mxu0 0.0
    %2550 = vmatpush1.msra.mxu0 0.0
    %2551 = vmatprep.subr.mxu0 0.0
    %2552 = vmatpush1.msra.mxu0 0.0
    %2553 = vmatprep.subr.mxu0 0.0
    %2554 = vmatpush1.msra.mxu0 0.0
    %2555 = vmatprep.subr.mxu0 0.0
    %2556 = vmatpush1.msra.mxu0 0.0
    %2557 = vmatprep.subr.mxu0 0.0
    %2558 = vmatpush1.msra.mxu0 0.0
    %2559 = vmatprep.subr.mxu0 0.0
    %2560 = vmatpush1.msra.mxu0 0.0
    %2561 = vmatprep.subr.mxu0 0.0
    %2562 = vmatpush1.msra.mxu0 0.0
    %2563 = vmatprep.subr.mxu0 0.0
    %2564 = vmatpush1.msra.mxu0 0.0
    %2565 = vmatprep.subr.mxu0 0.0
    %2566 = vmatpush1.msra.mxu0 0.0
    %2567 = vmatprep.subr.mxu0 0.0
    %2568 = vmatpush1.msra.mxu0 0.0
    %2569 = vmatprep.subr.mxu0 0.0
    %2570 = vmatpush1.msra.mxu0 0.0
    %2571 = vmatprep.subr.mxu0 0.0
    %2572 = vmatpush1.msra.mxu0 0.0
    %2573 = vmatprep.subr.mxu0 0.0
    %2574 = vmatpush1.msra.mxu0 0.0
    %2575 = vmatprep.subr.mxu0 0.0
    %2576 = vmatpush1.msra.mxu0 0.0
    %2577 = vmatprep.subr.mxu0 0.0
    %2578 = vmatpush1.msra.mxu0 0.0
    %2579 = vmatprep.subr.mxu0 0.0
    %2580 = vmatpush1.msra.mxu0 0.0
    %2581 = vmatprep.subr.mxu0 0.0
    %2582 = vmatpush1.msra.mxu0 0.0
    %2583 = vmatprep.subr.mxu0 0.0
    %2584 = vmatpush1.msra.mxu0 0.0
    %2585 = vmatprep.subr.mxu0 0.0
    %2586 = vmatpush1.msra.mxu0 0.0
    %2587 = vmatprep.subr.mxu0 0.0
    %2588 = vmatpush1.msra.mxu0 0.0
    %2589 = vmatprep.subr.mxu0 0.0
    %2590 = vmatpush1.msra.mxu0 0.0
    %2591 = vmatprep.subr.mxu0 0.0
    %2592 = vmatpush1.msra.mxu0 0.0
    %2593 = vmatprep.subr.mxu0 0.0
    %2594 = vmatpush1.msra.mxu0 0.0
    %2595 = vmatprep.subr.mxu0 0.0
    %2596 = vmatpush1.msra.mxu0 0.0
    %2597 = vmatprep.subr.mxu0 0.0
    %2598 = vmatpush1.msra.mxu0 0.0
    %2599 = vmatprep.subr.mxu0 0.0
    %2600 = vmatpush1.msra.mxu0 0.0
    %2601 = vmatprep.subr.mxu0 0.0
    %2602 = vmatpush1.msra.mxu0 0.0
    %2603 = vmatprep.mubr.f32.mxu0 0.0
    %2604 = vmatmul.mubr.f32.gmra.mrb[0].mxu0 %v2537
    %v2605 = vpop.f32.mrb[0].mxu0
    %v2606 = vadd.f32 0.0, %v2605
    %v2607 = vpop.f32.mrb[0].mxu0
    %2608 = vdwg.mxu0
    %v2609 = vmul.f32 %v2532, %v2532
    %v2610 = vsub.f32 %v2606, %v2609
    %v2611 = vmax.f32 %v2610, 0.0
    %v2612 = vadd.f32 %v2611, 1e-05
    %v2613 = vrsqrt.pop %v2612
    %v2615 = vsel %vm2002, %v2532, 0
    %v2618 = vsel %vm2006, %v2456, 0
    %2620 = vmatprep.subr.mxu0 0.0
    %2621 = vmatpush1.msra.mxu0 %v2618
    %2622 = vmatprep.subr.mxu0 0.0
    %2623 = vmatpush1.msra.mxu0 0.0
    %2624 = vmatprep.subr.mxu0 0.0
    %2625 = vmatpush1.msra.mxu0 0.0
    %2626 = vmatprep.subr.mxu0 0.0
    %2627 = vmatpush1.msra.mxu0 0.0
    %2628 = vmatprep.subr.mxu0 0.0
    %2629 = vmatpush1.msra.mxu0 0.0
    %2630 = vmatprep.subr.mxu0 0.0
    %2631 = vmatpush1.msra.mxu0 0.0
    %2632 = vmatprep.subr.mxu0 0.0
    %2633 = vmatpush1.msra.mxu0 0.0
    %2634 = vmatprep.subr.mxu0 0.0
    %2635 = vmatpush1.msra.mxu0 0.0
    %2636 = vmatprep.subr.mxu0 0.0
    %2637 = vmatpush1.msra.mxu0 0.0
    %2638 = vmatprep.subr.mxu0 0.0
    %2639 = vmatpush1.msra.mxu0 0.0
    %2640 = vmatprep.subr.mxu0 0.0
    %2641 = vmatpush1.msra.mxu0 0.0
    %2642 = vmatprep.subr.mxu0 0.0
    %2643 = vmatpush1.msra.mxu0 0.0
    %2644 = vmatprep.subr.mxu0 0.0
    %2645 = vmatpush1.msra.mxu0 0.0
    %2646 = vmatprep.subr.mxu0 0.0
    %2647 = vmatpush1.msra.mxu0 0.0
    %2648 = vmatprep.subr.mxu0 0.0
    %2649 = vmatpush1.msra.mxu0 0.0
    %2650 = vmatprep.subr.mxu0 0.0
    %2651 = vmatpush1.msra.mxu0 0.0
    %2652 = vmatprep.subr.mxu0 0.0
    %2653 = vmatpush1.msra.mxu0 0.0
    %2654 = vmatprep.subr.mxu0 0.0
    %2655 = vmatpush1.msra.mxu0 0.0
    %2656 = vmatprep.subr.mxu0 0.0
    %2657 = vmatpush1.msra.mxu0 0.0
    %2658 = vmatprep.subr.mxu0 0.0
    %2659 = vmatpush1.msra.mxu0 0.0
    %2660 = vmatprep.subr.mxu0 0.0
    %2661 = vmatpush1.msra.mxu0 0.0
    %2662 = vmatprep.subr.mxu0 0.0
    %2663 = vmatpush1.msra.mxu0 0.0
    %2664 = vmatprep.subr.mxu0 0.0
    %2665 = vmatpush1.msra.mxu0 0.0
    %2666 = vmatprep.subr.mxu0 0.0
    %2667 = vmatpush1.msra.mxu0 0.0
    %2668 = vmatprep.subr.mxu0 0.0
    %2669 = vmatpush1.msra.mxu0 0.0
    %2670 = vmatprep.subr.mxu0 0.0
    %2671 = vmatpush1.msra.mxu0 0.0
    %2672 = vmatprep.subr.mxu0 0.0
    %2673 = vmatpush1.msra.mxu0 0.0
    %2674 = vmatprep.subr.mxu0 0.0
    %2675 = vmatpush1.msra.mxu0 0.0
    %2676 = vmatprep.subr.mxu0 0.0
    %2677 = vmatpush1.msra.mxu0 0.0
    %2678 = vmatprep.subr.mxu0 0.0
    %2679 = vmatpush1.msra.mxu0 0.0
    %2680 = vmatprep.subr.mxu0 0.0
    %2681 = vmatpush1.msra.mxu0 0.0
    %2682 = vmatprep.subr.mxu0 0.0
    %2683 = vmatpush1.msra.mxu0 0.0
    %2684 = vmatprep.mubr.f32.mxu0 0.0
    %2685 = vmatmul.mubr.f32.gmra.mrb[0].mxu0 %v2615
    %v2686 = vpop.f32.mrb[0].mxu0
    %v2687 = vadd.f32 0.0, %v2686
    %v2688 = vpop.f32.mrb[0].mxu0
    %2689 = vdwg.mxu0
    %v2691 = vsel %vm2002, %v2613, 0
    %2693 = vmatprep.subr.mxu0 0.0
    %2694 = vmatpush1.msra.mxu0 %v2618
    %2695 = vmatprep.subr.mxu0 0.0
    %2696 = vmatpush1.msra.mxu0 0.0
    %2697 = vmatprep.subr.mxu0 0.0
    %2698 = vmatpush1.msra.mxu0 0.0
    %2699 = vmatprep.subr.mxu0 0.0
    %2700 = vmatpush1.msra.mxu0 0.0
    %2701 = vmatprep.subr.mxu0 0.0
    %2702 = vmatpush1.msra.mxu0 0.0
    %2703 = vmatprep.subr.mxu0 0.0
    %2704 = vmatpush1.msra.mxu0 0.0
    %2705 = vmatprep.subr.mxu0 0.0
    %2706 = vmatpush1.msra.mxu0 0.0
    %2707 = vmatprep.subr.mxu0 0.0
    %2708 = vmatpush1.msra.mxu0 0.0
    %2709 = vmatprep.subr.mxu0 0.0
    %2710 = vmatpush1.msra.mxu0 0.0
    %2711 = vmatprep.subr.mxu0 0.0
    %2712 = vmatpush1.msra.mxu0 0.0
    %2713 = vmatprep.subr.mxu0 0.0
    %2714 = vmatpush1.msra.mxu0 0.0
    %2715 = vmatprep.subr.mxu0 0.0
    %2716 = vmatpush1.msra.mxu0 0.0
    %2717 = vmatprep.subr.mxu0 0.0
    %2718 = vmatpush1.msra.mxu0 0.0
    %2719 = vmatprep.subr.mxu0 0.0
    %2720 = vmatpush1.msra.mxu0 0.0
    %2721 = vmatprep.subr.mxu0 0.0
    %2722 = vmatpush1.msra.mxu0 0.0
    %2723 = vmatprep.subr.mxu0 0.0
    %2724 = vmatpush1.msra.mxu0 0.0
    %2725 = vmatprep.subr.mxu0 0.0
    %2726 = vmatpush1.msra.mxu0 0.0
    %2727 = vmatprep.subr.mxu0 0.0
    %2728 = vmatpush1.msra.mxu0 0.0
    %2729 = vmatprep.subr.mxu0 0.0
    %2730 = vmatpush1.msra.mxu0 0.0
    %2731 = vmatprep.subr.mxu0 0.0
    %2732 = vmatpush1.msra.mxu0 0.0
    %2733 = vmatprep.subr.mxu0 0.0
    %2734 = vmatpush1.msra.mxu0 0.0
    %2735 = vmatprep.subr.mxu0 0.0
    %2736 = vmatpush1.msra.mxu0 0.0
    %2737 = vmatprep.subr.mxu0 0.0
    %2738 = vmatpush1.msra.mxu0 0.0
    %2739 = vmatprep.subr.mxu0 0.0
    %2740 = vmatpush1.msra.mxu0 0.0
    %2741 = vmatprep.subr.mxu0 0.0
    %2742 = vmatpush1.msra.mxu0 0.0
    %2743 = vmatprep.subr.mxu0 0.0
    %2744 = vmatpush1.msra.mxu0 0.0
    %2745 = vmatprep.subr.mxu0 0.0
    %2746 = vmatpush1.msra.mxu0 0.0
    %2747 = vmatprep.subr.mxu0 0.0
    %2748 = vmatpush1.msra.mxu0 0.0
    %2749 = vmatprep.subr.mxu0 0.0
    %2750 = vmatpush1.msra.mxu0 0.0
    %2751 = vmatprep.subr.mxu0 0.0
    %2752 = vmatpush1.msra.mxu0 0.0
    %2753 = vmatprep.subr.mxu0 0.0
    %2754 = vmatpush1.msra.mxu0 0.0
    %2755 = vmatprep.subr.mxu0 0.0
    %2756 = vmatpush1.msra.mxu0 0.0
    %2757 = vmatprep.mubr.f32.mxu0 0.0
    %2758 = vmatmul.mubr.f32.gmra.mrb[0].mxu0 %v2691
    %v2759 = vpop.f32.mrb[0].mxu0
    %v2760 = vadd.f32 0.0, %v2759
    %v2761 = vpop.f32.mrb[0].mxu0
    %2762 = vdwg.mxu0
    %v2763 = vsub.f32 %v2454, %v2687
    %v2764 = vmul.f32 %v2763, %v2760
    %v2766 = vlaneseq
    %v2767 = vshrl.u32 %v2766, 7
    %v2768 = vsub.s32 0, %v2767
    %v2769 = vrot.slane %v2457, %v2768
    %v2771 = vmul.f32 %v2764, %v2769
    %v2773 = vlaneseq
    %v2774 = vshrl.u32 %v2773, 7
    %v2775 = vsub.s32 0, %v2774
    %v2776 = vrot.slane %v2458, %v2775
    %v2778 = vadd.f32 %v2771, %v2776
    %2780 = vrot.lane.b32.xlu0 %v2778, 96
    %v2781 = vpop.permute.xlu0 %2780
    %vm2783 = vcmask 812800
    %2784 = vst.msk [vmem:[%s79] sm:$0x3] %vm2783, %v2781
    // Predicated region
    $region270: #{dec_forward.1} parent=1 // pred_check
      _
    $region271: #{dec_forward.1} parent=1 // pred_check_branch
      %2786 = sbr.rel (0) target = $region273
    $region272: #{dec_forward.1} parent=1 // pred_region
      _
    $region273: #{dec_forward.1} parent=1 // pred_fallthru
      _
    // Predicated region
    $region274: #{dec_forward.1} parent=1 // pred_check
      _
    $region275: #{dec_forward.1} parent=1 // pred_check_branch
      %2788 = sbr.rel (0) target = $region277
    $region276: #{dec_forward.1} parent=1 // pred_region
      _
    $region277: #{dec_forward.1} parent=1 // pred_fallthru
      _
    %2789 = vsyncpa [#allocation3], 1
    %2790 = vsyncpa [#allocation5], 1
    %2791 = vsyncpa [#allocation8], 1
    %2792 = vsyncpa [#allocation11], 1
    %2793 = vsyncpa [#allocation14], 1
    %2794 = vsyncpa [#allocation17], 1
    %2795 = vsyncpa [#allocation20], 1
    %2796 = vsyncpa [#allocation23], 1
    %2797 = vsyncpa [#allocation26], 1
    %2798 = vsyncpa [#allocation29], 1
    %2799 = vsyncpa [#allocation32], 1
    %2800 = vsyncpa [#allocation35], 1
    %2801 = vsyncpa [#allocation38], 1
    %2802 = vsyncpa [#allocation41], 1
    %2803 = vsyncpa [#allocation44], 1

</llo_original>
